<compile_context>
chip_gen: v7x
topology: tpu7x:2x2x1
jax: 0.10.0
libtpu: 0.0.40
codegen_flags: <defaults>
</compile_context>

<pallas_src>
import functools

import jax
import jax.numpy as jnp
from jax.experimental import pallas as pl
from jax.experimental.pallas import tpu as pltpu


def _dense_block_kernel(*refs, C, H, W, depth, eps, bp):
    x_ref = refs[0]                       # (bp, C, H*W) f32
    w_refs = refs[1:1 + depth]            # layer i: (C, 9*C*(i+1)) bf16
    prm_ref = refs[1 + depth]             # (C, 3*depth) f32: gamma/beta/alpha
    o_ref = refs[2 + depth]               # (bp, C, H*W)
    buf_ref = refs[3 + depth]             # VMEM (depth*C, bp*(H+2*PH)*W) bf16
    taps_ref = refs[4 + depth]            # VMEM (9*C*depth, bp*H*W) bf16

    HW = H * W
    PH = 2 ** (depth - 1)                 # H zero-pad rows == max dilation
    PWIN = (H + 2 * PH) * W               # per-sample padded lane window
    base = PH * W                         # valid-window lane offset in PWIN

    # --- per-step init -------------------------------------------------------
    # Zero only the H-padding lane stripes: every valid lane is rewritten each
    # step before it is read, and no layer ever writes the padding lanes.
    pad0 = jnp.zeros((depth * C, PH * W), dtype=buf_ref.dtype)
    for s in range(bp):
        buf_ref[:, pl.ds(s * PWIN, PH * W)] = pad0
        buf_ref[:, pl.ds(s * PWIN + base + HW, PH * W)] = pad0

    # Input goes into the LAST C rows: torch's skip = cat([x_i, skip]) keeps
    # the original x as the trailing channel block.
    for s in range(bp):
        buf_ref[pl.ds((depth - 1) * C, C),
                pl.ds(s * PWIN + base, HW)] = x_ref[s].astype(buf_ref.dtype)

    # W-direction zero-padding masks (kernel_w = 3, dilation_w = 1, pad_w = 1).
    w_idx = jax.lax.broadcasted_iota(jnp.int32, (1, HW), 1) % W
    mask_l = w_idx != 0           # source column w-1 exists
    mask_r = w_idx != W - 1       # source column w+1 exists

    for i in range(depth):
        cin = C * (i + 1)
        dil = 2 ** i
        row_lo = (depth - 1 - i) * C      # layer input rows [row_lo, depth*C)

        # --- stage the 9 conv taps into one contiguous bf16 operand ---------
        for s in range(bp):
            col = pl.ds(s * HW, HW)
            for kh in range(3):
                off = s * PWIN + base + (kh - 1) * dil * W
                ph = buf_ref[pl.ds(row_lo, cin), pl.ds(off, HW)]   # bf16
                zeros = jnp.zeros_like(ph)
                left = jnp.where(mask_l, jnp.roll(ph, 1, axis=1), zeros)
                right = jnp.where(mask_r, jnp.roll(ph, -1, axis=1), zeros)
                taps_ref[pl.ds((3 * kh + 0) * cin, cin), col] = left
                taps_ref[pl.ds((3 * kh + 1) * cin, cin), col] = ph
                taps_ref[pl.ds((3 * kh + 2) * cin, cin), col] = right

        # --- one MXU dot per layer: (C, 9*cin) @ (9*cin, bp*HW) -> f32 ------
        a = taps_ref[pl.ds(0, 9 * cin), :]
        y = jnp.dot(w_refs[i][...], a, preferred_element_type=jnp.float32)
        # Conv bias omitted: a per-channel constant is exactly cancelled by
        # InstanceNorm's per-channel spatial-mean subtraction.

        gamma = prm_ref[:, 3 * i + 0:3 * i + 1]       # (C, 1) f32
        beta = prm_ref[:, 3 * i + 1:3 * i + 2]
        alpha = prm_ref[:, 3 * i + 2:3 * i + 3]

        inv_hw = 1.0 / HW
        for s in range(bp):
            ys = y[:, s * HW:(s + 1) * HW]
            # One-pass per-sample/per-channel spatial stats (biased variance).
            mean = jnp.sum(ys, axis=1, keepdims=True) * inv_hw
            ex2 = jnp.sum(ys * ys, axis=1, keepdims=True) * inv_hw
            var = jnp.maximum(ex2 - mean * mean, 0.0)
            # Folded InstanceNorm + affine: one scale/shift pass on (C, HW).
            scale = gamma * jax.lax.rsqrt(var + eps)
            shift = beta - mean * scale
            z = ys * scale + shift
            z = jnp.where(z >= 0.0, z, alpha * z)      # PReLU (per channel)

            if i < depth - 1:
                # Dense connectivity: prepend as the newest C-channel block.
                buf_ref[pl.ds(row_lo - C, C),
                        pl.ds(s * PWIN + base, HW)] = z.astype(buf_ref.dtype)
            else:
                o_ref[s] = z.astype(o_ref.dtype)


def dense_block_forward(x_nchw, params, *, depth=4, eps=1e-5,
                        samples_per_step=None):
    """DenseBlock.forward.  x_nchw: (B, C, H, W) f32; params[i] in torch layout."""
    B, C, H, W = x_nchw.shape
    HW = H * W
    PH = 2 ** (depth - 1)

    if samples_per_step is None:
        # Largest packing that still leaves >= 2 parallel grid steps (v7x has
        # two TensorCores); if B < 2, pack everything into one step.
        samples_per_step = max(
            (d for d in range(1, B + 1) if B % d == 0 and B // d >= 2),
            default=B)
    bp = samples_per_step
    assert B % bp == 0, (B, bp)

    # Weights: torch (Cout, Cin, KH, KW) -> (Cout, KH, KW, Cin) -> (C, 9*Cin),
    # matching the in-kernel tap-row order r = (3*kh + kw)*Cin + cin.
    w_list = []
    for i in range(depth):
        cin = C * (i + 1)
        wm = jnp.transpose(params[i]["w"], (0, 2, 3, 1)).reshape(C, 9 * cin)
        w_list.append(wm.astype(jnp.bfloat16))

    # Per-channel InstanceNorm affine + PReLU params packed as (C, 3*depth):
    # columns [gamma_i, beta_i, alpha_i] for each layer i.
    cols = []
    for i in range(depth):
        cols += [params[i]["gamma"], params[i]["beta"], params[i]["alpha"]]
    prm = jnp.stack(cols, axis=1).astype(jnp.float32)

    kernel = functools.partial(_dense_block_kernel, C=C, H=H, W=W,
                               depth=depth, eps=eps, bp=bp)

    in_specs = [pl.BlockSpec((bp, C, HW), lambda b: (b, 0, 0))]
    for i in range(depth):
        in_specs.append(pl.BlockSpec((C, 9 * C * (i + 1)), lambda b: (0, 0)))
    in_specs.append(pl.BlockSpec((C, 3 * depth), lambda b: (0, 0)))

    out_flat = pl.pallas_call(
        kernel,
        out_shape=jax.ShapeDtypeStruct((B, C, HW), x_nchw.dtype),
        grid=(B // bp,),
        in_specs=in_specs,
        out_specs=pl.BlockSpec((bp, C, HW), lambda b: (b, 0, 0)),
        scratch_shapes=[
            # TODO(synk): at production spectrogram sizes tile H (with
            # (kh-1)*dil halos) so this scratch fits v7x's 64 MiB VMEM.
            pltpu.VMEM((depth * C, bp * (H + 2 * PH) * W), jnp.bfloat16),
            pltpu.VMEM((9 * C * depth, bp * HW), jnp.bfloat16),
        ],
        compiler_params=pltpu.CompilerParams(
            dimension_semantics=("parallel",),
            vmem_limit_bytes=32 * 1024 * 1024),
    )(x_nchw.reshape(B, C, HW), *w_list, prm)

    return out_flat.reshape(B, C, H, W)


def _reference_forward(x, params, *, depth=4, eps=1e-5):
    """Pure-JAX replica of the torch DenseBlock forward (for a sanity check)."""
    skip = x
    out = x
    for i in range(depth):
        dil = 2 ** i
        y = jax.lax.conv_general_dilated(
            skip, params[i]["w"], window_strides=(1, 1),
            padding=((dil, dil), (1, 1)), rhs_dilation=(dil, 1),
            dimension_numbers=("NCHW", "OIHW", "NCHW"))
        y = y + params[i]["b"][None, :, None, None]
        mean = jnp.mean(y, axis=(2, 3), keepdims=True)
        var = jnp.mean(jnp.square(y - mean), axis=(2, 3), keepdims=True)
        z = (y - mean) * jax.lax.rsqrt(var + eps)
        z = (z * params[i]["gamma"][None, :, None, None]
             + params[i]["beta"][None, :, None, None])
        a = params[i]["alpha"][None, :, None, None]
        z = jnp.where(z >= 0.0, z, a * z)
        out = z
        skip = jnp.concatenate([z, skip], axis=1)
    return out


if __name__ == "__main__":
    B, C, H, W = 4, 8, 16, 16        # C == cfg['model_cfg']['hid_feature']
    depth = 4
    key = jax.random.PRNGKey(0)
    keys = jax.random.split(key, 1 + 4 * depth)

    # Input in PyTorch NCHW convention.
    x = jax.random.normal(keys[0], (B, C, H, W), dtype=jnp.float32)

    # Deterministic synthetic parameters (shapes per nn.Module __init__).
    params = []
    for i in range(depth):
        cin = C * (i + 1)
        k = keys[1 + 4 * i: 1 + 4 * (i + 1)]
        params.append(dict(
            w=jax.random.normal(k[0], (C, cin, 3, 3), jnp.float32) * 0.1,
            b=jax.random.normal(k[1], (C,), jnp.float32) * 0.1,   # cancelled by InstanceNorm
            gamma=1.0 + 0.1 * jax.random.normal(k[2], (C,), jnp.float32),
            beta=0.1 * jax.random.normal(k[3], (C,), jnp.float32),
            alpha=jnp.full((C,), 0.25, jnp.float32)))              # PReLU default init

    out = jax.block_until_ready(dense_block_forward(x, params, depth=depth))
    assert out.shape == (B, C, H, W), out.shape
    assert bool(jnp.all(jnp.isfinite(out)))

    # Loose-tolerance check vs a pure-JAX reference (bf16 MXU operands give
    # ~1e-2-level differences that compound over depth; this only catches
    # structural bugs, not rounding).
    ref = jax.block_until_ready(_reference_forward(x, params, depth=depth))
    max_err = float(jnp.max(jnp.abs(out - ref)))
    assert max_err < 0.2, f"max |kernel - reference| = {max_err}"

    print("KERNEL_OK")
</pallas_src>

<mosaic_0001>
module attributes {stable_mosaic.version = 11 : i64} {
  func.func @_dense_block_kernel(%arg0: i32, %arg1: memref<2x8x256xf32, #tpu.memory_space<vmem>>, %arg2: memref<8x72xbf16, #tpu.memory_space<vmem>>, %arg3: memref<8x144xbf16, #tpu.memory_space<vmem>>, %arg4: memref<8x216xbf16, #tpu.memory_space<vmem>>, %arg5: memref<8x288xbf16, #tpu.memory_space<vmem>>, %arg6: memref<8x12xf32, #tpu.memory_space<vmem>>, %arg7: memref<2x8x256xf32, #tpu.memory_space<vmem>>, %arg8: memref<32x1024xbf16, #tpu.memory_space<vmem>>, %arg9: memref<288x512xbf16, #tpu.memory_space<vmem>>) attributes {dimension_semantics = [#tpu.dimension_semantics<parallel>], iteration_bounds = array<i64: 2>, scalar_prefetch = 0 : i64, scratch_operands = 2 : i64, tpu.core_type = #tpu.core_type<tc>, window_params = [{transform_indices = @transform_0, window_bounds = array<i64: 2, 8, 256>}, {pipeline_mode = #tpu.pipeline_mode<synchronous>, transform_indices = @transform_1, window_bounds = array<i64: 8, 72>}, {pipeline_mode = #tpu.pipeline_mode<synchronous>, transform_indices = @transform_2, window_bounds = array<i64: 8, 144>}, {pipeline_mode = #tpu.pipeline_mode<synchronous>, transform_indices = @transform_3, window_bounds = array<i64: 8, 216>}, {pipeline_mode = #tpu.pipeline_mode<synchronous>, transform_indices = @transform_4, window_bounds = array<i64: 8, 288>}, {pipeline_mode = #tpu.pipeline_mode<synchronous>, transform_indices = @transform_5, window_bounds = array<i64: 8, 12>}, {transform_indices = @transform_6, window_bounds = array<i64: 2, 8, 256>}]} {
    %cst = arith.constant 0.000000e+00 : bf16
    %0 = vector.broadcast %cst : bf16 to vector<32x128xbf16>
    %c0 = arith.constant 0 : index
    %c0_0 = arith.constant 0 : index
    %1 = vector.load %arg8[%c0, %c0_0] : memref<32x1024xbf16, #tpu.memory_space<vmem>>, vector<32x128xbf16>
    tpu.vector_store %arg8[%c0, %c0_0], %0 {strides = array<i32>} : memref<32x1024xbf16, #tpu.memory_space<vmem>>, vector<32x128xbf16>,
    %c0_1 = arith.constant 0 : index
    %c384 = arith.constant 384 : index
    %2 = vector.load %arg8[%c0_1, %c384] : memref<32x1024xbf16, #tpu.memory_space<vmem>>, vector<32x128xbf16>
    tpu.vector_store %arg8[%c0_1, %c384], %0 {strides = array<i32>} : memref<32x1024xbf16, #tpu.memory_space<vmem>>, vector<32x128xbf16>,
    %c0_2 = arith.constant 0 : index
    %c512 = arith.constant 512 : index
    %3 = vector.load %arg8[%c0_2, %c512] : memref<32x1024xbf16, #tpu.memory_space<vmem>>, vector<32x128xbf16>
    tpu.vector_store %arg8[%c0_2, %c512], %0 {strides = array<i32>} : memref<32x1024xbf16, #tpu.memory_space<vmem>>, vector<32x128xbf16>,
    %c0_3 = arith.constant 0 : index
    %c896 = arith.constant 896 : index
    %4 = vector.load %arg8[%c0_3, %c896] : memref<32x1024xbf16, #tpu.memory_space<vmem>>, vector<32x128xbf16>
    tpu.vector_store %arg8[%c0_3, %c896], %0 {strides = array<i32>} : memref<32x1024xbf16, #tpu.memory_space<vmem>>, vector<32x128xbf16>,
    %c0_4 = arith.constant 0 : index
    %c0_5 = arith.constant 0 : index
    %c0_6 = arith.constant 0 : index
    %5 = vector.load %arg1[%c0_4, %c0_5, %c0_6] : memref<2x8x256xf32, #tpu.memory_space<vmem>>, vector<1x8x256xf32>
    %6 = vector.shape_cast %5 : vector<1x8x256xf32> to vector<8x256xf32>
    %7 = arith.truncf %6 : vector<8x256xf32> to vector<8x256xbf16>
    %c24 = arith.constant 24 : index
    %c128 = arith.constant 128 : index
    %8 = vector.load %arg8[%c24, %c128] : memref<32x1024xbf16, #tpu.memory_space<vmem>>, vector<8x256xbf16>
    tpu.vector_store %arg8[%c24, %c128], %7 {strides = array<i32>} : memref<32x1024xbf16, #tpu.memory_space<vmem>>, vector<8x256xbf16>,
    %c1 = arith.constant 1 : index
    %c0_7 = arith.constant 0 : index
    %c0_8 = arith.constant 0 : index
    %9 = vector.load %arg1[%c1, %c0_7, %c0_8] : memref<2x8x256xf32, #tpu.memory_space<vmem>>, vector<1x8x256xf32>
    %10 = vector.shape_cast %9 : vector<1x8x256xf32> to vector<8x256xf32>
    %11 = arith.truncf %10 : vector<8x256xf32> to vector<8x256xbf16>
    %c24_9 = arith.constant 24 : index
    %c640 = arith.constant 640 : index
    %12 = vector.load %arg8[%c24_9, %c640] : memref<32x1024xbf16, #tpu.memory_space<vmem>>, vector<8x256xbf16>
    tpu.vector_store %arg8[%c24_9, %c640], %11 {strides = array<i32>} : memref<32x1024xbf16, #tpu.memory_space<vmem>>, vector<8x256xbf16>,
    %13 = tpu.iota {dimensions = array<i32: 1>} : vector<1x256xi32>
    %c16_i32 = arith.constant 16 : i32
    %c0_i32 = arith.constant 0 : i32
    %14 = arith.cmpi eq, %c16_i32, %c0_i32 : i32
    %c1_i32 = arith.constant 1 : i32
    %15 = arith.select %14, %c1_i32, %c16_i32 : i32
    %16 = vector.broadcast %15 : i32 to vector<1x256xi32>
    %17 = arith.remsi %13, %16 : vector<1x256xi32>
    %c0_i32_10 = arith.constant 0 : i32
    %18 = vector.broadcast %c0_i32_10 : i32 to vector<1x256xi32>
    %19 = arith.cmpi ne, %17, %18 : vector<1x256xi32>
    %c0_i32_11 = arith.constant 0 : i32
    %20 = vector.broadcast %c0_i32_11 : i32 to vector<1x256xi32>
    %21 = arith.cmpi slt, %17, %20 : vector<1x256xi32>
    %c0_i32_12 = arith.constant 0 : i32
    %22 = arith.cmpi slt, %15, %c0_i32_12 : i32
    %23 = vector.broadcast %22 : i1 to vector<1x256xi1>
    %24 = vector.broadcast %23 : vector<1x256xi1> to vector<1x256xi1>
    %25 = arith.xori %21, %24 : vector<1x256xi1>
    %26 = arith.andi %25, %19 : vector<1x256xi1>
    %27 = vector.broadcast %15 : i32 to vector<1x256xi32>
    %28 = arith.addi %17, %27 : vector<1x256xi32>
    %29 = arith.select %26, %28, %17 : vector<1x256xi1>, vector<1x256xi32>
    %c0_i32_13 = arith.constant 0 : i32
    %30 = vector.broadcast %c0_i32_13 : i32 to vector<1x256xi32>
    %31 = arith.cmpi ne, %29, %30 : vector<1x256xi32>
    %c15_i32 = arith.constant 15 : i32
    %32 = vector.broadcast %c15_i32 : i32 to vector<1x256xi32>
    %33 = arith.cmpi ne, %29, %32 : vector<1x256xi32>
    %c24_14 = arith.constant 24 : index
    %c112 = arith.constant 112 : index
    %34 = vector.load %arg8[%c24_14, %c112] : memref<32x1024xbf16, #tpu.memory_space<vmem>>, vector<8x256xbf16>
    %cst_15 = arith.constant 0.000000e+00 : bf16
    %35 = vector.broadcast %cst_15 : bf16 to vector<8x256xbf16>
    %36 = vector.extract_strided_slice %34 {offsets = [0, 255], sizes = [8, 1], strides = [1, 1]} : vector<8x256xbf16> to vector<8x1xbf16>
    %37 = vector.extract_strided_slice %34 {offsets = [0, 0], sizes = [8, 255], strides = [1, 1]} : vector<8x256xbf16> to vector<8x255xbf16>
    %38 = tpu.concatenate %36, %37 in 1 : vector<8x1xbf16>, vector<8x255xbf16> -> vector<8x256xbf16>
    %39 = vector.shape_cast %31 : vector<1x256xi1> to vector<1x256xi1>
    %40 = vector.broadcast %39 : vector<1x256xi1> to vector<8x256xi1>
    %41 = arith.select %40, %38, %35 : vector<8x256xi1>, vector<8x256xbf16>
    %42 = vector.extract_strided_slice %34 {offsets = [0, 1], sizes = [8, 255], strides = [1, 1]} : vector<8x256xbf16> to vector<8x255xbf16>
    %43 = vector.extract_strided_slice %34 {offsets = [0, 0], sizes = [8, 1], strides = [1, 1]} : vector<8x256xbf16> to vector<8x1xbf16>
    %44 = tpu.concatenate %42, %43 in 1 : vector<8x255xbf16>, vector<8x1xbf16> -> vector<8x256xbf16>
    %45 = vector.shape_cast %33 : vector<1x256xi1> to vector<1x256xi1>
    %46 = vector.broadcast %45 : vector<1x256xi1> to vector<8x256xi1>
    %47 = arith.select %46, %44, %35 : vector<8x256xi1>, vector<8x256xbf16>
    %c0_16 = arith.constant 0 : index
    %c0_17 = arith.constant 0 : index
    %48 = vector.load %arg9[%c0_16, %c0_17] : memref<288x512xbf16, #tpu.memory_space<vmem>>, vector<8x256xbf16>
    tpu.vector_store %arg9[%c0_16, %c0_17], %41 {strides = array<i32>} : memref<288x512xbf16, #tpu.memory_space<vmem>>, vector<8x256xbf16>,
    %c8 = arith.constant 8 : index
    %c0_18 = arith.constant 0 : index
    %49 = vector.load %arg9[%c8, %c0_18] : memref<288x512xbf16, #tpu.memory_space<vmem>>, vector<8x256xbf16>
    tpu.vector_store %arg9[%c8, %c0_18], %34 {strides = array<i32>} : memref<288x512xbf16, #tpu.memory_space<vmem>>, vector<8x256xbf16>,
    %c16 = arith.constant 16 : index
    %c0_19 = arith.constant 0 : index
    %50 = vector.load %arg9[%c16, %c0_19] : memref<288x512xbf16, #tpu.memory_space<vmem>>, vector<8x256xbf16>
    tpu.vector_store %arg9[%c16, %c0_19], %47 {strides = array<i32>} : memref<288x512xbf16, #tpu.memory_space<vmem>>, vector<8x256xbf16>,
    %c24_20 = arith.constant 24 : index
    %c128_21 = arith.constant 128 : index
    %51 = vector.load %arg8[%c24_20, %c128_21] : memref<32x1024xbf16, #tpu.memory_space<vmem>>, vector<8x256xbf16>
    %cst_22 = arith.constant 0.000000e+00 : bf16
    %52 = vector.broadcast %cst_22 : bf16 to vector<8x256xbf16>
    %53 = vector.extract_strided_slice %51 {offsets = [0, 255], sizes = [8, 1], strides = [1, 1]} : vector<8x256xbf16> to vector<8x1xbf16>
    %54 = vector.extract_strided_slice %51 {offsets = [0, 0], sizes = [8, 255], strides = [1, 1]} : vector<8x256xbf16> to vector<8x255xbf16>
    %55 = tpu.concatenate %53, %54 in 1 : vector<8x1xbf16>, vector<8x255xbf16> -> vector<8x256xbf16>
    %56 = vector.shape_cast %31 : vector<1x256xi1> to vector<1x256xi1>
    %57 = vector.broadcast %56 : vector<1x256xi1> to vector<8x256xi1>
    %58 = arith.select %57, %55, %52 : vector<8x256xi1>, vector<8x256xbf16>
    %59 = vector.extract_strided_slice %51 {offsets = [0, 1], sizes = [8, 255], strides = [1, 1]} : vector<8x256xbf16> to vector<8x255xbf16>
    %60 = vector.extract_strided_slice %51 {offsets = [0, 0], sizes = [8, 1], strides = [1, 1]} : vector<8x256xbf16> to vector<8x1xbf16>
    %61 = tpu.concatenate %59, %60 in 1 : vector<8x255xbf16>, vector<8x1xbf16> -> vector<8x256xbf16>
    %62 = vector.shape_cast %33 : vector<1x256xi1> to vector<1x256xi1>
    %63 = vector.broadcast %62 : vector<1x256xi1> to vector<8x256xi1>
    %64 = arith.select %63, %61, %52 : vector<8x256xi1>, vector<8x256xbf16>
    %c24_23 = arith.constant 24 : index
    %c0_24 = arith.constant 0 : index
    %65 = vector.load %arg9[%c24_23, %c0_24] : memref<288x512xbf16, #tpu.memory_space<vmem>>, vector<8x256xbf16>
    tpu.vector_store %arg9[%c24_23, %c0_24], %58 {strides = array<i32>} : memref<288x512xbf16, #tpu.memory_space<vmem>>, vector<8x256xbf16>,
    %c32 = arith.constant 32 : index
    %c0_25 = arith.constant 0 : index
    %66 = vector.load %arg9[%c32, %c0_25] : memref<288x512xbf16, #tpu.memory_space<vmem>>, vector<8x256xbf16>
    tpu.vector_store %arg9[%c32, %c0_25], %51 {strides = array<i32>} : memref<288x512xbf16, #tpu.memory_space<vmem>>, vector<8x256xbf16>,
    %c40 = arith.constant 40 : index
    %c0_26 = arith.constant 0 : index
    %67 = vector.load %arg9[%c40, %c0_26] : memref<288x512xbf16, #tpu.memory_space<vmem>>, vector<8x256xbf16>
    tpu.vector_store %arg9[%c40, %c0_26], %64 {strides = array<i32>} : memref<288x512xbf16, #tpu.memory_space<vmem>>, vector<8x256xbf16>,
    %c24_27 = arith.constant 24 : index
    %c144 = arith.constant 144 : index
    %68 = vector.load %arg8[%c24_27, %c144] : memref<32x1024xbf16, #tpu.memory_space<vmem>>, vector<8x256xbf16>
    %cst_28 = arith.constant 0.000000e+00 : bf16
    %69 = vector.broadcast %cst_28 : bf16 to vector<8x256xbf16>
    %70 = vector.extract_strided_slice %68 {offsets = [0, 255], sizes = [8, 1], strides = [1, 1]} : vector<8x256xbf16> to vector<8x1xbf16>
    %71 = vector.extract_strided_slice %68 {offsets = [0, 0], sizes = [8, 255], strides = [1, 1]} : vector<8x256xbf16> to vector<8x255xbf16>
    %72 = tpu.concatenate %70, %71 in 1 : vector<8x1xbf16>, vector<8x255xbf16> -> vector<8x256xbf16>
    %73 = vector.shape_cast %31 : vector<1x256xi1> to vector<1x256xi1>
    %74 = vector.broadcast %73 : vector<1x256xi1> to vector<8x256xi1>
    %75 = arith.select %74, %72, %69 : vector<8x256xi1>, vector<8x256xbf16>
    %76 = vector.extract_strided_slice %68 {offsets = [0, 1], sizes = [8, 255], strides = [1, 1]} : vector<8x256xbf16> to vector<8x255xbf16>
    %77 = vector.extract_strided_slice %68 {offsets = [0, 0], sizes = [8, 1], strides = [1, 1]} : vector<8x256xbf16> to vector<8x1xbf16>
    %78 = tpu.concatenate %76, %77 in 1 : vector<8x255xbf16>, vector<8x1xbf16> -> vector<8x256xbf16>
    %79 = vector.shape_cast %33 : vector<1x256xi1> to vector<1x256xi1>
    %80 = vector.broadcast %79 : vector<1x256xi1> to vector<8x256xi1>
    %81 = arith.select %80, %78, %69 : vector<8x256xi1>, vector<8x256xbf16>
    %c48 = arith.constant 48 : index
    %c0_29 = arith.constant 0 : index
    %82 = vector.load %arg9[%c48, %c0_29] : memref<288x512xbf16, #tpu.memory_space<vmem>>, vector<8x256xbf16>
    tpu.vector_store %arg9[%c48, %c0_29], %75 {strides = array<i32>} : memref<288x512xbf16, #tpu.memory_space<vmem>>, vector<8x256xbf16>,
    %c56 = arith.constant 56 : index
    %c0_30 = arith.constant 0 : index
    %83 = vector.load %arg9[%c56, %c0_30] : memref<288x512xbf16, #tpu.memory_space<vmem>>, vector<8x256xbf16>
    tpu.vector_store %arg9[%c56, %c0_30], %68 {strides = array<i32>} : memref<288x512xbf16, #tpu.memory_space<vmem>>, vector<8x256xbf16>,
    %c64 = arith.constant 64 : index
    %c0_31 = arith.constant 0 : index
    %84 = vector.load %arg9[%c64, %c0_31] : memref<288x512xbf16, #tpu.memory_space<vmem>>, vector<8x256xbf16>
    tpu.vector_store %arg9[%c64, %c0_31], %81 {strides = array<i32>} : memref<288x512xbf16, #tpu.memory_space<vmem>>, vector<8x256xbf16>,
    %c24_32 = arith.constant 24 : index
    %c624 = arith.constant 624 : index
    %85 = vector.load %arg8[%c24_32, %c624] : memref<32x1024xbf16, #tpu.memory_space<vmem>>, vector<8x256xbf16>
    %cst_33 = arith.constant 0.000000e+00 : bf16
    %86 = vector.broadcast %cst_33 : bf16 to vector<8x256xbf16>
    %87 = vector.extract_strided_slice %85 {offsets = [0, 255], sizes = [8, 1], strides = [1, 1]} : vector<8x256xbf16> to vector<8x1xbf16>
    %88 = vector.extract_strided_slice %85 {offsets = [0, 0], sizes = [8, 255], strides = [1, 1]} : vector<8x256xbf16> to vector<8x255xbf16>
    %89 = tpu.concatenate %87, %88 in 1 : vector<8x1xbf16>, vector<8x255xbf16> -> vector<8x256xbf16>
    %90 = vector.shape_cast %31 : vector<1x256xi1> to vector<1x256xi1>
    %91 = vector.broadcast %90 : vector<1x256xi1> to vector<8x256xi1>
    %92 = arith.select %91, %89, %86 : vector<8x256xi1>, vector<8x256xbf16>
    %93 = vector.extract_strided_slice %85 {offsets = [0, 1], sizes = [8, 255], strides = [1, 1]} : vector<8x256xbf16> to vector<8x255xbf16>
    %94 = vector.extract_strided_slice %85 {offsets = [0, 0], sizes = [8, 1], strides = [1, 1]} : vector<8x256xbf16> to vector<8x1xbf16>
    %95 = tpu.concatenate %93, %94 in 1 : vector<8x255xbf16>, vector<8x1xbf16> -> vector<8x256xbf16>
    %96 = vector.shape_cast %33 : vector<1x256xi1> to vector<1x256xi1>
    %97 = vector.broadcast %96 : vector<1x256xi1> to vector<8x256xi1>
    %98 = arith.select %97, %95, %86 : vector<8x256xi1>, vector<8x256xbf16>
    %c0_34 = arith.constant 0 : index
    %c256 = arith.constant 256 : index
    %99 = vector.load %arg9[%c0_34, %c256] : memref<288x512xbf16, #tpu.memory_space<vmem>>, vector<8x256xbf16>
    tpu.vector_store %arg9[%c0_34, %c256], %92 {strides = array<i32>} : memref<288x512xbf16, #tpu.memory_space<vmem>>, vector<8x256xbf16>,
    %c8_35 = arith.constant 8 : index
    %c256_36 = arith.constant 256 : index
    %100 = vector.load %arg9[%c8_35, %c256_36] : memref<288x512xbf16, #tpu.memory_space<vmem>>, vector<8x256xbf16>
    tpu.vector_store %arg9[%c8_35, %c256_36], %85 {strides = array<i32>} : memref<288x512xbf16, #tpu.memory_space<vmem>>, vector<8x256xbf16>,
    %c16_37 = arith.constant 16 : index
    %c256_38 = arith.constant 256 : index
    %101 = vector.load %arg9[%c16_37, %c256_38] : memref<288x512xbf16, #tpu.memory_space<vmem>>, vector<8x256xbf16>
    tpu.vector_store %arg9[%c16_37, %c256_38], %98 {strides = array<i32>} : memref<288x512xbf16, #tpu.memory_space<vmem>>, vector<8x256xbf16>,
    %c24_39 = arith.constant 24 : index
    %c640_40 = arith.constant 640 : index
    %102 = vector.load %arg8[%c24_39, %c640_40] : memref<32x1024xbf16, #tpu.memory_space<vmem>>, vector<8x256xbf16>
    %cst_41 = arith.constant 0.000000e+00 : bf16
    %103 = vector.broadcast %cst_41 : bf16 to vector<8x256xbf16>
    %104 = vector.extract_strided_slice %102 {offsets = [0, 255], sizes = [8, 1], strides = [1, 1]} : vector<8x256xbf16> to vector<8x1xbf16>
    %105 = vector.extract_strided_slice %102 {offsets = [0, 0], sizes = [8, 255], strides = [1, 1]} : vector<8x256xbf16> to vector<8x255xbf16>
    %106 = tpu.concatenate %104, %105 in 1 : vector<8x1xbf16>, vector<8x255xbf16> -> vector<8x256xbf16>
    %107 = vector.shape_cast %31 : vector<1x256xi1> to vector<1x256xi1>
    %108 = vector.broadcast %107 : vector<1x256xi1> to vector<8x256xi1>
    %109 = arith.select %108, %106, %103 : vector<8x256xi1>, vector<8x256xbf16>
    %110 = vector.extract_strided_slice %102 {offsets = [0, 1], sizes = [8, 255], strides = [1, 1]} : vector<8x256xbf16> to vector<8x255xbf16>
    %111 = vector.extract_strided_slice %102 {offsets = [0, 0], sizes = [8, 1], strides = [1, 1]} : vector<8x256xbf16> to vector<8x1xbf16>
    %112 = tpu.concatenate %110, %111 in 1 : vector<8x255xbf16>, vector<8x1xbf16> -> vector<8x256xbf16>
    %113 = vector.shape_cast %33 : vector<1x256xi1> to vector<1x256xi1>
    %114 = vector.broadcast %113 : vector<1x256xi1> to vector<8x256xi1>
    %115 = arith.select %114, %112, %103 : vector<8x256xi1>, vector<8x256xbf16>
    %c24_42 = arith.constant 24 : index
    %c256_43 = arith.constant 256 : index
    %116 = vector.load %arg9[%c24_42, %c256_43] : memref<288x512xbf16, #tpu.memory_space<vmem>>, vector<8x256xbf16>
    tpu.vector_store %arg9[%c24_42, %c256_43], %109 {strides = array<i32>} : memref<288x512xbf16, #tpu.memory_space<vmem>>, vector<8x256xbf16>,
    %c32_44 = arith.constant 32 : index
    %c256_45 = arith.constant 256 : index
    %117 = vector.load %arg9[%c32_44, %c256_45] : memref<288x512xbf16, #tpu.memory_space<vmem>>, vector<8x256xbf16>
    tpu.vector_store %arg9[%c32_44, %c256_45], %102 {strides = array<i32>} : memref<288x512xbf16, #tpu.memory_space<vmem>>, vector<8x256xbf16>,
    %c40_46 = arith.constant 40 : index
    %c256_47 = arith.constant 256 : index
    %118 = vector.load %arg9[%c40_46, %c256_47] : memref<288x512xbf16, #tpu.memory_space<vmem>>, vector<8x256xbf16>
    tpu.vector_store %arg9[%c40_46, %c256_47], %115 {strides = array<i32>} : memref<288x512xbf16, #tpu.memory_space<vmem>>, vector<8x256xbf16>,
    %c24_48 = arith.constant 24 : index
    %c656 = arith.constant 656 : index
    %119 = vector.load %arg8[%c24_48, %c656] : memref<32x1024xbf16, #tpu.memory_space<vmem>>, vector<8x256xbf16>
    %cst_49 = arith.constant 0.000000e+00 : bf16
    %120 = vector.broadcast %cst_49 : bf16 to vector<8x256xbf16>
    %121 = vector.extract_strided_slice %119 {offsets = [0, 255], sizes = [8, 1], strides = [1, 1]} : vector<8x256xbf16> to vector<8x1xbf16>
    %122 = vector.extract_strided_slice %119 {offsets = [0, 0], sizes = [8, 255], strides = [1, 1]} : vector<8x256xbf16> to vector<8x255xbf16>
    %123 = tpu.concatenate %121, %122 in 1 : vector<8x1xbf16>, vector<8x255xbf16> -> vector<8x256xbf16>
    %124 = vector.shape_cast %31 : vector<1x256xi1> to vector<1x256xi1>
    %125 = vector.broadcast %124 : vector<1x256xi1> to vector<8x256xi1>
    %126 = arith.select %125, %123, %120 : vector<8x256xi1>, vector<8x256xbf16>
    %127 = vector.extract_strided_slice %119 {offsets = [0, 1], sizes = [8, 255], strides = [1, 1]} : vector<8x256xbf16> to vector<8x255xbf16>
    %128 = vector.extract_strided_slice %119 {offsets = [0, 0], sizes = [8, 1], strides = [1, 1]} : vector<8x256xbf16> to vector<8x1xbf16>
    %129 = tpu.concatenate %127, %128 in 1 : vector<8x255xbf16>, vector<8x1xbf16> -> vector<8x256xbf16>
    %130 = vector.shape_cast %33 : vector<1x256xi1> to vector<1x256xi1>
    %131 = vector.broadcast %130 : vector<1x256xi1> to vector<8x256xi1>
    %132 = arith.select %131, %129, %120 : vector<8x256xi1>, vector<8x256xbf16>
    %c48_50 = arith.constant 48 : index
    %c256_51 = arith.constant 256 : index
    %133 = vector.load %arg9[%c48_50, %c256_51] : memref<288x512xbf16, #tpu.memory_space<vmem>>, vector<8x256xbf16>
    tpu.vector_store %arg9[%c48_50, %c256_51], %126 {strides = array<i32>} : memref<288x512xbf16, #tpu.memory_space<vmem>>, vector<8x256xbf16>,
    %c56_52 = arith.constant 56 : index
    %c256_53 = arith.constant 256 : index
    %134 = vector.load %arg9[%c56_52, %c256_53] : memref<288x512xbf16, #tpu.memory_space<vmem>>, vector<8x256xbf16>
    tpu.vector_store %arg9[%c56_52, %c256_53], %119 {strides = array<i32>} : memref<288x512xbf16, #tpu.memory_space<vmem>>, vector<8x256xbf16>,
    %c64_54 = arith.constant 64 : index
    %c256_55 = arith.constant 256 : index
    %135 = vector.load %arg9[%c64_54, %c256_55] : memref<288x512xbf16, #tpu.memory_space<vmem>>, vector<8x256xbf16>
    tpu.vector_store %arg9[%c64_54, %c256_55], %132 {strides = array<i32>} : memref<288x512xbf16, #tpu.memory_space<vmem>>, vector<8x256xbf16>,
    %c0_56 = arith.constant 0 : index
    %c0_57 = arith.constant 0 : index
    %136 = vector.load %arg9[%c0_56, %c0_57] : memref<288x512xbf16, #tpu.memory_space<vmem>>, vector<72x512xbf16>
    %c0_58 = arith.constant 0 : index
    %c0_59 = arith.constant 0 : index
    %137 = vector.load %arg2[%c0_58, %c0_59] : memref<8x72xbf16, #tpu.memory_space<vmem>>, vector<8x72xbf16>
    %cst_60 = arith.constant dense<0.000000e+00> : vector<8x512xf32>
    %138 = tpu.matmul %137, %136, %cst_60 {dimension_numbers = #tpu.dot_dimension_numbers<[1], [0], [0], [1], [0, 0, 1, 1], [], []>} : vector<8x72xbf16>, vector<72x512xbf16>, vector<8x512xf32> -> vector<8x512xf32>
    %c0_61 = arith.constant 0 : index
    %c0_62 = arith.constant 0 : index
    %139 = vector.load %arg6[%c0_61, %c0_62] : memref<8x12xf32, #tpu.memory_space<vmem>>, vector<8x1xf32>
    %c0_63 = arith.constant 0 : index
    %c1_64 = arith.constant 1 : index
    %140 = vector.load %arg6[%c0_63, %c1_64] : memref<8x12xf32, #tpu.memory_space<vmem>>, vector<8x1xf32>
    %c0_65 = arith.constant 0 : index
    %c2 = arith.constant 2 : index
    %141 = vector.load %arg6[%c0_65, %c2] : memref<8x12xf32, #tpu.memory_space<vmem>>, vector<8x1xf32>
    %142 = vector.extract_strided_slice %138 {offsets = [0, 0], sizes = [8, 256], strides = [1, 1]} : vector<8x512xf32> to vector<8x256xf32>
    %cst_66 = arith.constant dense<0.000000e+00> : vector<8xf32>
    %143 = vector.multi_reduction <add>, %142, %cst_66 [1] : vector<8x256xf32> to vector<8xf32>
    %144 = vector.shape_cast %143 : vector<8xf32> to vector<8x1xf32>
    %cst_67 = arith.constant 3.906250e-03 : f32
    %145 = vector.broadcast %cst_67 : f32 to vector<8x1xf32>
    %146 = arith.mulf %144, %145 : vector<8x1xf32>
    %147 = arith.mulf %142, %142 : vector<8x256xf32>
    %cst_68 = arith.constant dense<0.000000e+00> : vector<8xf32>
    %148 = vector.multi_reduction <add>, %147, %cst_68 [1] : vector<8x256xf32> to vector<8xf32>
    %149 = vector.shape_cast %148 : vector<8xf32> to vector<8x1xf32>
    %cst_69 = arith.constant 3.906250e-03 : f32
    %150 = vector.broadcast %cst_69 : f32 to vector<8x1xf32>
    %151 = arith.mulf %149, %150 : vector<8x1xf32>
    %152 = arith.mulf %146, %146 : vector<8x1xf32>
    %153 = arith.subf %151, %152 : vector<8x1xf32>
    %cst_70 = arith.constant 0.000000e+00 : f32
    %154 = vector.broadcast %cst_70 : f32 to vector<8x1xf32>
    %155 = arith.maximumf %153, %154 : vector<8x1xf32>
    %cst_71 = arith.constant 9.99999974E-6 : f32
    %156 = vector.broadcast %cst_71 : f32 to vector<8x1xf32>
    %157 = arith.addf %155, %156 : vector<8x1xf32>
    %158 = math.rsqrt %157 : vector<8x1xf32>
    %159 = arith.mulf %139, %158 : vector<8x1xf32>
    %160 = arith.mulf %146, %159 : vector<8x1xf32>
    %161 = arith.subf %140, %160 : vector<8x1xf32>
    %162 = vector.broadcast %159 : vector<8x1xf32> to vector<8x256xf32>
    %163 = arith.mulf %142, %162 : vector<8x256xf32>
    %164 = vector.broadcast %161 : vector<8x1xf32> to vector<8x256xf32>
    %165 = arith.addf %163, %164 : vector<8x256xf32>
    %cst_72 = arith.constant 0.000000e+00 : f32
    %166 = vector.broadcast %cst_72 : f32 to vector<8x256xf32>
    %167 = arith.cmpf oge, %165, %166 : vector<8x256xf32>
    %168 = vector.broadcast %141 : vector<8x1xf32> to vector<8x256xf32>
    %169 = arith.mulf %168, %165 : vector<8x256xf32>
    %170 = arith.select %167, %165, %169 : vector<8x256xi1>, vector<8x256xf32>
    %171 = arith.truncf %170 : vector<8x256xf32> to vector<8x256xbf16>
    %c16_73 = arith.constant 16 : index
    %c128_74 = arith.constant 128 : index
    %172 = vector.load %arg8[%c16_73, %c128_74] : memref<32x1024xbf16, #tpu.memory_space<vmem>>, vector<8x256xbf16>
    tpu.vector_store %arg8[%c16_73, %c128_74], %171 {strides = array<i32>} : memref<32x1024xbf16, #tpu.memory_space<vmem>>, vector<8x256xbf16>,
    %173 = vector.extract_strided_slice %138 {offsets = [0, 256], sizes = [8, 256], strides = [1, 1]} : vector<8x512xf32> to vector<8x256xf32>
    %cst_75 = arith.constant dense<0.000000e+00> : vector<8xf32>
    %174 = vector.multi_reduction <add>, %173, %cst_75 [1] : vector<8x256xf32> to vector<8xf32>
    %175 = vector.shape_cast %174 : vector<8xf32> to vector<8x1xf32>
    %cst_76 = arith.constant 3.906250e-03 : f32
    %176 = vector.broadcast %cst_76 : f32 to vector<8x1xf32>
    %177 = arith.mulf %175, %176 : vector<8x1xf32>
    %178 = arith.mulf %173, %173 : vector<8x256xf32>
    %cst_77 = arith.constant dense<0.000000e+00> : vector<8xf32>
    %179 = vector.multi_reduction <add>, %178, %cst_77 [1] : vector<8x256xf32> to vector<8xf32>
    %180 = vector.shape_cast %179 : vector<8xf32> to vector<8x1xf32>
    %cst_78 = arith.constant 3.906250e-03 : f32
    %181 = vector.broadcast %cst_78 : f32 to vector<8x1xf32>
    %182 = arith.mulf %180, %181 : vector<8x1xf32>
    %183 = arith.mulf %177, %177 : vector<8x1xf32>
    %184 = arith.subf %182, %183 : vector<8x1xf32>
    %cst_79 = arith.constant 0.000000e+00 : f32
    %185 = vector.broadcast %cst_79 : f32 to vector<8x1xf32>
    %186 = arith.maximumf %184, %185 : vector<8x1xf32>
    %cst_80 = arith.constant 9.99999974E-6 : f32
    %187 = vector.broadcast %cst_80 : f32 to vector<8x1xf32>
    %188 = arith.addf %186, %187 : vector<8x1xf32>
    %189 = math.rsqrt %188 : vector<8x1xf32>
    %190 = arith.mulf %139, %189 : vector<8x1xf32>
    %191 = arith.mulf %177, %190 : vector<8x1xf32>
    %192 = arith.subf %140, %191 : vector<8x1xf32>
    %193 = vector.broadcast %190 : vector<8x1xf32> to vector<8x256xf32>
    %194 = arith.mulf %173, %193 : vector<8x256xf32>
    %195 = vector.broadcast %192 : vector<8x1xf32> to vector<8x256xf32>
    %196 = arith.addf %194, %195 : vector<8x256xf32>
    %cst_81 = arith.constant 0.000000e+00 : f32
    %197 = vector.broadcast %cst_81 : f32 to vector<8x256xf32>
    %198 = arith.cmpf oge, %196, %197 : vector<8x256xf32>
    %199 = vector.broadcast %141 : vector<8x1xf32> to vector<8x256xf32>
    %200 = arith.mulf %199, %196 : vector<8x256xf32>
    %201 = arith.select %198, %196, %200 : vector<8x256xi1>, vector<8x256xf32>
    %202 = arith.truncf %201 : vector<8x256xf32> to vector<8x256xbf16>
    %c16_82 = arith.constant 16 : index
    %c640_83 = arith.constant 640 : index
    %203 = vector.load %arg8[%c16_82, %c640_83] : memref<32x1024xbf16, #tpu.memory_space<vmem>>, vector<8x256xbf16>
    tpu.vector_store %arg8[%c16_82, %c640_83], %202 {strides = array<i32>} : memref<32x1024xbf16, #tpu.memory_space<vmem>>, vector<8x256xbf16>,
    %c16_84 = arith.constant 16 : index
    %c96 = arith.constant 96 : index
    %204 = vector.load %arg8[%c16_84, %c96] : memref<32x1024xbf16, #tpu.memory_space<vmem>>, vector<16x256xbf16>
    %cst_85 = arith.constant 0.000000e+00 : bf16
    %205 = vector.broadcast %cst_85 : bf16 to vector<16x256xbf16>
    %206 = vector.extract_strided_slice %204 {offsets = [0, 255], sizes = [16, 1], strides = [1, 1]} : vector<16x256xbf16> to vector<16x1xbf16>
    %207 = vector.extract_strided_slice %204 {offsets = [0, 0], sizes = [16, 255], strides = [1, 1]} : vector<16x256xbf16> to vector<16x255xbf16>
    %208 = tpu.concatenate %206, %207 in 1 : vector<16x1xbf16>, vector<16x255xbf16> -> vector<16x256xbf16>
    %209 = vector.shape_cast %31 : vector<1x256xi1> to vector<1x256xi1>
    %210 = vector.broadcast %209 : vector<1x256xi1> to vector<16x256xi1>
    %211 = arith.select %210, %208, %205 : vector<16x256xi1>, vector<16x256xbf16>
    %212 = vector.extract_strided_slice %204 {offsets = [0, 1], sizes = [16, 255], strides = [1, 1]} : vector<16x256xbf16> to vector<16x255xbf16>
    %213 = vector.extract_strided_slice %204 {offsets = [0, 0], sizes = [16, 1], strides = [1, 1]} : vector<16x256xbf16> to vector<16x1xbf16>
    %214 = tpu.concatenate %212, %213 in 1 : vector<16x255xbf16>, vector<16x1xbf16> -> vector<16x256xbf16>
    %215 = vector.shape_cast %33 : vector<1x256xi1> to vector<1x256xi1>
    %216 = vector.broadcast %215 : vector<1x256xi1> to vector<16x256xi1>
    %217 = arith.select %216, %214, %205 : vector<16x256xi1>, vector<16x256xbf16>
    %c0_86 = arith.constant 0 : index
    %c0_87 = arith.constant 0 : index
    %218 = vector.load %arg9[%c0_86, %c0_87] : memref<288x512xbf16, #tpu.memory_space<vmem>>, vector<16x256xbf16>
    tpu.vector_store %arg9[%c0_86, %c0_87], %211 {strides = array<i32>} : memref<288x512xbf16, #tpu.memory_space<vmem>>, vector<16x256xbf16>,
    %c16_88 = arith.constant 16 : index
    %c0_89 = arith.constant 0 : index
    %219 = vector.load %arg9[%c16_88, %c0_89] : memref<288x512xbf16, #tpu.memory_space<vmem>>, vector<16x256xbf16>
    tpu.vector_store %arg9[%c16_88, %c0_89], %204 {strides = array<i32>} : memref<288x512xbf16, #tpu.memory_space<vmem>>, vector<16x256xbf16>,
    %c32_90 = arith.constant 32 : index
    %c0_91 = arith.constant 0 : index
    %220 = vector.load %arg9[%c32_90, %c0_91] : memref<288x512xbf16, #tpu.memory_space<vmem>>, vector<16x256xbf16>
    tpu.vector_store %arg9[%c32_90, %c0_91], %217 {strides = array<i32>} : memref<288x512xbf16, #tpu.memory_space<vmem>>, vector<16x256xbf16>,
    %c16_92 = arith.constant 16 : index
    %c128_93 = arith.constant 128 : index
    %221 = vector.load %arg8[%c16_92, %c128_93] : memref<32x1024xbf16, #tpu.memory_space<vmem>>, vector<16x256xbf16>
    %cst_94 = arith.constant 0.000000e+00 : bf16
    %222 = vector.broadcast %cst_94 : bf16 to vector<16x256xbf16>
    %223 = vector.extract_strided_slice %221 {offsets = [0, 255], sizes = [16, 1], strides = [1, 1]} : vector<16x256xbf16> to vector<16x1xbf16>
    %224 = vector.extract_strided_slice %221 {offsets = [0, 0], sizes = [16, 255], strides = [1, 1]} : vector<16x256xbf16> to vector<16x255xbf16>
    %225 = tpu.concatenate %223, %224 in 1 : vector<16x1xbf16>, vector<16x255xbf16> -> vector<16x256xbf16>
    %226 = vector.shape_cast %31 : vector<1x256xi1> to vector<1x256xi1>
    %227 = vector.broadcast %226 : vector<1x256xi1> to vector<16x256xi1>
    %228 = arith.select %227, %225, %222 : vector<16x256xi1>, vector<16x256xbf16>
    %229 = vector.extract_strided_slice %221 {offsets = [0, 1], sizes = [16, 255], strides = [1, 1]} : vector<16x256xbf16> to vector<16x255xbf16>
    %230 = vector.extract_strided_slice %221 {offsets = [0, 0], sizes = [16, 1], strides = [1, 1]} : vector<16x256xbf16> to vector<16x1xbf16>
    %231 = tpu.concatenate %229, %230 in 1 : vector<16x255xbf16>, vector<16x1xbf16> -> vector<16x256xbf16>
    %232 = vector.shape_cast %33 : vector<1x256xi1> to vector<1x256xi1>
    %233 = vector.broadcast %232 : vector<1x256xi1> to vector<16x256xi1>
    %234 = arith.select %233, %231, %222 : vector<16x256xi1>, vector<16x256xbf16>
    %c48_95 = arith.constant 48 : index
    %c0_96 = arith.constant 0 : index
    %235 = vector.load %arg9[%c48_95, %c0_96] : memref<288x512xbf16, #tpu.memory_space<vmem>>, vector<16x256xbf16>
    tpu.vector_store %arg9[%c48_95, %c0_96], %228 {strides = array<i32>} : memref<288x512xbf16, #tpu.memory_space<vmem>>, vector<16x256xbf16>,
    %c64_97 = arith.constant 64 : index
    %c0_98 = arith.constant 0 : index
    %236 = vector.load %arg9[%c64_97, %c0_98] : memref<288x512xbf16, #tpu.memory_space<vmem>>, vector<16x256xbf16>
    tpu.vector_store %arg9[%c64_97, %c0_98], %221 {strides = array<i32>} : memref<288x512xbf16, #tpu.memory_space<vmem>>, vector<16x256xbf16>,
    %c80 = arith.constant 80 : index
    %c0_99 = arith.constant 0 : index
    %237 = vector.load %arg9[%c80, %c0_99] : memref<288x512xbf16, #tpu.memory_space<vmem>>, vector<16x256xbf16>
    tpu.vector_store %arg9[%c80, %c0_99], %234 {strides = array<i32>} : memref<288x512xbf16, #tpu.memory_space<vmem>>, vector<16x256xbf16>,
    %c16_100 = arith.constant 16 : index
    %c160 = arith.constant 160 : index
    %238 = vector.load %arg8[%c16_100, %c160] : memref<32x1024xbf16, #tpu.memory_space<vmem>>, vector<16x256xbf16>
    %cst_101 = arith.constant 0.000000e+00 : bf16
    %239 = vector.broadcast %cst_101 : bf16 to vector<16x256xbf16>
    %240 = vector.extract_strided_slice %238 {offsets = [0, 255], sizes = [16, 1], strides = [1, 1]} : vector<16x256xbf16> to vector<16x1xbf16>
    %241 = vector.extract_strided_slice %238 {offsets = [0, 0], sizes = [16, 255], strides = [1, 1]} : vector<16x256xbf16> to vector<16x255xbf16>
    %242 = tpu.concatenate %240, %241 in 1 : vector<16x1xbf16>, vector<16x255xbf16> -> vector<16x256xbf16>
    %243 = vector.shape_cast %31 : vector<1x256xi1> to vector<1x256xi1>
    %244 = vector.broadcast %243 : vector<1x256xi1> to vector<16x256xi1>
    %245 = arith.select %244, %242, %239 : vector<16x256xi1>, vector<16x256xbf16>
    %246 = vector.extract_strided_slice %238 {offsets = [0, 1], sizes = [16, 255], strides = [1, 1]} : vector<16x256xbf16> to vector<16x255xbf16>
    %247 = vector.extract_strided_slice %238 {offsets = [0, 0], sizes = [16, 1], strides = [1, 1]} : vector<16x256xbf16> to vector<16x1xbf16>
    %248 = tpu.concatenate %246, %247 in 1 : vector<16x255xbf16>, vector<16x1xbf16> -> vector<16x256xbf16>
    %249 = vector.shape_cast %33 : vector<1x256xi1> to vector<1x256xi1>
    %250 = vector.broadcast %249 : vector<1x256xi1> to vector<16x256xi1>
    %251 = arith.select %250, %248, %239 : vector<16x256xi1>, vector<16x256xbf16>
    %c96_102 = arith.constant 96 : index
    %c0_103 = arith.constant 0 : index
    %252 = vector.load %arg9[%c96_102, %c0_103] : memref<288x512xbf16, #tpu.memory_space<vmem>>, vector<16x256xbf16>
    tpu.vector_store %arg9[%c96_102, %c0_103], %245 {strides = array<i32>} : memref<288x512xbf16, #tpu.memory_space<vmem>>, vector<16x256xbf16>,
    %c112_104 = arith.constant 112 : index
    %c0_105 = arith.constant 0 : index
    %253 = vector.load %arg9[%c112_104, %c0_105] : memref<288x512xbf16, #tpu.memory_space<vmem>>, vector<16x256xbf16>
    tpu.vector_store %arg9[%c112_104, %c0_105], %238 {strides = array<i32>} : memref<288x512xbf16, #tpu.memory_space<vmem>>, vector<16x256xbf16>,
    %c128_106 = arith.constant 128 : index
    %c0_107 = arith.constant 0 : index
    %254 = vector.load %arg9[%c128_106, %c0_107] : memref<288x512xbf16, #tpu.memory_space<vmem>>, vector<16x256xbf16>
    tpu.vector_store %arg9[%c128_106, %c0_107], %251 {strides = array<i32>} : memref<288x512xbf16, #tpu.memory_space<vmem>>, vector<16x256xbf16>,
    %c16_108 = arith.constant 16 : index
    %c608 = arith.constant 608 : index
    %255 = vector.load %arg8[%c16_108, %c608] : memref<32x1024xbf16, #tpu.memory_space<vmem>>, vector<16x256xbf16>
    %cst_109 = arith.constant 0.000000e+00 : bf16
    %256 = vector.broadcast %cst_109 : bf16 to vector<16x256xbf16>
    %257 = vector.extract_strided_slice %255 {offsets = [0, 255], sizes = [16, 1], strides = [1, 1]} : vector<16x256xbf16> to vector<16x1xbf16>
    %258 = vector.extract_strided_slice %255 {offsets = [0, 0], sizes = [16, 255], strides = [1, 1]} : vector<16x256xbf16> to vector<16x255xbf16>
    %259 = tpu.concatenate %257, %258 in 1 : vector<16x1xbf16>, vector<16x255xbf16> -> vector<16x256xbf16>
    %260 = vector.shape_cast %31 : vector<1x256xi1> to vector<1x256xi1>
    %261 = vector.broadcast %260 : vector<1x256xi1> to vector<16x256xi1>
    %262 = arith.select %261, %259, %256 : vector<16x256xi1>, vector<16x256xbf16>
    %263 = vector.extract_strided_slice %255 {offsets = [0, 1], sizes = [16, 255], strides = [1, 1]} : vector<16x256xbf16> to vector<16x255xbf16>
    %264 = vector.extract_strided_slice %255 {offsets = [0, 0], sizes = [16, 1], strides = [1, 1]} : vector<16x256xbf16> to vector<16x1xbf16>
    %265 = tpu.concatenate %263, %264 in 1 : vector<16x255xbf16>, vector<16x1xbf16> -> vector<16x256xbf16>
    %266 = vector.shape_cast %33 : vector<1x256xi1> to vector<1x256xi1>
    %267 = vector.broadcast %266 : vector<1x256xi1> to vector<16x256xi1>
    %268 = arith.select %267, %265, %256 : vector<16x256xi1>, vector<16x256xbf16>
    %c0_110 = arith.constant 0 : index
    %c256_111 = arith.constant 256 : index
    %269 = vector.load %arg9[%c0_110, %c256_111] : memref<288x512xbf16, #tpu.memory_space<vmem>>, vector<16x256xbf16>
    tpu.vector_store %arg9[%c0_110, %c256_111], %262 {strides = array<i32>} : memref<288x512xbf16, #tpu.memory_space<vmem>>, vector<16x256xbf16>,
    %c16_112 = arith.constant 16 : index
    %c256_113 = arith.constant 256 : index
    %270 = vector.load %arg9[%c16_112, %c256_113] : memref<288x512xbf16, #tpu.memory_space<vmem>>, vector<16x256xbf16>
    tpu.vector_store %arg9[%c16_112, %c256_113], %255 {strides = array<i32>} : memref<288x512xbf16, #tpu.memory_space<vmem>>, vector<16x256xbf16>,
    %c32_114 = arith.constant 32 : index
    %c256_115 = arith.constant 256 : index
    %271 = vector.load %arg9[%c32_114, %c256_115] : memref<288x512xbf16, #tpu.memory_space<vmem>>, vector<16x256xbf16>
    tpu.vector_store %arg9[%c32_114, %c256_115], %268 {strides = array<i32>} : memref<288x512xbf16, #tpu.memory_space<vmem>>, vector<16x256xbf16>,
    %c16_116 = arith.constant 16 : index
    %c640_117 = arith.constant 640 : index
    %272 = vector.load %arg8[%c16_116, %c640_117] : memref<32x1024xbf16, #tpu.memory_space<vmem>>, vector<16x256xbf16>
    %cst_118 = arith.constant 0.000000e+00 : bf16
    %273 = vector.broadcast %cst_118 : bf16 to vector<16x256xbf16>
    %274 = vector.extract_strided_slice %272 {offsets = [0, 255], sizes = [16, 1], strides = [1, 1]} : vector<16x256xbf16> to vector<16x1xbf16>
    %275 = vector.extract_strided_slice %272 {offsets = [0, 0], sizes = [16, 255], strides = [1, 1]} : vector<16x256xbf16> to vector<16x255xbf16>
    %276 = tpu.concatenate %274, %275 in 1 : vector<16x1xbf16>, vector<16x255xbf16> -> vector<16x256xbf16>
    %277 = vector.shape_cast %31 : vector<1x256xi1> to vector<1x256xi1>
    %278 = vector.broadcast %277 : vector<1x256xi1> to vector<16x256xi1>
    %279 = arith.select %278, %276, %273 : vector<16x256xi1>, vector<16x256xbf16>
    %280 = vector.extract_strided_slice %272 {offsets = [0, 1], sizes = [16, 255], strides = [1, 1]} : vector<16x256xbf16> to vector<16x255xbf16>
    %281 = vector.extract_strided_slice %272 {offsets = [0, 0], sizes = [16, 1], strides = [1, 1]} : vector<16x256xbf16> to vector<16x1xbf16>
    %282 = tpu.concatenate %280, %281 in 1 : vector<16x255xbf16>, vector<16x1xbf16> -> vector<16x256xbf16>
    %283 = vector.shape_cast %33 : vector<1x256xi1> to vector<1x256xi1>
    %284 = vector.broadcast %283 : vector<1x256xi1> to vector<16x256xi1>
    %285 = arith.select %284, %282, %273 : vector<16x256xi1>, vector<16x256xbf16>
    %c48_119 = arith.constant 48 : index
    %c256_120 = arith.constant 256 : index
    %286 = vector.load %arg9[%c48_119, %c256_120] : memref<288x512xbf16, #tpu.memory_space<vmem>>, vector<16x256xbf16>
    tpu.vector_store %arg9[%c48_119, %c256_120], %279 {strides = array<i32>} : memref<288x512xbf16, #tpu.memory_space<vmem>>, vector<16x256xbf16>,
    %c64_121 = arith.constant 64 : index
    %c256_122 = arith.constant 256 : index
    %287 = vector.load %arg9[%c64_121, %c256_122] : memref<288x512xbf16, #tpu.memory_space<vmem>>, vector<16x256xbf16>
    tpu.vector_store %arg9[%c64_121, %c256_122], %272 {strides = array<i32>} : memref<288x512xbf16, #tpu.memory_space<vmem>>, vector<16x256xbf16>,
    %c80_123 = arith.constant 80 : index
    %c256_124 = arith.constant 256 : index
    %288 = vector.load %arg9[%c80_123, %c256_124] : memref<288x512xbf16, #tpu.memory_space<vmem>>, vector<16x256xbf16>
    tpu.vector_store %arg9[%c80_123, %c256_124], %285 {strides = array<i32>} : memref<288x512xbf16, #tpu.memory_space<vmem>>, vector<16x256xbf16>,
    %c16_125 = arith.constant 16 : index
    %c672 = arith.constant 672 : index
    %289 = vector.load %arg8[%c16_125, %c672] : memref<32x1024xbf16, #tpu.memory_space<vmem>>, vector<16x256xbf16>
    %cst_126 = arith.constant 0.000000e+00 : bf16
    %290 = vector.broadcast %cst_126 : bf16 to vector<16x256xbf16>
    %291 = vector.extract_strided_slice %289 {offsets = [0, 255], sizes = [16, 1], strides = [1, 1]} : vector<16x256xbf16> to vector<16x1xbf16>
    %292 = vector.extract_strided_slice %289 {offsets = [0, 0], sizes = [16, 255], strides = [1, 1]} : vector<16x256xbf16> to vector<16x255xbf16>
    %293 = tpu.concatenate %291, %292 in 1 : vector<16x1xbf16>, vector<16x255xbf16> -> vector<16x256xbf16>
    %294 = vector.shape_cast %31 : vector<1x256xi1> to vector<1x256xi1>
    %295 = vector.broadcast %294 : vector<1x256xi1> to vector<16x256xi1>
    %296 = arith.select %295, %293, %290 : vector<16x256xi1>, vector<16x256xbf16>
    %297 = vector.extract_strided_slice %289 {offsets = [0, 1], sizes = [16, 255], strides = [1, 1]} : vector<16x256xbf16> to vector<16x255xbf16>
    %298 = vector.extract_strided_slice %289 {offsets = [0, 0], sizes = [16, 1], strides = [1, 1]} : vector<16x256xbf16> to vector<16x1xbf16>
    %299 = tpu.concatenate %297, %298 in 1 : vector<16x255xbf16>, vector<16x1xbf16> -> vector<16x256xbf16>
    %300 = vector.shape_cast %33 : vector<1x256xi1> to vector<1x256xi1>
    %301 = vector.broadcast %300 : vector<1x256xi1> to vector<16x256xi1>
    %302 = arith.select %301, %299, %290 : vector<16x256xi1>, vector<16x256xbf16>
    %c96_127 = arith.constant 96 : index
    %c256_128 = arith.constant 256 : index
    %303 = vector.load %arg9[%c96_127, %c256_128] : memref<288x512xbf16, #tpu.memory_space<vmem>>, vector<16x256xbf16>
    tpu.vector_store %arg9[%c96_127, %c256_128], %296 {strides = array<i32>} : memref<288x512xbf16, #tpu.memory_space<vmem>>, vector<16x256xbf16>,
    %c112_129 = arith.constant 112 : index
    %c256_130 = arith.constant 256 : index
    %304 = vector.load %arg9[%c112_129, %c256_130] : memref<288x512xbf16, #tpu.memory_space<vmem>>, vector<16x256xbf16>
    tpu.vector_store %arg9[%c112_129, %c256_130], %289 {strides = array<i32>} : memref<288x512xbf16, #tpu.memory_space<vmem>>, vector<16x256xbf16>,
    %c128_131 = arith.constant 128 : index
    %c256_132 = arith.constant 256 : index
    %305 = vector.load %arg9[%c128_131, %c256_132] : memref<288x512xbf16, #tpu.memory_space<vmem>>, vector<16x256xbf16>
    tpu.vector_store %arg9[%c128_131, %c256_132], %302 {strides = array<i32>} : memref<288x512xbf16, #tpu.memory_space<vmem>>, vector<16x256xbf16>,
    %c0_133 = arith.constant 0 : index
    %c0_134 = arith.constant 0 : index
    %306 = vector.load %arg9[%c0_133, %c0_134] : memref<288x512xbf16, #tpu.memory_space<vmem>>, vector<144x512xbf16>
    %c0_135 = arith.constant 0 : index
    %c0_136 = arith.constant 0 : index
    %307 = vector.load %arg3[%c0_135, %c0_136] : memref<8x144xbf16, #tpu.memory_space<vmem>>, vector<8x144xbf16>
    %cst_137 = arith.constant dense<0.000000e+00> : vector<8x512xf32>
    %308 = tpu.matmul %307, %306, %cst_137 {dimension_numbers = #tpu.dot_dimension_numbers<[1], [0], [0], [1], [0, 0, 1, 1], [], []>} : vector<8x144xbf16>, vector<144x512xbf16>, vector<8x512xf32> -> vector<8x512xf32>
    %c0_138 = arith.constant 0 : index
    %c3 = arith.constant 3 : index
    %309 = vector.load %arg6[%c0_138, %c3] : memref<8x12xf32, #tpu.memory_space<vmem>>, vector<8x1xf32>
    %c0_139 = arith.constant 0 : index
    %c4 = arith.constant 4 : index
    %310 = vector.load %arg6[%c0_139, %c4] : memref<8x12xf32, #tpu.memory_space<vmem>>, vector<8x1xf32>
    %c0_140 = arith.constant 0 : index
    %c5 = arith.constant 5 : index
    %311 = vector.load %arg6[%c0_140, %c5] : memref<8x12xf32, #tpu.memory_space<vmem>>, vector<8x1xf32>
    %312 = vector.extract_strided_slice %308 {offsets = [0, 0], sizes = [8, 256], strides = [1, 1]} : vector<8x512xf32> to vector<8x256xf32>
    %cst_141 = arith.constant dense<0.000000e+00> : vector<8xf32>
    %313 = vector.multi_reduction <add>, %312, %cst_141 [1] : vector<8x256xf32> to vector<8xf32>
    %314 = vector.shape_cast %313 : vector<8xf32> to vector<8x1xf32>
    %cst_142 = arith.constant 3.906250e-03 : f32
    %315 = vector.broadcast %cst_142 : f32 to vector<8x1xf32>
    %316 = arith.mulf %314, %315 : vector<8x1xf32>
    %317 = arith.mulf %312, %312 : vector<8x256xf32>
    %cst_143 = arith.constant dense<0.000000e+00> : vector<8xf32>
    %318 = vector.multi_reduction <add>, %317, %cst_143 [1] : vector<8x256xf32> to vector<8xf32>
    %319 = vector.shape_cast %318 : vector<8xf32> to vector<8x1xf32>
    %cst_144 = arith.constant 3.906250e-03 : f32
    %320 = vector.broadcast %cst_144 : f32 to vector<8x1xf32>
    %321 = arith.mulf %319, %320 : vector<8x1xf32>
    %322 = arith.mulf %316, %316 : vector<8x1xf32>
    %323 = arith.subf %321, %322 : vector<8x1xf32>
    %cst_145 = arith.constant 0.000000e+00 : f32
    %324 = vector.broadcast %cst_145 : f32 to vector<8x1xf32>
    %325 = arith.maximumf %323, %324 : vector<8x1xf32>
    %cst_146 = arith.constant 9.99999974E-6 : f32
    %326 = vector.broadcast %cst_146 : f32 to vector<8x1xf32>
    %327 = arith.addf %325, %326 : vector<8x1xf32>
    %328 = math.rsqrt %327 : vector<8x1xf32>
    %329 = arith.mulf %309, %328 : vector<8x1xf32>
    %330 = arith.mulf %316, %329 : vector<8x1xf32>
    %331 = arith.subf %310, %330 : vector<8x1xf32>
    %332 = vector.broadcast %329 : vector<8x1xf32> to vector<8x256xf32>
    %333 = arith.mulf %312, %332 : vector<8x256xf32>
    %334 = vector.broadcast %331 : vector<8x1xf32> to vector<8x256xf32>
    %335 = arith.addf %333, %334 : vector<8x256xf32>
    %cst_147 = arith.constant 0.000000e+00 : f32
    %336 = vector.broadcast %cst_147 : f32 to vector<8x256xf32>
    %337 = arith.cmpf oge, %335, %336 : vector<8x256xf32>
    %338 = vector.broadcast %311 : vector<8x1xf32> to vector<8x256xf32>
    %339 = arith.mulf %338, %335 : vector<8x256xf32>
    %340 = arith.select %337, %335, %339 : vector<8x256xi1>, vector<8x256xf32>
    %341 = arith.truncf %340 : vector<8x256xf32> to vector<8x256xbf16>
    %c8_148 = arith.constant 8 : index
    %c128_149 = arith.constant 128 : index
    %342 = vector.load %arg8[%c8_148, %c128_149] : memref<32x1024xbf16, #tpu.memory_space<vmem>>, vector<8x256xbf16>
    tpu.vector_store %arg8[%c8_148, %c128_149], %341 {strides = array<i32>} : memref<32x1024xbf16, #tpu.memory_space<vmem>>, vector<8x256xbf16>,
    %343 = vector.extract_strided_slice %308 {offsets = [0, 256], sizes = [8, 256], strides = [1, 1]} : vector<8x512xf32> to vector<8x256xf32>
    %cst_150 = arith.constant dense<0.000000e+00> : vector<8xf32>
    %344 = vector.multi_reduction <add>, %343, %cst_150 [1] : vector<8x256xf32> to vector<8xf32>
    %345 = vector.shape_cast %344 : vector<8xf32> to vector<8x1xf32>
    %cst_151 = arith.constant 3.906250e-03 : f32
    %346 = vector.broadcast %cst_151 : f32 to vector<8x1xf32>
    %347 = arith.mulf %345, %346 : vector<8x1xf32>
    %348 = arith.mulf %343, %343 : vector<8x256xf32>
    %cst_152 = arith.constant dense<0.000000e+00> : vector<8xf32>
    %349 = vector.multi_reduction <add>, %348, %cst_152 [1] : vector<8x256xf32> to vector<8xf32>
    %350 = vector.shape_cast %349 : vector<8xf32> to vector<8x1xf32>
    %cst_153 = arith.constant 3.906250e-03 : f32
    %351 = vector.broadcast %cst_153 : f32 to vector<8x1xf32>
    %352 = arith.mulf %350, %351 : vector<8x1xf32>
    %353 = arith.mulf %347, %347 : vector<8x1xf32>
    %354 = arith.subf %352, %353 : vector<8x1xf32>
    %cst_154 = arith.constant 0.000000e+00 : f32
    %355 = vector.broadcast %cst_154 : f32 to vector<8x1xf32>
    %356 = arith.maximumf %354, %355 : vector<8x1xf32>
    %cst_155 = arith.constant 9.99999974E-6 : f32
    %357 = vector.broadcast %cst_155 : f32 to vector<8x1xf32>
    %358 = arith.addf %356, %357 : vector<8x1xf32>
    %359 = math.rsqrt %358 : vector<8x1xf32>
    %360 = arith.mulf %309, %359 : vector<8x1xf32>
    %361 = arith.mulf %347, %360 : vector<8x1xf32>
    %362 = arith.subf %310, %361 : vector<8x1xf32>
    %363 = vector.broadcast %360 : vector<8x1xf32> to vector<8x256xf32>
    %364 = arith.mulf %343, %363 : vector<8x256xf32>
    %365 = vector.broadcast %362 : vector<8x1xf32> to vector<8x256xf32>
    %366 = arith.addf %364, %365 : vector<8x256xf32>
    %cst_156 = arith.constant 0.000000e+00 : f32
    %367 = vector.broadcast %cst_156 : f32 to vector<8x256xf32>
    %368 = arith.cmpf oge, %366, %367 : vector<8x256xf32>
    %369 = vector.broadcast %311 : vector<8x1xf32> to vector<8x256xf32>
    %370 = arith.mulf %369, %366 : vector<8x256xf32>
    %371 = arith.select %368, %366, %370 : vector<8x256xi1>, vector<8x256xf32>
    %372 = arith.truncf %371 : vector<8x256xf32> to vector<8x256xbf16>
    %c8_157 = arith.constant 8 : index
    %c640_158 = arith.constant 640 : index
    %373 = vector.load %arg8[%c8_157, %c640_158] : memref<32x1024xbf16, #tpu.memory_space<vmem>>, vector<8x256xbf16>
    tpu.vector_store %arg8[%c8_157, %c640_158], %372 {strides = array<i32>} : memref<32x1024xbf16, #tpu.memory_space<vmem>>, vector<8x256xbf16>,
    %c8_159 = arith.constant 8 : index
    %c64_160 = arith.constant 64 : index
    %374 = vector.load %arg8[%c8_159, %c64_160] : memref<32x1024xbf16, #tpu.memory_space<vmem>>, vector<24x256xbf16>
    %cst_161 = arith.constant 0.000000e+00 : bf16
    %375 = vector.broadcast %cst_161 : bf16 to vector<24x256xbf16>
    %376 = vector.extract_strided_slice %374 {offsets = [0, 255], sizes = [24, 1], strides = [1, 1]} : vector<24x256xbf16> to vector<24x1xbf16>
    %377 = vector.extract_strided_slice %374 {offsets = [0, 0], sizes = [24, 255], strides = [1, 1]} : vector<24x256xbf16> to vector<24x255xbf16>
    %378 = tpu.concatenate %376, %377 in 1 : vector<24x1xbf16>, vector<24x255xbf16> -> vector<24x256xbf16>
    %379 = vector.shape_cast %31 : vector<1x256xi1> to vector<1x256xi1>
    %380 = vector.broadcast %379 : vector<1x256xi1> to vector<24x256xi1>
    %381 = arith.select %380, %378, %375 : vector<24x256xi1>, vector<24x256xbf16>
    %382 = vector.extract_strided_slice %374 {offsets = [0, 1], sizes = [24, 255], strides = [1, 1]} : vector<24x256xbf16> to vector<24x255xbf16>
    %383 = vector.extract_strided_slice %374 {offsets = [0, 0], sizes = [24, 1], strides = [1, 1]} : vector<24x256xbf16> to vector<24x1xbf16>
    %384 = tpu.concatenate %382, %383 in 1 : vector<24x255xbf16>, vector<24x1xbf16> -> vector<24x256xbf16>
    %385 = vector.shape_cast %33 : vector<1x256xi1> to vector<1x256xi1>
    %386 = vector.broadcast %385 : vector<1x256xi1> to vector<24x256xi1>
    %387 = arith.select %386, %384, %375 : vector<24x256xi1>, vector<24x256xbf16>
    %c0_162 = arith.constant 0 : index
    %c0_163 = arith.constant 0 : index
    %388 = vector.load %arg9[%c0_162, %c0_163] : memref<288x512xbf16, #tpu.memory_space<vmem>>, vector<24x256xbf16>
    tpu.vector_store %arg9[%c0_162, %c0_163], %381 {strides = array<i32>} : memref<288x512xbf16, #tpu.memory_space<vmem>>, vector<24x256xbf16>,
    %c24_164 = arith.constant 24 : index
    %c0_165 = arith.constant 0 : index
    %389 = vector.load %arg9[%c24_164, %c0_165] : memref<288x512xbf16, #tpu.memory_space<vmem>>, vector<24x256xbf16>
    tpu.vector_store %arg9[%c24_164, %c0_165], %374 {strides = array<i32>} : memref<288x512xbf16, #tpu.memory_space<vmem>>, vector<24x256xbf16>,
    %c48_166 = arith.constant 48 : index
    %c0_167 = arith.constant 0 : index
    %390 = vector.load %arg9[%c48_166, %c0_167] : memref<288x512xbf16, #tpu.memory_space<vmem>>, vector<24x256xbf16>
    tpu.vector_store %arg9[%c48_166, %c0_167], %387 {strides = array<i32>} : memref<288x512xbf16, #tpu.memory_space<vmem>>, vector<24x256xbf16>,
    %c8_168 = arith.constant 8 : index
    %c128_169 = arith.constant 128 : index
    %391 = vector.load %arg8[%c8_168, %c128_169] : memref<32x1024xbf16, #tpu.memory_space<vmem>>, vector<24x256xbf16>
    %cst_170 = arith.constant 0.000000e+00 : bf16
    %392 = vector.broadcast %cst_170 : bf16 to vector<24x256xbf16>
    %393 = vector.extract_strided_slice %391 {offsets = [0, 255], sizes = [24, 1], strides = [1, 1]} : vector<24x256xbf16> to vector<24x1xbf16>
    %394 = vector.extract_strided_slice %391 {offsets = [0, 0], sizes = [24, 255], strides = [1, 1]} : vector<24x256xbf16> to vector<24x255xbf16>
    %395 = tpu.concatenate %393, %394 in 1 : vector<24x1xbf16>, vector<24x255xbf16> -> vector<24x256xbf16>
    %396 = vector.shape_cast %31 : vector<1x256xi1> to vector<1x256xi1>
    %397 = vector.broadcast %396 : vector<1x256xi1> to vector<24x256xi1>
    %398 = arith.select %397, %395, %392 : vector<24x256xi1>, vector<24x256xbf16>
    %399 = vector.extract_strided_slice %391 {offsets = [0, 1], sizes = [24, 255], strides = [1, 1]} : vector<24x256xbf16> to vector<24x255xbf16>
    %400 = vector.extract_strided_slice %391 {offsets = [0, 0], sizes = [24, 1], strides = [1, 1]} : vector<24x256xbf16> to vector<24x1xbf16>
    %401 = tpu.concatenate %399, %400 in 1 : vector<24x255xbf16>, vector<24x1xbf16> -> vector<24x256xbf16>
    %402 = vector.shape_cast %33 : vector<1x256xi1> to vector<1x256xi1>
    %403 = vector.broadcast %402 : vector<1x256xi1> to vector<24x256xi1>
    %404 = arith.select %403, %401, %392 : vector<24x256xi1>, vector<24x256xbf16>
    %c72 = arith.constant 72 : index
    %c0_171 = arith.constant 0 : index
    %405 = vector.load %arg9[%c72, %c0_171] : memref<288x512xbf16, #tpu.memory_space<vmem>>, vector<24x256xbf16>
    tpu.vector_store %arg9[%c72, %c0_171], %398 {strides = array<i32>} : memref<288x512xbf16, #tpu.memory_space<vmem>>, vector<24x256xbf16>,
    %c96_172 = arith.constant 96 : index
    %c0_173 = arith.constant 0 : index
    %406 = vector.load %arg9[%c96_172, %c0_173] : memref<288x512xbf16, #tpu.memory_space<vmem>>, vector<24x256xbf16>
    tpu.vector_store %arg9[%c96_172, %c0_173], %391 {strides = array<i32>} : memref<288x512xbf16, #tpu.memory_space<vmem>>, vector<24x256xbf16>,
    %c120 = arith.constant 120 : index
    %c0_174 = arith.constant 0 : index
    %407 = vector.load %arg9[%c120, %c0_174] : memref<288x512xbf16, #tpu.memory_space<vmem>>, vector<24x256xbf16>
    tpu.vector_store %arg9[%c120, %c0_174], %404 {strides = array<i32>} : memref<288x512xbf16, #tpu.memory_space<vmem>>, vector<24x256xbf16>,
    %c8_175 = arith.constant 8 : index
    %c192 = arith.constant 192 : index
    %408 = vector.load %arg8[%c8_175, %c192] : memref<32x1024xbf16, #tpu.memory_space<vmem>>, vector<24x256xbf16>
    %cst_176 = arith.constant 0.000000e+00 : bf16
    %409 = vector.broadcast %cst_176 : bf16 to vector<24x256xbf16>
    %410 = vector.extract_strided_slice %408 {offsets = [0, 255], sizes = [24, 1], strides = [1, 1]} : vector<24x256xbf16> to vector<24x1xbf16>
    %411 = vector.extract_strided_slice %408 {offsets = [0, 0], sizes = [24, 255], strides = [1, 1]} : vector<24x256xbf16> to vector<24x255xbf16>
    %412 = tpu.concatenate %410, %411 in 1 : vector<24x1xbf16>, vector<24x255xbf16> -> vector<24x256xbf16>
    %413 = vector.shape_cast %31 : vector<1x256xi1> to vector<1x256xi1>
    %414 = vector.broadcast %413 : vector<1x256xi1> to vector<24x256xi1>
    %415 = arith.select %414, %412, %409 : vector<24x256xi1>, vector<24x256xbf16>
    %416 = vector.extract_strided_slice %408 {offsets = [0, 1], sizes = [24, 255], strides = [1, 1]} : vector<24x256xbf16> to vector<24x255xbf16>
    %417 = vector.extract_strided_slice %408 {offsets = [0, 0], sizes = [24, 1], strides = [1, 1]} : vector<24x256xbf16> to vector<24x1xbf16>
    %418 = tpu.concatenate %416, %417 in 1 : vector<24x255xbf16>, vector<24x1xbf16> -> vector<24x256xbf16>
    %419 = vector.shape_cast %33 : vector<1x256xi1> to vector<1x256xi1>
    %420 = vector.broadcast %419 : vector<1x256xi1> to vector<24x256xi1>
    %421 = arith.select %420, %418, %409 : vector<24x256xi1>, vector<24x256xbf16>
    %c144_177 = arith.constant 144 : index
    %c0_178 = arith.constant 0 : index
    %422 = vector.load %arg9[%c144_177, %c0_178] : memref<288x512xbf16, #tpu.memory_space<vmem>>, vector<24x256xbf16>
    tpu.vector_store %arg9[%c144_177, %c0_178], %415 {strides = array<i32>} : memref<288x512xbf16, #tpu.memory_space<vmem>>, vector<24x256xbf16>,
    %c168 = arith.constant 168 : index
    %c0_179 = arith.constant 0 : index
    %423 = vector.load %arg9[%c168, %c0_179] : memref<288x512xbf16, #tpu.memory_space<vmem>>, vector<24x256xbf16>
    tpu.vector_store %arg9[%c168, %c0_179], %408 {strides = array<i32>} : memref<288x512xbf16, #tpu.memory_space<vmem>>, vector<24x256xbf16>,
    %c192_180 = arith.constant 192 : index
    %c0_181 = arith.constant 0 : index
    %424 = vector.load %arg9[%c192_180, %c0_181] : memref<288x512xbf16, #tpu.memory_space<vmem>>, vector<24x256xbf16>
    tpu.vector_store %arg9[%c192_180, %c0_181], %421 {strides = array<i32>} : memref<288x512xbf16, #tpu.memory_space<vmem>>, vector<24x256xbf16>,
    %c8_182 = arith.constant 8 : index
    %c576 = arith.constant 576 : index
    %425 = vector.load %arg8[%c8_182, %c576] : memref<32x1024xbf16, #tpu.memory_space<vmem>>, vector<24x256xbf16>
    %cst_183 = arith.constant 0.000000e+00 : bf16
    %426 = vector.broadcast %cst_183 : bf16 to vector<24x256xbf16>
    %427 = vector.extract_strided_slice %425 {offsets = [0, 255], sizes = [24, 1], strides = [1, 1]} : vector<24x256xbf16> to vector<24x1xbf16>
    %428 = vector.extract_strided_slice %425 {offsets = [0, 0], sizes = [24, 255], strides = [1, 1]} : vector<24x256xbf16> to vector<24x255xbf16>
    %429 = tpu.concatenate %427, %428 in 1 : vector<24x1xbf16>, vector<24x255xbf16> -> vector<24x256xbf16>
    %430 = vector.shape_cast %31 : vector<1x256xi1> to vector<1x256xi1>
    %431 = vector.broadcast %430 : vector<1x256xi1> to vector<24x256xi1>
    %432 = arith.select %431, %429, %426 : vector<24x256xi1>, vector<24x256xbf16>
    %433 = vector.extract_strided_slice %425 {offsets = [0, 1], sizes = [24, 255], strides = [1, 1]} : vector<24x256xbf16> to vector<24x255xbf16>
    %434 = vector.extract_strided_slice %425 {offsets = [0, 0], sizes = [24, 1], strides = [1, 1]} : vector<24x256xbf16> to vector<24x1xbf16>
    %435 = tpu.concatenate %433, %434 in 1 : vector<24x255xbf16>, vector<24x1xbf16> -> vector<24x256xbf16>
    %436 = vector.shape_cast %33 : vector<1x256xi1> to vector<1x256xi1>
    %437 = vector.broadcast %436 : vector<1x256xi1> to vector<24x256xi1>
    %438 = arith.select %437, %435, %426 : vector<24x256xi1>, vector<24x256xbf16>
    %c0_184 = arith.constant 0 : index
    %c256_185 = arith.constant 256 : index
    %439 = vector.load %arg9[%c0_184, %c256_185] : memref<288x512xbf16, #tpu.memory_space<vmem>>, vector<24x256xbf16>
    tpu.vector_store %arg9[%c0_184, %c256_185], %432 {strides = array<i32>} : memref<288x512xbf16, #tpu.memory_space<vmem>>, vector<24x256xbf16>,
    %c24_186 = arith.constant 24 : index
    %c256_187 = arith.constant 256 : index
    %440 = vector.load %arg9[%c24_186, %c256_187] : memref<288x512xbf16, #tpu.memory_space<vmem>>, vector<24x256xbf16>
    tpu.vector_store %arg9[%c24_186, %c256_187], %425 {strides = array<i32>} : memref<288x512xbf16, #tpu.memory_space<vmem>>, vector<24x256xbf16>,
    %c48_188 = arith.constant 48 : index
    %c256_189 = arith.constant 256 : index
    %441 = vector.load %arg9[%c48_188, %c256_189] : memref<288x512xbf16, #tpu.memory_space<vmem>>, vector<24x256xbf16>
    tpu.vector_store %arg9[%c48_188, %c256_189], %438 {strides = array<i32>} : memref<288x512xbf16, #tpu.memory_space<vmem>>, vector<24x256xbf16>,
    %c8_190 = arith.constant 8 : index
    %c640_191 = arith.constant 640 : index
    %442 = vector.load %arg8[%c8_190, %c640_191] : memref<32x1024xbf16, #tpu.memory_space<vmem>>, vector<24x256xbf16>
    %cst_192 = arith.constant 0.000000e+00 : bf16
    %443 = vector.broadcast %cst_192 : bf16 to vector<24x256xbf16>
    %444 = vector.extract_strided_slice %442 {offsets = [0, 255], sizes = [24, 1], strides = [1, 1]} : vector<24x256xbf16> to vector<24x1xbf16>
    %445 = vector.extract_strided_slice %442 {offsets = [0, 0], sizes = [24, 255], strides = [1, 1]} : vector<24x256xbf16> to vector<24x255xbf16>
    %446 = tpu.concatenate %444, %445 in 1 : vector<24x1xbf16>, vector<24x255xbf16> -> vector<24x256xbf16>
    %447 = vector.shape_cast %31 : vector<1x256xi1> to vector<1x256xi1>
    %448 = vector.broadcast %447 : vector<1x256xi1> to vector<24x256xi1>
    %449 = arith.select %448, %446, %443 : vector<24x256xi1>, vector<24x256xbf16>
    %450 = vector.extract_strided_slice %442 {offsets = [0, 1], sizes = [24, 255], strides = [1, 1]} : vector<24x256xbf16> to vector<24x255xbf16>
    %451 = vector.extract_strided_slice %442 {offsets = [0, 0], sizes = [24, 1], strides = [1, 1]} : vector<24x256xbf16> to vector<24x1xbf16>
    %452 = tpu.concatenate %450, %451 in 1 : vector<24x255xbf16>, vector<24x1xbf16> -> vector<24x256xbf16>
    %453 = vector.shape_cast %33 : vector<1x256xi1> to vector<1x256xi1>
    %454 = vector.broadcast %453 : vector<1x256xi1> to vector<24x256xi1>
    %455 = arith.select %454, %452, %443 : vector<24x256xi1>, vector<24x256xbf16>
    %c72_193 = arith.constant 72 : index
    %c256_194 = arith.constant 256 : index
    %456 = vector.load %arg9[%c72_193, %c256_194] : memref<288x512xbf16, #tpu.memory_space<vmem>>, vector<24x256xbf16>
    tpu.vector_store %arg9[%c72_193, %c256_194], %449 {strides = array<i32>} : memref<288x512xbf16, #tpu.memory_space<vmem>>, vector<24x256xbf16>,
    %c96_195 = arith.constant 96 : index
    %c256_196 = arith.constant 256 : index
    %457 = vector.load %arg9[%c96_195, %c256_196] : memref<288x512xbf16, #tpu.memory_space<vmem>>, vector<24x256xbf16>
    tpu.vector_store %arg9[%c96_195, %c256_196], %442 {strides = array<i32>} : memref<288x512xbf16, #tpu.memory_space<vmem>>, vector<24x256xbf16>,
    %c120_197 = arith.constant 120 : index
    %c256_198 = arith.constant 256 : index
    %458 = vector.load %arg9[%c120_197, %c256_198] : memref<288x512xbf16, #tpu.memory_space<vmem>>, vector<24x256xbf16>
    tpu.vector_store %arg9[%c120_197, %c256_198], %455 {strides = array<i32>} : memref<288x512xbf16, #tpu.memory_space<vmem>>, vector<24x256xbf16>,
    %c8_199 = arith.constant 8 : index
    %c704 = arith.constant 704 : index
    %459 = vector.load %arg8[%c8_199, %c704] : memref<32x1024xbf16, #tpu.memory_space<vmem>>, vector<24x256xbf16>
    %cst_200 = arith.constant 0.000000e+00 : bf16
    %460 = vector.broadcast %cst_200 : bf16 to vector<24x256xbf16>
    %461 = vector.extract_strided_slice %459 {offsets = [0, 255], sizes = [24, 1], strides = [1, 1]} : vector<24x256xbf16> to vector<24x1xbf16>
    %462 = vector.extract_strided_slice %459 {offsets = [0, 0], sizes = [24, 255], strides = [1, 1]} : vector<24x256xbf16> to vector<24x255xbf16>
    %463 = tpu.concatenate %461, %462 in 1 : vector<24x1xbf16>, vector<24x255xbf16> -> vector<24x256xbf16>
    %464 = vector.shape_cast %31 : vector<1x256xi1> to vector<1x256xi1>
    %465 = vector.broadcast %464 : vector<1x256xi1> to vector<24x256xi1>
    %466 = arith.select %465, %463, %460 : vector<24x256xi1>, vector<24x256xbf16>
    %467 = vector.extract_strided_slice %459 {offsets = [0, 1], sizes = [24, 255], strides = [1, 1]} : vector<24x256xbf16> to vector<24x255xbf16>
    %468 = vector.extract_strided_slice %459 {offsets = [0, 0], sizes = [24, 1], strides = [1, 1]} : vector<24x256xbf16> to vector<24x1xbf16>
    %469 = tpu.concatenate %467, %468 in 1 : vector<24x255xbf16>, vector<24x1xbf16> -> vector<24x256xbf16>
    %470 = vector.shape_cast %33 : vector<1x256xi1> to vector<1x256xi1>
    %471 = vector.broadcast %470 : vector<1x256xi1> to vector<24x256xi1>
    %472 = arith.select %471, %469, %460 : vector<24x256xi1>, vector<24x256xbf16>
    %c144_201 = arith.constant 144 : index
    %c256_202 = arith.constant 256 : index
    %473 = vector.load %arg9[%c144_201, %c256_202] : memref<288x512xbf16, #tpu.memory_space<vmem>>, vector<24x256xbf16>
    tpu.vector_store %arg9[%c144_201, %c256_202], %466 {strides = array<i32>} : memref<288x512xbf16, #tpu.memory_space<vmem>>, vector<24x256xbf16>,
    %c168_203 = arith.constant 168 : index
    %c256_204 = arith.constant 256 : index
    %474 = vector.load %arg9[%c168_203, %c256_204] : memref<288x512xbf16, #tpu.memory_space<vmem>>, vector<24x256xbf16>
    tpu.vector_store %arg9[%c168_203, %c256_204], %459 {strides = array<i32>} : memref<288x512xbf16, #tpu.memory_space<vmem>>, vector<24x256xbf16>,
    %c192_205 = arith.constant 192 : index
    %c256_206 = arith.constant 256 : index
    %475 = vector.load %arg9[%c192_205, %c256_206] : memref<288x512xbf16, #tpu.memory_space<vmem>>, vector<24x256xbf16>
    tpu.vector_store %arg9[%c192_205, %c256_206], %472 {strides = array<i32>} : memref<288x512xbf16, #tpu.memory_space<vmem>>, vector<24x256xbf16>,
    %c0_207 = arith.constant 0 : index
    %c0_208 = arith.constant 0 : index
    %476 = vector.load %arg9[%c0_207, %c0_208] : memref<288x512xbf16, #tpu.memory_space<vmem>>, vector<216x512xbf16>
    %c0_209 = arith.constant 0 : index
    %c0_210 = arith.constant 0 : index
    %477 = vector.load %arg4[%c0_209, %c0_210] : memref<8x216xbf16, #tpu.memory_space<vmem>>, vector<8x216xbf16>
    %cst_211 = arith.constant dense<0.000000e+00> : vector<8x512xf32>
    %478 = tpu.matmul %477, %476, %cst_211 {dimension_numbers = #tpu.dot_dimension_numbers<[1], [0], [0], [1], [0, 0, 1, 1], [], []>} : vector<8x216xbf16>, vector<216x512xbf16>, vector<8x512xf32> -> vector<8x512xf32>
    %c0_212 = arith.constant 0 : index
    %c6 = arith.constant 6 : index
    %479 = vector.load %arg6[%c0_212, %c6] : memref<8x12xf32, #tpu.memory_space<vmem>>, vector<8x1xf32>
    %c0_213 = arith.constant 0 : index
    %c7 = arith.constant 7 : index
    %480 = vector.load %arg6[%c0_213, %c7] : memref<8x12xf32, #tpu.memory_space<vmem>>, vector<8x1xf32>
    %c0_214 = arith.constant 0 : index
    %c8_215 = arith.constant 8 : index
    %481 = vector.load %arg6[%c0_214, %c8_215] : memref<8x12xf32, #tpu.memory_space<vmem>>, vector<8x1xf32>
    %482 = vector.extract_strided_slice %478 {offsets = [0, 0], sizes = [8, 256], strides = [1, 1]} : vector<8x512xf32> to vector<8x256xf32>
    %cst_216 = arith.constant dense<0.000000e+00> : vector<8xf32>
    %483 = vector.multi_reduction <add>, %482, %cst_216 [1] : vector<8x256xf32> to vector<8xf32>
    %484 = vector.shape_cast %483 : vector<8xf32> to vector<8x1xf32>
    %cst_217 = arith.constant 3.906250e-03 : f32
    %485 = vector.broadcast %cst_217 : f32 to vector<8x1xf32>
    %486 = arith.mulf %484, %485 : vector<8x1xf32>
    %487 = arith.mulf %482, %482 : vector<8x256xf32>
    %cst_218 = arith.constant dense<0.000000e+00> : vector<8xf32>
    %488 = vector.multi_reduction <add>, %487, %cst_218 [1] : vector<8x256xf32> to vector<8xf32>
    %489 = vector.shape_cast %488 : vector<8xf32> to vector<8x1xf32>
    %cst_219 = arith.constant 3.906250e-03 : f32
    %490 = vector.broadcast %cst_219 : f32 to vector<8x1xf32>
    %491 = arith.mulf %489, %490 : vector<8x1xf32>
    %492 = arith.mulf %486, %486 : vector<8x1xf32>
    %493 = arith.subf %491, %492 : vector<8x1xf32>
    %cst_220 = arith.constant 0.000000e+00 : f32
    %494 = vector.broadcast %cst_220 : f32 to vector<8x1xf32>
    %495 = arith.maximumf %493, %494 : vector<8x1xf32>
    %cst_221 = arith.constant 9.99999974E-6 : f32
    %496 = vector.broadcast %cst_221 : f32 to vector<8x1xf32>
    %497 = arith.addf %495, %496 : vector<8x1xf32>
    %498 = math.rsqrt %497 : vector<8x1xf32>
    %499 = arith.mulf %479, %498 : vector<8x1xf32>
    %500 = arith.mulf %486, %499 : vector<8x1xf32>
    %501 = arith.subf %480, %500 : vector<8x1xf32>
    %502 = vector.broadcast %499 : vector<8x1xf32> to vector<8x256xf32>
    %503 = arith.mulf %482, %502 : vector<8x256xf32>
    %504 = vector.broadcast %501 : vector<8x1xf32> to vector<8x256xf32>
    %505 = arith.addf %503, %504 : vector<8x256xf32>
    %cst_222 = arith.constant 0.000000e+00 : f32
    %506 = vector.broadcast %cst_222 : f32 to vector<8x256xf32>
    %507 = arith.cmpf oge, %505, %506 : vector<8x256xf32>
    %508 = vector.broadcast %481 : vector<8x1xf32> to vector<8x256xf32>
    %509 = arith.mulf %508, %505 : vector<8x256xf32>
    %510 = arith.select %507, %505, %509 : vector<8x256xi1>, vector<8x256xf32>
    %511 = arith.truncf %510 : vector<8x256xf32> to vector<8x256xbf16>
    %c0_223 = arith.constant 0 : index
    %c128_224 = arith.constant 128 : index
    %512 = vector.load %arg8[%c0_223, %c128_224] : memref<32x1024xbf16, #tpu.memory_space<vmem>>, vector<8x256xbf16>
    tpu.vector_store %arg8[%c0_223, %c128_224], %511 {strides = array<i32>} : memref<32x1024xbf16, #tpu.memory_space<vmem>>, vector<8x256xbf16>,
    %513 = vector.extract_strided_slice %478 {offsets = [0, 256], sizes = [8, 256], strides = [1, 1]} : vector<8x512xf32> to vector<8x256xf32>
    %cst_225 = arith.constant dense<0.000000e+00> : vector<8xf32>
    %514 = vector.multi_reduction <add>, %513, %cst_225 [1] : vector<8x256xf32> to vector<8xf32>
    %515 = vector.shape_cast %514 : vector<8xf32> to vector<8x1xf32>
    %cst_226 = arith.constant 3.906250e-03 : f32
    %516 = vector.broadcast %cst_226 : f32 to vector<8x1xf32>
    %517 = arith.mulf %515, %516 : vector<8x1xf32>
    %518 = arith.mulf %513, %513 : vector<8x256xf32>
    %cst_227 = arith.constant dense<0.000000e+00> : vector<8xf32>
    %519 = vector.multi_reduction <add>, %518, %cst_227 [1] : vector<8x256xf32> to vector<8xf32>
    %520 = vector.shape_cast %519 : vector<8xf32> to vector<8x1xf32>
    %cst_228 = arith.constant 3.906250e-03 : f32
    %521 = vector.broadcast %cst_228 : f32 to vector<8x1xf32>
    %522 = arith.mulf %520, %521 : vector<8x1xf32>
    %523 = arith.mulf %517, %517 : vector<8x1xf32>
    %524 = arith.subf %522, %523 : vector<8x1xf32>
    %cst_229 = arith.constant 0.000000e+00 : f32
    %525 = vector.broadcast %cst_229 : f32 to vector<8x1xf32>
    %526 = arith.maximumf %524, %525 : vector<8x1xf32>
    %cst_230 = arith.constant 9.99999974E-6 : f32
    %527 = vector.broadcast %cst_230 : f32 to vector<8x1xf32>
    %528 = arith.addf %526, %527 : vector<8x1xf32>
    %529 = math.rsqrt %528 : vector<8x1xf32>
    %530 = arith.mulf %479, %529 : vector<8x1xf32>
    %531 = arith.mulf %517, %530 : vector<8x1xf32>
    %532 = arith.subf %480, %531 : vector<8x1xf32>
    %533 = vector.broadcast %530 : vector<8x1xf32> to vector<8x256xf32>
    %534 = arith.mulf %513, %533 : vector<8x256xf32>
    %535 = vector.broadcast %532 : vector<8x1xf32> to vector<8x256xf32>
    %536 = arith.addf %534, %535 : vector<8x256xf32>
    %cst_231 = arith.constant 0.000000e+00 : f32
    %537 = vector.broadcast %cst_231 : f32 to vector<8x256xf32>
    %538 = arith.cmpf oge, %536, %537 : vector<8x256xf32>
    %539 = vector.broadcast %481 : vector<8x1xf32> to vector<8x256xf32>
    %540 = arith.mulf %539, %536 : vector<8x256xf32>
    %541 = arith.select %538, %536, %540 : vector<8x256xi1>, vector<8x256xf32>
    %542 = arith.truncf %541 : vector<8x256xf32> to vector<8x256xbf16>
    %c0_232 = arith.constant 0 : index
    %c640_233 = arith.constant 640 : index
    %543 = vector.load %arg8[%c0_232, %c640_233] : memref<32x1024xbf16, #tpu.memory_space<vmem>>, vector<8x256xbf16>
    tpu.vector_store %arg8[%c0_232, %c640_233], %542 {strides = array<i32>} : memref<32x1024xbf16, #tpu.memory_space<vmem>>, vector<8x256xbf16>,
    %c0_234 = arith.constant 0 : index
    %c0_235 = arith.constant 0 : index
    %544 = vector.load %arg8[%c0_234, %c0_235] : memref<32x1024xbf16, #tpu.memory_space<vmem>>, vector<32x256xbf16>
    %cst_236 = arith.constant 0.000000e+00 : bf16
    %545 = vector.broadcast %cst_236 : bf16 to vector<32x256xbf16>
    %546 = vector.extract_strided_slice %544 {offsets = [0, 255], sizes = [32, 1], strides = [1, 1]} : vector<32x256xbf16> to vector<32x1xbf16>
    %547 = vector.extract_strided_slice %544 {offsets = [0, 0], sizes = [32, 255], strides = [1, 1]} : vector<32x256xbf16> to vector<32x255xbf16>
    %548 = tpu.concatenate %546, %547 in 1 : vector<32x1xbf16>, vector<32x255xbf16> -> vector<32x256xbf16>
    %549 = vector.shape_cast %31 : vector<1x256xi1> to vector<1x256xi1>
    %550 = vector.broadcast %549 : vector<1x256xi1> to vector<32x256xi1>
    %551 = arith.select %550, %548, %545 : vector<32x256xi1>, vector<32x256xbf16>
    %552 = vector.extract_strided_slice %544 {offsets = [0, 1], sizes = [32, 255], strides = [1, 1]} : vector<32x256xbf16> to vector<32x255xbf16>
    %553 = vector.extract_strided_slice %544 {offsets = [0, 0], sizes = [32, 1], strides = [1, 1]} : vector<32x256xbf16> to vector<32x1xbf16>
    %554 = tpu.concatenate %552, %553 in 1 : vector<32x255xbf16>, vector<32x1xbf16> -> vector<32x256xbf16>
    %555 = vector.shape_cast %33 : vector<1x256xi1> to vector<1x256xi1>
    %556 = vector.broadcast %555 : vector<1x256xi1> to vector<32x256xi1>
    %557 = arith.select %556, %554, %545 : vector<32x256xi1>, vector<32x256xbf16>
    %c0_237 = arith.constant 0 : index
    %c0_238 = arith.constant 0 : index
    %558 = vector.load %arg9[%c0_237, %c0_238] : memref<288x512xbf16, #tpu.memory_space<vmem>>, vector<32x256xbf16>
    tpu.vector_store %arg9[%c0_237, %c0_238], %551 {strides = array<i32>} : memref<288x512xbf16, #tpu.memory_space<vmem>>, vector<32x256xbf16>,
    %c32_239 = arith.constant 32 : index
    %c0_240 = arith.constant 0 : index
    %559 = vector.load %arg9[%c32_239, %c0_240] : memref<288x512xbf16, #tpu.memory_space<vmem>>, vector<32x256xbf16>
    tpu.vector_store %arg9[%c32_239, %c0_240], %544 {strides = array<i32>} : memref<288x512xbf16, #tpu.memory_space<vmem>>, vector<32x256xbf16>,
    %c64_241 = arith.constant 64 : index
    %c0_242 = arith.constant 0 : index
    %560 = vector.load %arg9[%c64_241, %c0_242] : memref<288x512xbf16, #tpu.memory_space<vmem>>, vector<32x256xbf16>
    tpu.vector_store %arg9[%c64_241, %c0_242], %557 {strides = array<i32>} : memref<288x512xbf16, #tpu.memory_space<vmem>>, vector<32x256xbf16>,
    %c0_243 = arith.constant 0 : index
    %c128_244 = arith.constant 128 : index
    %561 = vector.load %arg8[%c0_243, %c128_244] : memref<32x1024xbf16, #tpu.memory_space<vmem>>, vector<32x256xbf16>
    %cst_245 = arith.constant 0.000000e+00 : bf16
    %562 = vector.broadcast %cst_245 : bf16 to vector<32x256xbf16>
    %563 = vector.extract_strided_slice %561 {offsets = [0, 255], sizes = [32, 1], strides = [1, 1]} : vector<32x256xbf16> to vector<32x1xbf16>
    %564 = vector.extract_strided_slice %561 {offsets = [0, 0], sizes = [32, 255], strides = [1, 1]} : vector<32x256xbf16> to vector<32x255xbf16>
    %565 = tpu.concatenate %563, %564 in 1 : vector<32x1xbf16>, vector<32x255xbf16> -> vector<32x256xbf16>
    %566 = vector.shape_cast %31 : vector<1x256xi1> to vector<1x256xi1>
    %567 = vector.broadcast %566 : vector<1x256xi1> to vector<32x256xi1>
    %568 = arith.select %567, %565, %562 : vector<32x256xi1>, vector<32x256xbf16>
    %569 = vector.extract_strided_slice %561 {offsets = [0, 1], sizes = [32, 255], strides = [1, 1]} : vector<32x256xbf16> to vector<32x255xbf16>
    %570 = vector.extract_strided_slice %561 {offsets = [0, 0], sizes = [32, 1], strides = [1, 1]} : vector<32x256xbf16> to vector<32x1xbf16>
    %571 = tpu.concatenate %569, %570 in 1 : vector<32x255xbf16>, vector<32x1xbf16> -> vector<32x256xbf16>
    %572 = vector.shape_cast %33 : vector<1x256xi1> to vector<1x256xi1>
    %573 = vector.broadcast %572 : vector<1x256xi1> to vector<32x256xi1>
    %574 = arith.select %573, %571, %562 : vector<32x256xi1>, vector<32x256xbf16>
    %c96_246 = arith.constant 96 : index
    %c0_247 = arith.constant 0 : index
    %575 = vector.load %arg9[%c96_246, %c0_247] : memref<288x512xbf16, #tpu.memory_space<vmem>>, vector<32x256xbf16>
    tpu.vector_store %arg9[%c96_246, %c0_247], %568 {strides = array<i32>} : memref<288x512xbf16, #tpu.memory_space<vmem>>, vector<32x256xbf16>,
    %c128_248 = arith.constant 128 : index
    %c0_249 = arith.constant 0 : index
    %576 = vector.load %arg9[%c128_248, %c0_249] : memref<288x512xbf16, #tpu.memory_space<vmem>>, vector<32x256xbf16>
    tpu.vector_store %arg9[%c128_248, %c0_249], %561 {strides = array<i32>} : memref<288x512xbf16, #tpu.memory_space<vmem>>, vector<32x256xbf16>,
    %c160_250 = arith.constant 160 : index
    %c0_251 = arith.constant 0 : index
    %577 = vector.load %arg9[%c160_250, %c0_251] : memref<288x512xbf16, #tpu.memory_space<vmem>>, vector<32x256xbf16>
    tpu.vector_store %arg9[%c160_250, %c0_251], %574 {strides = array<i32>} : memref<288x512xbf16, #tpu.memory_space<vmem>>, vector<32x256xbf16>,
    %c0_252 = arith.constant 0 : index
    %c256_253 = arith.constant 256 : index
    %578 = vector.load %arg8[%c0_252, %c256_253] : memref<32x1024xbf16, #tpu.memory_space<vmem>>, vector<32x256xbf16>
    %cst_254 = arith.constant 0.000000e+00 : bf16
    %579 = vector.broadcast %cst_254 : bf16 to vector<32x256xbf16>
    %580 = vector.extract_strided_slice %578 {offsets = [0, 255], sizes = [32, 1], strides = [1, 1]} : vector<32x256xbf16> to vector<32x1xbf16>
    %581 = vector.extract_strided_slice %578 {offsets = [0, 0], sizes = [32, 255], strides = [1, 1]} : vector<32x256xbf16> to vector<32x255xbf16>
    %582 = tpu.concatenate %580, %581 in 1 : vector<32x1xbf16>, vector<32x255xbf16> -> vector<32x256xbf16>
    %583 = vector.shape_cast %31 : vector<1x256xi1> to vector<1x256xi1>
    %584 = vector.broadcast %583 : vector<1x256xi1> to vector<32x256xi1>
    %585 = arith.select %584, %582, %579 : vector<32x256xi1>, vector<32x256xbf16>
    %586 = vector.extract_strided_slice %578 {offsets = [0, 1], sizes = [32, 255], strides = [1, 1]} : vector<32x256xbf16> to vector<32x255xbf16>
    %587 = vector.extract_strided_slice %578 {offsets = [0, 0], sizes = [32, 1], strides = [1, 1]} : vector<32x256xbf16> to vector<32x1xbf16>
    %588 = tpu.concatenate %586, %587 in 1 : vector<32x255xbf16>, vector<32x1xbf16> -> vector<32x256xbf16>
    %589 = vector.shape_cast %33 : vector<1x256xi1> to vector<1x256xi1>
    %590 = vector.broadcast %589 : vector<1x256xi1> to vector<32x256xi1>
    %591 = arith.select %590, %588, %579 : vector<32x256xi1>, vector<32x256xbf16>
    %c192_255 = arith.constant 192 : index
    %c0_256 = arith.constant 0 : index
    %592 = vector.load %arg9[%c192_255, %c0_256] : memref<288x512xbf16, #tpu.memory_space<vmem>>, vector<32x256xbf16>
    tpu.vector_store %arg9[%c192_255, %c0_256], %585 {strides = array<i32>} : memref<288x512xbf16, #tpu.memory_space<vmem>>, vector<32x256xbf16>,
    %c224 = arith.constant 224 : index
    %c0_257 = arith.constant 0 : index
    %593 = vector.load %arg9[%c224, %c0_257] : memref<288x512xbf16, #tpu.memory_space<vmem>>, vector<32x256xbf16>
    tpu.vector_store %arg9[%c224, %c0_257], %578 {strides = array<i32>} : memref<288x512xbf16, #tpu.memory_space<vmem>>, vector<32x256xbf16>,
    %c256_258 = arith.constant 256 : index
    %c0_259 = arith.constant 0 : index
    %594 = vector.load %arg9[%c256_258, %c0_259] : memref<288x512xbf16, #tpu.memory_space<vmem>>, vector<32x256xbf16>
    tpu.vector_store %arg9[%c256_258, %c0_259], %591 {strides = array<i32>} : memref<288x512xbf16, #tpu.memory_space<vmem>>, vector<32x256xbf16>,
    %c0_260 = arith.constant 0 : index
    %c512_261 = arith.constant 512 : index
    %595 = vector.load %arg8[%c0_260, %c512_261] : memref<32x1024xbf16, #tpu.memory_space<vmem>>, vector<32x256xbf16>
    %cst_262 = arith.constant 0.000000e+00 : bf16
    %596 = vector.broadcast %cst_262 : bf16 to vector<32x256xbf16>
    %597 = vector.extract_strided_slice %595 {offsets = [0, 255], sizes = [32, 1], strides = [1, 1]} : vector<32x256xbf16> to vector<32x1xbf16>
    %598 = vector.extract_strided_slice %595 {offsets = [0, 0], sizes = [32, 255], strides = [1, 1]} : vector<32x256xbf16> to vector<32x255xbf16>
    %599 = tpu.concatenate %597, %598 in 1 : vector<32x1xbf16>, vector<32x255xbf16> -> vector<32x256xbf16>
    %600 = vector.shape_cast %31 : vector<1x256xi1> to vector<1x256xi1>
    %601 = vector.broadcast %600 : vector<1x256xi1> to vector<32x256xi1>
    %602 = arith.select %601, %599, %596 : vector<32x256xi1>, vector<32x256xbf16>
    %603 = vector.extract_strided_slice %595 {offsets = [0, 1], sizes = [32, 255], strides = [1, 1]} : vector<32x256xbf16> to vector<32x255xbf16>
    %604 = vector.extract_strided_slice %595 {offsets = [0, 0], sizes = [32, 1], strides = [1, 1]} : vector<32x256xbf16> to vector<32x1xbf16>
    %605 = tpu.concatenate %603, %604 in 1 : vector<32x255xbf16>, vector<32x1xbf16> -> vector<32x256xbf16>
    %606 = vector.shape_cast %33 : vector<1x256xi1> to vector<1x256xi1>
    %607 = vector.broadcast %606 : vector<1x256xi1> to vector<32x256xi1>
    %608 = arith.select %607, %605, %596 : vector<32x256xi1>, vector<32x256xbf16>
    %c0_263 = arith.constant 0 : index
    %c256_264 = arith.constant 256 : index
    %609 = vector.load %arg9[%c0_263, %c256_264] : memref<288x512xbf16, #tpu.memory_space<vmem>>, vector<32x256xbf16>
    tpu.vector_store %arg9[%c0_263, %c256_264], %602 {strides = array<i32>} : memref<288x512xbf16, #tpu.memory_space<vmem>>, vector<32x256xbf16>,
    %c32_265 = arith.constant 32 : index
    %c256_266 = arith.constant 256 : index
    %610 = vector.load %arg9[%c32_265, %c256_266] : memref<288x512xbf16, #tpu.memory_space<vmem>>, vector<32x256xbf16>
    tpu.vector_store %arg9[%c32_265, %c256_266], %595 {strides = array<i32>} : memref<288x512xbf16, #tpu.memory_space<vmem>>, vector<32x256xbf16>,
    %c64_267 = arith.constant 64 : index
    %c256_268 = arith.constant 256 : index
    %611 = vector.load %arg9[%c64_267, %c256_268] : memref<288x512xbf16, #tpu.memory_space<vmem>>, vector<32x256xbf16>
    tpu.vector_store %arg9[%c64_267, %c256_268], %608 {strides = array<i32>} : memref<288x512xbf16, #tpu.memory_space<vmem>>, vector<32x256xbf16>,
    %c0_269 = arith.constant 0 : index
    %c640_270 = arith.constant 640 : index
    %612 = vector.load %arg8[%c0_269, %c640_270] : memref<32x1024xbf16, #tpu.memory_space<vmem>>, vector<32x256xbf16>
    %cst_271 = arith.constant 0.000000e+00 : bf16
    %613 = vector.broadcast %cst_271 : bf16 to vector<32x256xbf16>
    %614 = vector.extract_strided_slice %612 {offsets = [0, 255], sizes = [32, 1], strides = [1, 1]} : vector<32x256xbf16> to vector<32x1xbf16>
    %615 = vector.extract_strided_slice %612 {offsets = [0, 0], sizes = [32, 255], strides = [1, 1]} : vector<32x256xbf16> to vector<32x255xbf16>
    %616 = tpu.concatenate %614, %615 in 1 : vector<32x1xbf16>, vector<32x255xbf16> -> vector<32x256xbf16>
    %617 = vector.shape_cast %31 : vector<1x256xi1> to vector<1x256xi1>
    %618 = vector.broadcast %617 : vector<1x256xi1> to vector<32x256xi1>
    %619 = arith.select %618, %616, %613 : vector<32x256xi1>, vector<32x256xbf16>
    %620 = vector.extract_strided_slice %612 {offsets = [0, 1], sizes = [32, 255], strides = [1, 1]} : vector<32x256xbf16> to vector<32x255xbf16>
    %621 = vector.extract_strided_slice %612 {offsets = [0, 0], sizes = [32, 1], strides = [1, 1]} : vector<32x256xbf16> to vector<32x1xbf16>
    %622 = tpu.concatenate %620, %621 in 1 : vector<32x255xbf16>, vector<32x1xbf16> -> vector<32x256xbf16>
    %623 = vector.shape_cast %33 : vector<1x256xi1> to vector<1x256xi1>
    %624 = vector.broadcast %623 : vector<1x256xi1> to vector<32x256xi1>
    %625 = arith.select %624, %622, %613 : vector<32x256xi1>, vector<32x256xbf16>
    %c96_272 = arith.constant 96 : index
    %c256_273 = arith.constant 256 : index
    %626 = vector.load %arg9[%c96_272, %c256_273] : memref<288x512xbf16, #tpu.memory_space<vmem>>, vector<32x256xbf16>
    tpu.vector_store %arg9[%c96_272, %c256_273], %619 {strides = array<i32>} : memref<288x512xbf16, #tpu.memory_space<vmem>>, vector<32x256xbf16>,
    %c128_274 = arith.constant 128 : index
    %c256_275 = arith.constant 256 : index
    %627 = vector.load %arg9[%c128_274, %c256_275] : memref<288x512xbf16, #tpu.memory_space<vmem>>, vector<32x256xbf16>
    tpu.vector_store %arg9[%c128_274, %c256_275], %612 {strides = array<i32>} : memref<288x512xbf16, #tpu.memory_space<vmem>>, vector<32x256xbf16>,
    %c160_276 = arith.constant 160 : index
    %c256_277 = arith.constant 256 : index
    %628 = vector.load %arg9[%c160_276, %c256_277] : memref<288x512xbf16, #tpu.memory_space<vmem>>, vector<32x256xbf16>
    tpu.vector_store %arg9[%c160_276, %c256_277], %625 {strides = array<i32>} : memref<288x512xbf16, #tpu.memory_space<vmem>>, vector<32x256xbf16>,
    %c0_278 = arith.constant 0 : index
    %c768 = arith.constant 768 : index
    %629 = vector.load %arg8[%c0_278, %c768] : memref<32x1024xbf16, #tpu.memory_space<vmem>>, vector<32x256xbf16>
    %cst_279 = arith.constant 0.000000e+00 : bf16
    %630 = vector.broadcast %cst_279 : bf16 to vector<32x256xbf16>
    %631 = vector.extract_strided_slice %629 {offsets = [0, 255], sizes = [32, 1], strides = [1, 1]} : vector<32x256xbf16> to vector<32x1xbf16>
    %632 = vector.extract_strided_slice %629 {offsets = [0, 0], sizes = [32, 255], strides = [1, 1]} : vector<32x256xbf16> to vector<32x255xbf16>
    %633 = tpu.concatenate %631, %632 in 1 : vector<32x1xbf16>, vector<32x255xbf16> -> vector<32x256xbf16>
    %634 = vector.shape_cast %31 : vector<1x256xi1> to vector<1x256xi1>
    %635 = vector.broadcast %634 : vector<1x256xi1> to vector<32x256xi1>
    %636 = arith.select %635, %633, %630 : vector<32x256xi1>, vector<32x256xbf16>
    %637 = vector.extract_strided_slice %629 {offsets = [0, 1], sizes = [32, 255], strides = [1, 1]} : vector<32x256xbf16> to vector<32x255xbf16>
    %638 = vector.extract_strided_slice %629 {offsets = [0, 0], sizes = [32, 1], strides = [1, 1]} : vector<32x256xbf16> to vector<32x1xbf16>
    %639 = tpu.concatenate %637, %638 in 1 : vector<32x255xbf16>, vector<32x1xbf16> -> vector<32x256xbf16>
    %640 = vector.shape_cast %33 : vector<1x256xi1> to vector<1x256xi1>
    %641 = vector.broadcast %640 : vector<1x256xi1> to vector<32x256xi1>
    %642 = arith.select %641, %639, %630 : vector<32x256xi1>, vector<32x256xbf16>
    %c192_280 = arith.constant 192 : index
    %c256_281 = arith.constant 256 : index
    %643 = vector.load %arg9[%c192_280, %c256_281] : memref<288x512xbf16, #tpu.memory_space<vmem>>, vector<32x256xbf16>
    tpu.vector_store %arg9[%c192_280, %c256_281], %636 {strides = array<i32>} : memref<288x512xbf16, #tpu.memory_space<vmem>>, vector<32x256xbf16>,
    %c224_282 = arith.constant 224 : index
    %c256_283 = arith.constant 256 : index
    %644 = vector.load %arg9[%c224_282, %c256_283] : memref<288x512xbf16, #tpu.memory_space<vmem>>, vector<32x256xbf16>
    tpu.vector_store %arg9[%c224_282, %c256_283], %629 {strides = array<i32>} : memref<288x512xbf16, #tpu.memory_space<vmem>>, vector<32x256xbf16>,
    %c256_284 = arith.constant 256 : index
    %c256_285 = arith.constant 256 : index
    %645 = vector.load %arg9[%c256_284, %c256_285] : memref<288x512xbf16, #tpu.memory_space<vmem>>, vector<32x256xbf16>
    tpu.vector_store %arg9[%c256_284, %c256_285], %642 {strides = array<i32>} : memref<288x512xbf16, #tpu.memory_space<vmem>>, vector<32x256xbf16>,
    %c0_286 = arith.constant 0 : index
    %c0_287 = arith.constant 0 : index
    %646 = vector.load %arg9[%c0_286, %c0_287] : memref<288x512xbf16, #tpu.memory_space<vmem>>, vector<288x512xbf16>
    %c0_288 = arith.constant 0 : index
    %c0_289 = arith.constant 0 : index
    %647 = vector.load %arg5[%c0_288, %c0_289] : memref<8x288xbf16, #tpu.memory_space<vmem>>, vector<8x288xbf16>
    %cst_290 = arith.constant dense<0.000000e+00> : vector<8x512xf32>
    %648 = tpu.matmul %647, %646, %cst_290 {dimension_numbers = #tpu.dot_dimension_numbers<[1], [0], [0], [1], [0, 0, 1, 1], [], []>} : vector<8x288xbf16>, vector<288x512xbf16>, vector<8x512xf32> -> vector<8x512xf32>
    %c0_291 = arith.constant 0 : index
    %c9 = arith.constant 9 : index
    %649 = vector.load %arg6[%c0_291, %c9] : memref<8x12xf32, #tpu.memory_space<vmem>>, vector<8x1xf32>
    %c0_292 = arith.constant 0 : index
    %c10 = arith.constant 10 : index
    %650 = vector.load %arg6[%c0_292, %c10] : memref<8x12xf32, #tpu.memory_space<vmem>>, vector<8x1xf32>
    %c0_293 = arith.constant 0 : index
    %c11 = arith.constant 11 : index
    %651 = vector.load %arg6[%c0_293, %c11] : memref<8x12xf32, #tpu.memory_space<vmem>>, vector<8x1xf32>
    %652 = vector.extract_strided_slice %648 {offsets = [0, 0], sizes = [8, 256], strides = [1, 1]} : vector<8x512xf32> to vector<8x256xf32>
    %cst_294 = arith.constant dense<0.000000e+00> : vector<8xf32>
    %653 = vector.multi_reduction <add>, %652, %cst_294 [1] : vector<8x256xf32> to vector<8xf32>
    %654 = vector.shape_cast %653 : vector<8xf32> to vector<8x1xf32>
    %cst_295 = arith.constant 3.906250e-03 : f32
    %655 = vector.broadcast %cst_295 : f32 to vector<8x1xf32>
    %656 = arith.mulf %654, %655 : vector<8x1xf32>
    %657 = arith.mulf %652, %652 : vector<8x256xf32>
    %cst_296 = arith.constant dense<0.000000e+00> : vector<8xf32>
    %658 = vector.multi_reduction <add>, %657, %cst_296 [1] : vector<8x256xf32> to vector<8xf32>
    %659 = vector.shape_cast %658 : vector<8xf32> to vector<8x1xf32>
    %cst_297 = arith.constant 3.906250e-03 : f32
    %660 = vector.broadcast %cst_297 : f32 to vector<8x1xf32>
    %661 = arith.mulf %659, %660 : vector<8x1xf32>
    %662 = arith.mulf %656, %656 : vector<8x1xf32>
    %663 = arith.subf %661, %662 : vector<8x1xf32>
    %cst_298 = arith.constant 0.000000e+00 : f32
    %664 = vector.broadcast %cst_298 : f32 to vector<8x1xf32>
    %665 = arith.maximumf %663, %664 : vector<8x1xf32>
    %cst_299 = arith.constant 9.99999974E-6 : f32
    %666 = vector.broadcast %cst_299 : f32 to vector<8x1xf32>
    %667 = arith.addf %665, %666 : vector<8x1xf32>
    %668 = math.rsqrt %667 : vector<8x1xf32>
    %669 = arith.mulf %649, %668 : vector<8x1xf32>
    %670 = arith.mulf %656, %669 : vector<8x1xf32>
    %671 = arith.subf %650, %670 : vector<8x1xf32>
    %672 = vector.broadcast %669 : vector<8x1xf32> to vector<8x256xf32>
    %673 = arith.mulf %652, %672 : vector<8x256xf32>
    %674 = vector.broadcast %671 : vector<8x1xf32> to vector<8x256xf32>
    %675 = arith.addf %673, %674 : vector<8x256xf32>
    %cst_300 = arith.constant 0.000000e+00 : f32
    %676 = vector.broadcast %cst_300 : f32 to vector<8x256xf32>
    %677 = arith.cmpf oge, %675, %676 : vector<8x256xf32>
    %678 = vector.broadcast %651 : vector<8x1xf32> to vector<8x256xf32>
    %679 = arith.mulf %678, %675 : vector<8x256xf32>
    %680 = arith.select %677, %675, %679 : vector<8x256xi1>, vector<8x256xf32>
    %c0_301 = arith.constant 0 : index
    %c0_302 = arith.constant 0 : index
    %c0_303 = arith.constant 0 : index
    %681 = vector.load %arg7[%c0_301, %c0_302, %c0_303] : memref<2x8x256xf32, #tpu.memory_space<vmem>>, vector<1x8x256xf32>
    %682 = vector.shape_cast %681 : vector<1x8x256xf32> to vector<8x256xf32>
    %683 = vector.shape_cast %680 : vector<8x256xf32> to vector<1x8x256xf32>
    tpu.vector_store %arg7[%c0_301, %c0_302, %c0_303], %683 {strides = array<i32>} : memref<2x8x256xf32, #tpu.memory_space<vmem>>, vector<1x8x256xf32>,
    %684 = vector.extract_strided_slice %648 {offsets = [0, 256], sizes = [8, 256], strides = [1, 1]} : vector<8x512xf32> to vector<8x256xf32>
    %cst_304 = arith.constant dense<0.000000e+00> : vector<8xf32>
    %685 = vector.multi_reduction <add>, %684, %cst_304 [1] : vector<8x256xf32> to vector<8xf32>
    %686 = vector.shape_cast %685 : vector<8xf32> to vector<8x1xf32>
    %cst_305 = arith.constant 3.906250e-03 : f32
    %687 = vector.broadcast %cst_305 : f32 to vector<8x1xf32>
    %688 = arith.mulf %686, %687 : vector<8x1xf32>
    %689 = arith.mulf %684, %684 : vector<8x256xf32>
    %cst_306 = arith.constant dense<0.000000e+00> : vector<8xf32>
    %690 = vector.multi_reduction <add>, %689, %cst_306 [1] : vector<8x256xf32> to vector<8xf32>
    %691 = vector.shape_cast %690 : vector<8xf32> to vector<8x1xf32>
    %cst_307 = arith.constant 3.906250e-03 : f32
    %692 = vector.broadcast %cst_307 : f32 to vector<8x1xf32>
    %693 = arith.mulf %691, %692 : vector<8x1xf32>
    %694 = arith.mulf %688, %688 : vector<8x1xf32>
    %695 = arith.subf %693, %694 : vector<8x1xf32>
    %cst_308 = arith.constant 0.000000e+00 : f32
    %696 = vector.broadcast %cst_308 : f32 to vector<8x1xf32>
    %697 = arith.maximumf %695, %696 : vector<8x1xf32>
    %cst_309 = arith.constant 9.99999974E-6 : f32
    %698 = vector.broadcast %cst_309 : f32 to vector<8x1xf32>
    %699 = arith.addf %697, %698 : vector<8x1xf32>
    %700 = math.rsqrt %699 : vector<8x1xf32>
    %701 = arith.mulf %649, %700 : vector<8x1xf32>
    %702 = arith.mulf %688, %701 : vector<8x1xf32>
    %703 = arith.subf %650, %702 : vector<8x1xf32>
    %704 = vector.broadcast %701 : vector<8x1xf32> to vector<8x256xf32>
    %705 = arith.mulf %684, %704 : vector<8x256xf32>
    %706 = vector.broadcast %703 : vector<8x1xf32> to vector<8x256xf32>
    %707 = arith.addf %705, %706 : vector<8x256xf32>
    %cst_310 = arith.constant 0.000000e+00 : f32
    %708 = vector.broadcast %cst_310 : f32 to vector<8x256xf32>
    %709 = arith.cmpf oge, %707, %708 : vector<8x256xf32>
    %710 = vector.broadcast %651 : vector<8x1xf32> to vector<8x256xf32>
    %711 = arith.mulf %710, %707 : vector<8x256xf32>
    %712 = arith.select %709, %707, %711 : vector<8x256xi1>, vector<8x256xf32>
    %c1_311 = arith.constant 1 : index
    %c0_312 = arith.constant 0 : index
    %c0_313 = arith.constant 0 : index
    %713 = vector.load %arg7[%c1_311, %c0_312, %c0_313] : memref<2x8x256xf32, #tpu.memory_space<vmem>>, vector<1x8x256xf32>
    %714 = vector.shape_cast %713 : vector<1x8x256xf32> to vector<8x256xf32>
    %715 = vector.shape_cast %712 : vector<8x256xf32> to vector<1x8x256xf32>
    tpu.vector_store %arg7[%c1_311, %c0_312, %c0_313], %715 {strides = array<i32>} : memref<2x8x256xf32, #tpu.memory_space<vmem>>, vector<1x8x256xf32>,
    return
  }
  func.func @transform_0(%arg0: i32) -> (i32, i32, i32) {
    %c0_i32 = arith.constant 0 : i32
    %c0_i32_0 = arith.constant 0 : i32
    %c0_i32_1 = arith.constant 0 : i32
    return %arg0, %c0_i32, %c0_i32_0 : i32, i32, i32
  }
  func.func @transform_1(%arg0: i32) -> (i32, i32) {
    %c0_i32 = arith.constant 0 : i32
    %c0_i32_0 = arith.constant 0 : i32
    %c0_i32_1 = arith.constant 0 : i32
    return %c0_i32, %c0_i32_0 : i32, i32
  }
  func.func @transform_2(%arg0: i32) -> (i32, i32) {
    %c0_i32 = arith.constant 0 : i32
    %c0_i32_0 = arith.constant 0 : i32
    %c0_i32_1 = arith.constant 0 : i32
    return %c0_i32, %c0_i32_0 : i32, i32
  }
  func.func @transform_3(%arg0: i32) -> (i32, i32) {
    %c0_i32 = arith.constant 0 : i32
    %c0_i32_0 = arith.constant 0 : i32
    %c0_i32_1 = arith.constant 0 : i32
    return %c0_i32, %c0_i32_0 : i32, i32
  }
  func.func @transform_4(%arg0: i32) -> (i32, i32) {
    %c0_i32 = arith.constant 0 : i32
    %c0_i32_0 = arith.constant 0 : i32
    %c0_i32_1 = arith.constant 0 : i32
    return %c0_i32, %c0_i32_0 : i32, i32
  }
  func.func @transform_5(%arg0: i32) -> (i32, i32) {
    %c0_i32 = arith.constant 0 : i32
    %c0_i32_0 = arith.constant 0 : i32
    %c0_i32_1 = arith.constant 0 : i32
    return %c0_i32, %c0_i32_0 : i32, i32
  }
  func.func @transform_6(%arg0: i32) -> (i32, i32, i32) {
    %c0_i32 = arith.constant 0 : i32
    %c0_i32_0 = arith.constant 0 : i32
    %c0_i32_1 = arith.constant 0 : i32
    return %arg0, %c0_i32, %c0_i32_0 : i32, i32, i32
  }
}

</mosaic_0001>

<llo_original>
// kernel: tpu_custom_call.1
$region0: #{tpu_custom_call.1}
  #allocation0 [shape = 'u32[]', space=smem, size = 0x4, offset = 0x4, fixed_abs, tag = 'smem constant byte address 0x4 - core index']
  #allocation1 [shape = 'u32[144,128]{1,0:T(1,128)}', space=vmem, size = 0x12000, scoped, tag = 'internal scratch']
  #allocation2 [shape = 'bf16[32,1024]{1,0:T(16,128)(2,1)}', space=vmem, size = 0x10000, scoped, tag = 'scratch operand']
  #allocation3 [shape = 'bf16[288,512]{1,0:T(16,128)(2,1)}', space=vmem, size = 0x48000, scoped, tag = 'scratch operand']
  %s0 = inlined_call_operand.hbm [shape: f32[4,8,256], index: 0, kind: input, shape index: {}]
  %s1 = inlined_call_operand.hbm [shape: bf16[8,72], index: 1, kind: input, shape index: {}]
  %s2 = inlined_call_operand.hbm [shape: bf16[8,144], index: 2, kind: input, shape index: {}]
  %s3 = inlined_call_operand.hbm [shape: bf16[8,216], index: 3, kind: input, shape index: {}]
  %s4 = inlined_call_operand.vmem [shape: bf16[8,288], index: 4, kind: input, shape index: {}]
  %s5 = inlined_call_operand.hbm [shape: f32[8,12], index: 5, kind: input, shape index: {}]
  %s6 = inlined_call_operand.hbm [shape: f32[4,8,256], index: 6, kind: output, shape index: {}]
  %s7 = sld [smem:[#allocation0]]
  $region77: #{tpu_custom_call.1} parent=0
    _
  %s9 = ssub.s32 1, %s7
  %s10 = scalar_select 0, %s9, %s7
  $region1: #{tpu_custom_call.1} parent=0
    #allocation4 [shape = 'u8[32768]{0}', space=vmem, size = 0x8000, scoped, tag = 'input window, operand 0']
    #allocation5 [shape = 's32[2]{0}', space=sflag, size = 0x8, scoped, tag = 'scoped memory for tpu_custom_call.1']
    #allocation6 [shape = 's32[2]{0}', space=sflag, size = 0x8, scoped, tag = 'scoped memory for tpu_custom_call.1']
    #allocation7 [shape = 'u8[2048]{0}', space=vmem, size = 0x800, scoped, tag = 'input window, operand 1, single buffered']
    #allocation8 [shape = 's32[1]{0}', space=sflag, size = 0x4, scoped, tag = 'scoped memory for tpu_custom_call.1']
    #allocation9 [shape = 'u8[4096]{0}', space=vmem, size = 0x1000, scoped, tag = 'input window, operand 2, single buffered']
    #allocation10 [shape = 'u8[4096]{0}', space=vmem, size = 0x1000, scoped, tag = 'input window, operand 3, single buffered']
    #allocation11 [shape = 's32[1]{0}', space=sflag, size = 0x4, scoped, tag = 'scoped memory for tpu_custom_call.1']
    #allocation12 [shape = 'u8[4096]{0}', space=vmem, size = 0x1000, scoped, tag = 'input window, operand 5, single buffered']
    #allocation13 [shape = 'u8[32768]{0}', space=vmem, size = 0x8000, scoped, tag = 'output window, operand 0']
    %11 = vsyncpa [#allocation5], 0
    %s12 = scalar_lea.sflag [#allocation5], 1
    %13 = vsyncpa %s12, 0
    %14 = vsyncpa [#allocation8], 0
    %15 = vsyncpa [#allocation11], 0
    %16 = vsyncpa [#allocation6], 0
    %s17 = scalar_lea.sflag [#allocation6], 1
    %18 = vsyncpa %s17, 0
    loop: start=0, step=1, limit=4
    $region2: #{tpu_custom_call.1} parent=1 // loop_pre_header
      _
    $region3: #{tpu_custom_call.1} parent=1 // loop_header
      %s20 = sphi 0, %s24
      %p21 = scmp.ge.s32.totalorder %s20, 4
      %s30 = sphi 0, %s32
      %s33 = sphi 0, %s30
      %s34 = sphi 0, %s33
      %s50 = sphi 0, %s34
      %s54 = sphi 0, %s54
      %s56 = sphi 0, %s54
      %s57 = sphi 0, %s56
      %s71 = sphi 0, %s57
      %s75 = sphi 0, %s75
      %s77 = sphi 0, %s75
      %s78 = sphi 0, %s77
      %s92 = sphi 0, %s78
      %s96 = sphi 0, %s96
      %s98 = sphi 0, %s96
      %s99 = sphi 0, %s98
      %s113 = sphi 0, %s99
      %s117 = sphi 0, %s117
      %s119 = sphi 0, %s117
      %s120 = sphi 0, %s119
      %s134 = sphi 0, %s120
      %s138 = sphi 0, %s138
      %s140 = sphi 0, %s138
      %s141 = sphi 0, %s140
      %s155 = sphi 0, %s141
      %s161 = sphi 0, %s163
      %s164 = sphi 0, %s161
      %s165 = sphi 0, %s164
      %s181 = sphi 0, %s165
    $region4: #{tpu_custom_call.1} parent=1 // loop_header_branch
      %23 = sbr.rel (%p21) target = $region8
    $region5: #{tpu_custom_call.1} parent=1 // loop_body
      %s25 = ssub.s32 %s20, 1
      %s26 = ssub.s32 %s20, 2
      %s27 = sadd.s32 %s20, 1
      %s28 = ssub.s32 %s20, %s27
      %p29 = scmp.eq.s32.totalorder %s28, 0
      %s31 = sadd.s32 %s30, 1
      %s32 = scalar_select %p29, %s30, %s31
      %p35 = pneg %p29
      %p36 = scmp.eq.s32.totalorder %s20, 1
      %p37 = por %p35, %p36
      %p38 = scmp.ne.s32.totalorder %s30, %s33
      %p39 = scmp.eq.s32.totalorder %s20, 0
      %p40 = por %p38, %p39
      %p41 = scmp.ne.s32.totalorder %s30, %s33
      %p42 = scmp.eq.s32.totalorder %s25, 1
      %p43 = por %p41, %p42
      %p44 = scmp.ne.s32.totalorder %s33, %s34
      %p45 = scmp.eq.s32.totalorder %s25, 0
      %p46 = por %p44, %p45
      %p47 = scmp.ne.s32.totalorder %s33, %s34
      %p48 = scmp.eq.s32.totalorder %s26, 1
      %p49 = por %p47, %p48
      %p51 = scmp.ne.s32.totalorder %s34, %s50
      %p52 = scmp.eq.s32.totalorder %s26, 0
      %p53 = por %p51, %p52
      %s55 = sadd.s32 %s54, 1
      %p58 = scmp.eq.s32.totalorder %s20, 1
      %p59 = scmp.ne.s32.totalorder %s54, %s56
      %p60 = scmp.eq.s32.totalorder %s20, 0
      %p61 = por %p59, %p60
      %p62 = scmp.ne.s32.totalorder %s54, %s56
      %p63 = scmp.eq.s32.totalorder %s25, 1
      %p64 = por %p62, %p63
      %p65 = scmp.ne.s32.totalorder %s56, %s57
      %p66 = scmp.eq.s32.totalorder %s25, 0
      %p67 = por %p65, %p66
      %p68 = scmp.ne.s32.totalorder %s56, %s57
      %p69 = scmp.eq.s32.totalorder %s26, 1
      %p70 = por %p68, %p69
      %p72 = scmp.ne.s32.totalorder %s57, %s71
      %p73 = scmp.eq.s32.totalorder %s26, 0
      %p74 = por %p72, %p73
      %s76 = sadd.s32 %s75, 1
      %p79 = scmp.eq.s32.totalorder %s20, 1
      %p80 = scmp.ne.s32.totalorder %s75, %s77
      %p81 = scmp.eq.s32.totalorder %s20, 0
      %p82 = por %p80, %p81
      %p83 = scmp.ne.s32.totalorder %s75, %s77
      %p84 = scmp.eq.s32.totalorder %s25, 1
      %p85 = por %p83, %p84
      %p86 = scmp.ne.s32.totalorder %s77, %s78
      %p87 = scmp.eq.s32.totalorder %s25, 0
      %p88 = por %p86, %p87
      %p89 = scmp.ne.s32.totalorder %s77, %s78
      %p90 = scmp.eq.s32.totalorder %s26, 1
      %p91 = por %p89, %p90
      %p93 = scmp.ne.s32.totalorder %s78, %s92
      %p94 = scmp.eq.s32.totalorder %s26, 0
      %p95 = por %p93, %p94
      %s97 = sadd.s32 %s96, 1
      %p100 = scmp.eq.s32.totalorder %s20, 1
      %p101 = scmp.ne.s32.totalorder %s96, %s98
      %p102 = scmp.eq.s32.totalorder %s20, 0
      %p103 = por %p101, %p102
      %p104 = scmp.ne.s32.totalorder %s96, %s98
      %p105 = scmp.eq.s32.totalorder %s25, 1
      %p106 = por %p104, %p105
      %p107 = scmp.ne.s32.totalorder %s98, %s99
      %p108 = scmp.eq.s32.totalorder %s25, 0
      %p109 = por %p107, %p108
      %p110 = scmp.ne.s32.totalorder %s98, %s99
      %p111 = scmp.eq.s32.totalorder %s26, 1
      %p112 = por %p110, %p111
      %p114 = scmp.ne.s32.totalorder %s99, %s113
      %p115 = scmp.eq.s32.totalorder %s26, 0
      %p116 = por %p114, %p115
      %s118 = sadd.s32 %s117, 1
      %p121 = scmp.eq.s32.totalorder %s20, 1
      %p122 = scmp.ne.s32.totalorder %s117, %s119
      %p123 = scmp.eq.s32.totalorder %s20, 0
      %p124 = por %p122, %p123
      %p125 = scmp.ne.s32.totalorder %s117, %s119
      %p126 = scmp.eq.s32.totalorder %s25, 1
      %p127 = por %p125, %p126
      %p128 = scmp.ne.s32.totalorder %s119, %s120
      %p129 = scmp.eq.s32.totalorder %s25, 0
      %p130 = por %p128, %p129
      %p131 = scmp.ne.s32.totalorder %s119, %s120
      %p132 = scmp.eq.s32.totalorder %s26, 1
      %p133 = por %p131, %p132
      %p135 = scmp.ne.s32.totalorder %s120, %s134
      %p136 = scmp.eq.s32.totalorder %s26, 0
      %p137 = por %p135, %p136
      %s139 = sadd.s32 %s138, 1
      %p142 = scmp.eq.s32.totalorder %s20, 1
      %p143 = scmp.ne.s32.totalorder %s138, %s140
      %p144 = scmp.eq.s32.totalorder %s20, 0
      %p145 = por %p143, %p144
      %p146 = scmp.ne.s32.totalorder %s138, %s140
      %p147 = scmp.eq.s32.totalorder %s25, 1
      %p148 = por %p146, %p147
      %p149 = scmp.ne.s32.totalorder %s140, %s141
      %p150 = scmp.eq.s32.totalorder %s25, 0
      %p151 = por %p149, %p150
      %p152 = scmp.ne.s32.totalorder %s140, %s141
      %p153 = scmp.eq.s32.totalorder %s26, 1
      %p154 = por %p152, %p153
      %p156 = scmp.ne.s32.totalorder %s141, %s155
      %p157 = scmp.eq.s32.totalorder %s26, 0
      %p158 = por %p156, %p157
      %s159 = ssub.s32 %s20, %s27
      %p160 = scmp.eq.s32.totalorder %s159, 0
      %s162 = sadd.s32 %s161, 1
      %s163 = scalar_select %p160, %s161, %s162
      %p166 = pneg %p160
      %p167 = scmp.eq.s32.totalorder %s20, 1
      %p168 = por %p166, %p167
      %p169 = scmp.ne.s32.totalorder %s161, %s164
      %p170 = scmp.eq.s32.totalorder %s20, 0
      %p171 = por %p169, %p170
      %p172 = scmp.ne.s32.totalorder %s161, %s164
      %p173 = scmp.eq.s32.totalorder %s25, 1
      %p174 = por %p172, %p173
      %p175 = scmp.ne.s32.totalorder %s164, %s165
      %p176 = scmp.eq.s32.totalorder %s25, 0
      %p177 = por %p175, %p176
      %p178 = scmp.ne.s32.totalorder %s164, %s165
      %p179 = scmp.eq.s32.totalorder %s26, 1
      %p180 = por %p178, %p179
      %p182 = scmp.ne.s32.totalorder %s165, %s181
      %p183 = scmp.eq.s32.totalorder %s26, 0
      %p184 = por %p182, %p183
      %p185 = scmp.le.s32.totalorder 1, %s20
      %p186 = scmp.lt.s32.totalorder %s20, 3
      %p187 = pnand %p185, %p186
      %p188 = pneg %p187
      // Predicated region
      $region9: #{tpu_custom_call.1} parent=5 // pred_check
        _
      $region10: #{tpu_custom_call.1} parent=5 // pred_check_branch
        %190 = sbr.rel (%p187) target = $region12
      $region11: #{tpu_custom_call.1} parent=5 // pred_region
        %s191 = ssub.s32 %s20, 1
        // Predicated region
        $region13: #{tpu_custom_call.1} parent=11 // pred_check
          %p192 = pneg %p67
        $region14: #{tpu_custom_call.1} parent=11 // pred_check_branch
          %194 = sbr.rel (%p192) target = $region16
        $region15: #{tpu_custom_call.1} parent=11 // pred_region
          %s196 = ssub.s32 64, 64
          %197 = vsyncadd [#allocation8], %s196
          %s199 = sshll.u32 [#allocation7], 4
          %s200 = int_to_ptr.vmem [resolvable:$true] %s199
          %202 = dma.hbm_to_vmem [thread:$0]  %s1, 64, %s200, [#allocation8]
        $region16: #{tpu_custom_call.1} parent=11 // pred_fallthru
          _
        // Predicated region
        $region17: #{tpu_custom_call.1} parent=11 // pred_check
          %p203 = pneg %p88
        $region18: #{tpu_custom_call.1} parent=11 // pred_check_branch
          %205 = sbr.rel (%p203) target = $region20
        $region19: #{tpu_custom_call.1} parent=11 // pred_region
          %s207 = ssub.s32 128, 128
          %208 = vsyncadd [#allocation8], %s207
          %s210 = sshll.u32 [#allocation9], 4
          %s211 = int_to_ptr.vmem [resolvable:$true] %s210
          %213 = dma.hbm_to_vmem [thread:$0]  %s2, 128, %s211, [#allocation8]
        $region20: #{tpu_custom_call.1} parent=11 // pred_fallthru
          _
        // Predicated region
        $region21: #{tpu_custom_call.1} parent=11 // pred_check
          %p214 = pneg %p109
        $region22: #{tpu_custom_call.1} parent=11 // pred_check_branch
          %216 = sbr.rel (%p214) target = $region24
        $region23: #{tpu_custom_call.1} parent=11 // pred_region
          %s218 = ssub.s32 128, 128
          %219 = vsyncadd [#allocation11], %s218
          %s221 = sshll.u32 [#allocation10], 4
          %s222 = int_to_ptr.vmem [resolvable:$true] %s221
          %224 = dma.hbm_to_vmem [thread:$0]  %s3, 128, %s222, [#allocation11]
        $region24: #{tpu_custom_call.1} parent=11 // pred_fallthru
          _
        // Predicated region
        $region25: #{tpu_custom_call.1} parent=11 // pred_check
          %p225 = pneg %p130
        $region26: #{tpu_custom_call.1} parent=11 // pred_check_branch
          %227 = sbr.rel (%p225) target = $region28
        $region27: #{tpu_custom_call.1} parent=11 // pred_region
          _
        $region28: #{tpu_custom_call.1} parent=11 // pred_fallthru
          _
        // Predicated region
        $region29: #{tpu_custom_call.1} parent=11 // pred_check
          %p228 = pneg %p151
        $region30: #{tpu_custom_call.1} parent=11 // pred_check_branch
          %230 = sbr.rel (%p228) target = $region32
        $region31: #{tpu_custom_call.1} parent=11 // pred_region
          %s232 = ssub.s32 128, 128
          %233 = vsyncadd [#allocation11], %s232
          %s235 = sshll.u32 [#allocation12], 4
          %s236 = int_to_ptr.vmem [resolvable:$true] %s235
          %238 = dma.hbm_to_vmem [thread:$0]  %s5, 128, %s236, [#allocation11]
        $region32: #{tpu_custom_call.1} parent=11 // pred_fallthru
          _
      $region12: #{tpu_custom_call.1} parent=5 // pred_fallthru
        _
      %p239 = scmp.lt.s32.totalorder %s20, 2
      // Predicated region
      $region33: #{tpu_custom_call.1} parent=5 // pred_check
        %p240 = pneg %p239
      $region34: #{tpu_custom_call.1} parent=5 // pred_check_branch
        %242 = sbr.rel (%p240) target = $region36
      $region35: #{tpu_custom_call.1} parent=5 // pred_region
        // Predicated region
        $region37: #{tpu_custom_call.1} parent=35 // pred_check
          %p243 = pneg %p40
        $region38: #{tpu_custom_call.1} parent=35 // pred_check_branch
          %245 = sbr.rel (%p243) target = $region40
        $region39: #{tpu_custom_call.1} parent=35 // pred_region
          %s246 = sand.u32 %s30, 1
          %s247 = scalar_lea.sflag [#allocation5], %s246
          %s248 = sand.u32 %s30, 1
          %s249 = smul.addr %s248, 32
          %s250 = scalar_lea.vmem [#allocation4], %s249
          %s251 = smul.u32 2, %s20
          %s253 = ssub.s32 512, 512
          %254 = vsyncadd %s247, %s253
          %s255 = smul.addr %s251, 2
          %s256 = smul.addr %s255, 128
          %s257 = scalar_lea.hbm %s0, %s256
          %s258 = sshll.u32 %s250, 4
          %s259 = int_to_ptr.vmem [resolvable:$true] %s258
          %264 = dma.hbm_to_vmem [thread:$0]  %s257, 512, %s259, %s247, 256, 256, 16
        $region40: #{tpu_custom_call.1} parent=35 // pred_fallthru
          _
      $region36: #{tpu_custom_call.1} parent=5 // pred_fallthru
        _
      %p265 = scmp.le.s32.totalorder 1, %s20
      %p266 = scmp.lt.s32.totalorder %s20, 3
      %p267 = pnand %p265, %p266
      %p268 = pneg %p267
      // Predicated region
      $region41: #{tpu_custom_call.1} parent=5 // pred_check
        _
      $region42: #{tpu_custom_call.1} parent=5 // pred_check_branch
        %270 = sbr.rel (%p267) target = $region44
      $region43: #{tpu_custom_call.1} parent=5 // pred_region
        %s271 = ssub.s32 %s20, 1
        %s272 = sand.u32 %s33, 1
        %s273 = scalar_lea.sflag [#allocation5], %s272
        %s274 = sand.u32 %s33, 1
        %s275 = smul.addr %s274, 32
        %s276 = scalar_lea.vmem [#allocation4], %s275
        // Predicated region
        $region45: #{tpu_custom_call.1} parent=43 // pred_check
          %p277 = pneg %p46
        $region46: #{tpu_custom_call.1} parent=43 // pred_check_branch
          %279 = sbr.rel (%p277) target = $region48
        $region47: #{tpu_custom_call.1} parent=43 // pred_region
          %280 = dma.done %s273, 512
        $region48: #{tpu_custom_call.1} parent=43 // pred_fallthru
          _
        // Predicated region
        $region49: #{tpu_custom_call.1} parent=43 // pred_check
          %p281 = pneg %p67
        $region50: #{tpu_custom_call.1} parent=43 // pred_check_branch
          %283 = sbr.rel (%p281) target = $region52
        $region51: #{tpu_custom_call.1} parent=43 // pred_region
          %284 = dma.done [#allocation8], 64
        $region52: #{tpu_custom_call.1} parent=43 // pred_fallthru
          _
        // Predicated region
        $region53: #{tpu_custom_call.1} parent=43 // pred_check
          %p285 = pneg %p88
        $region54: #{tpu_custom_call.1} parent=43 // pred_check_branch
          %287 = sbr.rel (%p285) target = $region56
        $region55: #{tpu_custom_call.1} parent=43 // pred_region
          %288 = dma.done [#allocation8], 128
        $region56: #{tpu_custom_call.1} parent=43 // pred_fallthru
          _
        // Predicated region
        $region57: #{tpu_custom_call.1} parent=43 // pred_check
          %p289 = pneg %p109
        $region58: #{tpu_custom_call.1} parent=43 // pred_check_branch
          %291 = sbr.rel (%p289) target = $region60
        $region59: #{tpu_custom_call.1} parent=43 // pred_region
          %292 = dma.done [#allocation11], 128
        $region60: #{tpu_custom_call.1} parent=43 // pred_fallthru
          _
        // Predicated region
        $region61: #{tpu_custom_call.1} parent=43 // pred_check
          %p293 = pneg %p151
        $region62: #{tpu_custom_call.1} parent=43 // pred_check_branch
          %295 = sbr.rel (%p293) target = $region64
        $region63: #{tpu_custom_call.1} parent=43 // pred_region
          %296 = dma.done [#allocation11], 128
        $region64: #{tpu_custom_call.1} parent=43 // pred_fallthru
          _
        %s297 = sand.u32 %s33, 1
        %s298 = scalar_lea.sflag [#allocation5], %s297
        %s299 = sand.u32 %s33, 1
        %s300 = smul.addr %s299, 32
        %s301 = scalar_lea.vmem [#allocation4], %s300
        %p302 = pneg %p46
        %p303 = pneg %p43
        %p304 = pneg %p67
        %p305 = pneg %p64
        %p306 = pneg %p88
        %p307 = pneg %p85
        %p308 = pneg %p109
        %p309 = pneg %p106
        %p310 = pneg %p130
        %p311 = pneg %p127
        %p312 = pneg %p151
        %p313 = pneg %p148
        %p314 = pneg %p177
        %p315 = pneg %p174
        %s316 = sand.u32 %s164, 1
        %s317 = scalar_lea.sflag [#allocation6], %s316
        %s318 = sand.u32 %s164, 1
        %s319 = smul.addr %s318, 32
        %s320 = scalar_lea.vmem [#allocation13], %s319
        %s321 = smul.u32 2, %s25
        %s322 = smul.u32 2, %s25
        %326 = vst [vmem:[#allocation2] sm:$0xff] 0
        %327 = vst [vmem:[#allocation2 + $0x40] sm:$0xff] 0
        %328 = vst [vmem:[#allocation2 + $0x18] sm:$0xff] 0
        %329 = vst [vmem:[#allocation2 + $0x58] sm:$0xff] 0
        %330 = vst [vmem:[#allocation2 + $0x20] sm:$0xff] 0
        %331 = vst [vmem:[#allocation2 + $0x60] sm:$0xff] 0
        %332 = vst [vmem:[#allocation2 + $0x38] sm:$0xff] 0
        %333 = vst [vmem:[#allocation2 + $0x78] sm:$0xff] 0
        %v334 = vld [vmem:[%s276] sm:$0xff]
        %v335 = vld [vmem:[%s276 + $0x8] sm:$0xff]
        %v336 = vpack.c.bf16 %v334, %v334
        %v337 = vpack.c.bf16 %v335, %v335
        %v340 = vrot.slane %v336, 4
        %v341 = vrot.slane %v337, 4
        %344 = vst [vmem:[#allocation2 + $0x48] sm:$0xf0] %v340
        %345 = vst [vmem:[#allocation2 + $0x50] sm:$0xf0] %v341
        %s346 = scalar_lea.vmem %s276, 16 [#allocation4]
        %v347 = vld [vmem:[%s346] sm:$0xff]
        %v348 = vld [vmem:[%s346 + $0x8] sm:$0xff]
        %v349 = vpack.c.bf16 %v347, %v347
        %v350 = vpack.c.bf16 %v348, %v348
        %v353 = vrot.slane %v349, 4
        %v354 = vrot.slane %v350, 4
        %357 = vst [vmem:[#allocation2 + $0x68] sm:$0xf0] %v353
        %358 = vst [vmem:[#allocation2 + $0x70] sm:$0xf0] %v354
        %v359 = vlaneseq
        %v360 = vand.u32 %v359, 127
        %v361 = vadd.s32 %v360, 128
        %vm362 = vcmp.lt.s32.totalorder %v360, 0
        %v363 = vsub.s32 0, %v360
        %v364 = vsel %vm362, %v363, %v360
        %v365 = vshrl.u32 %v364, 4
        %v366 = vand.u32 %v364, 15
        %v367 = vsub.s32 0, %v366
        %v368 = vsel %vm362, %v367, %v366
        %vm369 = vcmp.lt.s32.totalorder %v361, 0
        %v370 = vsub.s32 0, %v361
        %v371 = vsel %vm369, %v370, %v361
        %v372 = vshrl.u32 %v371, 4
        %v373 = vand.u32 %v371, 15
        %v374 = vsub.s32 0, %v373
        %v375 = vsel %vm369, %v374, %v373
        %vm376 = vcmp.ne.s32.totalorder %v368, 0
        %vm377 = vcmp.ne.s32.totalorder %v375, 0
        %vm378 = vcmp.lt.s32.totalorder %v368, 0
        %vm379 = vcmp.lt.s32.totalorder %v375, 0
        %vm380 = vmand %vm378, %vm376
        %vm381 = vmand %vm379, %vm377
        %v382 = vadd.s32 %v368, 16
        %v383 = vadd.s32 %v375, 16
        %v384 = vsel %vm380, %v382, %v368
        %v385 = vsel %vm381, %v383, %v375
        %vm386 = vcmp.ne.s32.totalorder %v384, 0
        %vm387 = vcmp.ne.s32.totalorder %v385, 0
        %vm388 = vcmp.ne.s32.totalorder %v384, 15
        %vm389 = vcmp.ne.s32.totalorder %v385, 15
        %v390 = vld [vmem:[#allocation2 + $0x40] sm:$0xf0]
        %v391 = vld [vmem:[#allocation2 + $0x48] sm:$0xf0]
        %v392 = vld [vmem:[#allocation2 + $0x50] sm:$0xf0]
        %394 = vrot.lane.b32.xlu0 %v392, 17
        %v395 = vpop.permute.xlu0 %394
        %398 = vrot.lane.b32.xlu0 %v390, 17
        %v399 = vpop.permute.xlu0 %398
        %400 = vrot.lane.b32.xlu0 %v391, 17
        %v401 = vpop.permute.xlu0 %400
        %vm402 = vcmask 138240
        %v403 = vsel %vm402, %v399, %v401
        %v404 = vsel %vm402, %v401, %v395
        %vm406 = vcmask 7168
        %v409 = vsel %vm406, %v395, %v403
        %v411 = vsel %vm386, 1, 0
        %v412 = vsel %vm387, 1, 0
        %vm413 = vcmp.eq.s32.totalorder %v411, 1
        %vm414 = vcmp.eq.s32.totalorder %v412, 1
        %vm415 = vmpackc.low %vm414, %vm413
        %v416 = vsel %vm415, 65537, 0
        %v417 = vlaneseq
        %v418 = vshrl.u32 %v417, 7
        %v419 = vsub.s32 0, %v418
        %v420 = vrot.slane %v416, %v419
        %v421 = vlaneseq
        %v422 = vshrl.u32 %v421, 7
        %v423 = vsub.s32 4, %v422
        %v424 = vrot.slane %v416, %v423
        %vm425 = vcmp.ne.s16.totalorder %v420, 0
        %vm426 = vcmp.ne.s16.totalorder %v424, 0
        %v427 = vsel %vm425, %v409, 0
        %v428 = vsel %vm426, %v404, 0
        %429 = vrot.lane.b32.xlu0 %v390, 15
        %v430 = vpop.permute.xlu0 %429
        %431 = vrot.lane.b32.xlu0 %v391, 15
        %v432 = vpop.permute.xlu0 %431
        %433 = vrot.lane.b32.xlu0 %v392, 15
        %v434 = vpop.permute.xlu0 %433
        %vm435 = vcmask 121856
        %v436 = vsel %vm435, %v430, %v432
        %v437 = vsel %vm435, %v432, %v434
        %vm439 = vcmask 1039360
        %v442 = vsel %vm439, %v437, %v430
        %v444 = vsel %vm388, 1, 0
        %v445 = vsel %vm389, 1, 0
        %vm446 = vcmp.eq.s32.totalorder %v444, 1
        %vm447 = vcmp.eq.s32.totalorder %v445, 1
        %vm448 = vmpackc.low %vm447, %vm446
        %v449 = vsel %vm448, 65537, 0
        %v450 = vlaneseq
        %v451 = vshrl.u32 %v450, 7
        %v452 = vsub.s32 0, %v451
        %v453 = vrot.slane %v449, %v452
        %v454 = vlaneseq
        %v455 = vshrl.u32 %v454, 7
        %v456 = vsub.s32 4, %v455
        %v457 = vrot.slane %v449, %v456
        %vm458 = vcmp.ne.s16.totalorder %v453, 0
        %vm459 = vcmp.ne.s16.totalorder %v457, 0
        %v460 = vsel %vm458, %v436, 0
        %v461 = vsel %vm459, %v442, 0
        %v464 = vrot.slane %v427, 4
        %v465 = vrot.slane %v428, 4
        %468 = vst [vmem:[#allocation3] sm:$0xf] %v464
        %469 = vst [vmem:[#allocation3 + $0x8] sm:$0xf] %v465
        %470 = vrot.lane.b32.xlu0 %v390, 16
        %v471 = vpop.permute.xlu0 %470
        %472 = vrot.lane.b32.xlu0 %v391, 16
        %v473 = vpop.permute.xlu0 %472
        %474 = vrot.lane.b32.xlu0 %v392, 16
        %v475 = vpop.permute.xlu0 %474
        %vm476 = vcmask 130048
        %v477 = vsel %vm476, %v471, %v473
        %v478 = vsel %vm476, %v473, %v475
        %481 = vst [vmem:[#allocation3] sm:$0xf0] %v477
        %482 = vst [vmem:[#allocation3 + $0x8] sm:$0xf0] %v478
        %v485 = vrot.slane %v460, 4
        %v486 = vrot.slane %v461, 4
        %489 = vst [vmem:[#allocation3 + $0x20] sm:$0xf] %v485
        %490 = vst [vmem:[#allocation3 + $0x28] sm:$0xf] %v486
        %v491 = vld [vmem:[#allocation2 + $0x48] sm:$0xf0]
        %v492 = vld [vmem:[#allocation2 + $0x50] sm:$0xf0]
        %494 = vrot.lane.b32.xlu0 %v492, 1
        %v495 = vpop.permute.xlu0 %494
        %497 = vrot.lane.b32.xlu0 %v491, 1
        %v498 = vpop.permute.xlu0 %497
        %vm499 = vcmask 7168
        %v500 = vsel %vm499, %v498, %v495
        %v504 = vsel %vm406, %v495, %v498
        %v506 = vsel %vm425, %v504, 0
        %v507 = vsel %vm426, %v500, 0
        %508 = vrot.lane.b32.xlu0 %v491, 127
        %v509 = vpop.permute.xlu0 %508
        %510 = vrot.lane.b32.xlu0 %v492, 127
        %v511 = vpop.permute.xlu0 %510
        %vm512 = vcmask 1039360
        %v513 = vsel %vm512, %v509, %v511
        %v517 = vsel %vm439, %v511, %v509
        %v519 = vsel %vm458, %v513, 0
        %v520 = vsel %vm459, %v517, 0
        %521 = vst [vmem:[#allocation3 + $0x20] sm:$0xf0] %v506
        %522 = vst [vmem:[#allocation3 + $0x28] sm:$0xf0] %v507
        %v523 = vrot.slane %v491, 4
        %v524 = vrot.slane %v492, 4
        %527 = vst [vmem:[#allocation3 + $0x40] sm:$0xf] %v523
        %528 = vst [vmem:[#allocation3 + $0x48] sm:$0xf] %v524
        %529 = vst [vmem:[#allocation3 + $0x40] sm:$0xf0] %v519
        %530 = vst [vmem:[#allocation3 + $0x48] sm:$0xf0] %v520
        %v531 = vld [vmem:[#allocation2 + $0x48] sm:$0xf0]
        %v532 = vld [vmem:[#allocation2 + $0x50] sm:$0xf0]
        %v533 = vld [vmem:[#allocation2 + $0x58] sm:$0xf0]
        %535 = vrot.lane.b32.xlu0 %v533, 113
        %v536 = vpop.permute.xlu0 %535
        %539 = vrot.lane.b32.xlu0 %v531, 113
        %v540 = vpop.permute.xlu0 %539
        %541 = vrot.lane.b32.xlu0 %v532, 113
        %v542 = vpop.permute.xlu0 %541
        %vm543 = vcmask 924672
        %v544 = vsel %vm543, %v540, %v542
        %v545 = vsel %vm543, %v542, %v536
        %v549 = vsel %vm406, %v536, %v544
        %v551 = vsel %vm425, %v549, 0
        %v552 = vsel %vm426, %v545, 0
        %553 = vrot.lane.b32.xlu0 %v531, 111
        %v554 = vpop.permute.xlu0 %553
        %555 = vrot.lane.b32.xlu0 %v532, 111
        %v556 = vpop.permute.xlu0 %555
        %557 = vrot.lane.b32.xlu0 %v533, 111
        %v558 = vpop.permute.xlu0 %557
        %vm559 = vcmask 908288
        %v560 = vsel %vm559, %v554, %v556
        %v561 = vsel %vm559, %v556, %v558
        %v565 = vsel %vm439, %v561, %v554
        %v567 = vsel %vm458, %v560, 0
        %v568 = vsel %vm459, %v565, 0
        %v571 = vrot.slane %v551, 4
        %v572 = vrot.slane %v552, 4
        %575 = vst [vmem:[#allocation3 + $0x60] sm:$0xf] %v571
        %576 = vst [vmem:[#allocation3 + $0x68] sm:$0xf] %v572
        %577 = vrot.lane.b32.xlu0 %v531, 112
        %v578 = vpop.permute.xlu0 %577
        %579 = vrot.lane.b32.xlu0 %v532, 112
        %v580 = vpop.permute.xlu0 %579
        %581 = vrot.lane.b32.xlu0 %v533, 112
        %v582 = vpop.permute.xlu0 %581
        %vm583 = vcmask 916480
        %v584 = vsel %vm583, %v578, %v580
        %v585 = vsel %vm583, %v580, %v582
        %588 = vst [vmem:[#allocation3 + $0x60] sm:$0xf0] %v584
        %589 = vst [vmem:[#allocation3 + $0x68] sm:$0xf0] %v585
        %v592 = vrot.slane %v567, 4
        %v593 = vrot.slane %v568, 4
        %596 = vst [vmem:[#allocation3 + $0x80] sm:$0xf] %v592
        %597 = vst [vmem:[#allocation3 + $0x88] sm:$0xf] %v593
        %v598 = vld [vmem:[#allocation2 + $0x60] sm:$0xf0]
        %v599 = vld [vmem:[#allocation2 + $0x68] sm:$0xf0]
        %v600 = vld [vmem:[#allocation2 + $0x70] sm:$0xf0]
        %602 = vrot.lane.b32.xlu0 %v600, 17
        %v603 = vpop.permute.xlu0 %602
        %606 = vrot.lane.b32.xlu0 %v598, 17
        %v607 = vpop.permute.xlu0 %606
        %608 = vrot.lane.b32.xlu0 %v599, 17
        %v609 = vpop.permute.xlu0 %608
        %v610 = vsel %vm402, %v607, %v609
        %v611 = vsel %vm402, %v609, %v603
        %v615 = vsel %vm406, %v603, %v610
        %v617 = vsel %vm425, %v615, 0
        %v618 = vsel %vm426, %v611, 0
        %619 = vrot.lane.b32.xlu0 %v598, 15
        %v620 = vpop.permute.xlu0 %619
        %621 = vrot.lane.b32.xlu0 %v599, 15
        %v622 = vpop.permute.xlu0 %621
        %623 = vrot.lane.b32.xlu0 %v600, 15
        %v624 = vpop.permute.xlu0 %623
        %v625 = vsel %vm435, %v620, %v622
        %v626 = vsel %vm435, %v622, %v624
        %v630 = vsel %vm439, %v626, %v620
        %v632 = vsel %vm458, %v625, 0
        %v633 = vsel %vm459, %v630, 0
        %v636 = vrot.slane %v617, 4
        %v637 = vrot.slane %v618, 4
        %640 = vst [vmem:[#allocation3 + $0x10] sm:$0xf] %v636
        %641 = vst [vmem:[#allocation3 + $0x18] sm:$0xf] %v637
        %642 = vrot.lane.b32.xlu0 %v598, 16
        %v643 = vpop.permute.xlu0 %642
        %644 = vrot.lane.b32.xlu0 %v599, 16
        %v645 = vpop.permute.xlu0 %644
        %646 = vrot.lane.b32.xlu0 %v600, 16
        %v647 = vpop.permute.xlu0 %646
        %v648 = vsel %vm476, %v643, %v645
        %v649 = vsel %vm476, %v645, %v647
        %652 = vst [vmem:[#allocation3 + $0x10] sm:$0xf0] %v648
        %653 = vst [vmem:[#allocation3 + $0x18] sm:$0xf0] %v649
        %v656 = vrot.slane %v632, 4
        %v657 = vrot.slane %v633, 4
        %660 = vst [vmem:[#allocation3 + $0x30] sm:$0xf] %v656
        %661 = vst [vmem:[#allocation3 + $0x38] sm:$0xf] %v657
        %v662 = vld [vmem:[#allocation2 + $0x68] sm:$0xf0]
        %v663 = vld [vmem:[#allocation2 + $0x70] sm:$0xf0]
        %665 = vrot.lane.b32.xlu0 %v663, 1
        %v666 = vpop.permute.xlu0 %665
        %668 = vrot.lane.b32.xlu0 %v662, 1
        %v669 = vpop.permute.xlu0 %668
        %v670 = vsel %vm499, %v669, %v666
        %v674 = vsel %vm406, %v666, %v669
        %v676 = vsel %vm425, %v674, 0
        %v677 = vsel %vm426, %v670, 0
        %678 = vrot.lane.b32.xlu0 %v662, 127
        %v679 = vpop.permute.xlu0 %678
        %680 = vrot.lane.b32.xlu0 %v663, 127
        %v681 = vpop.permute.xlu0 %680
        %v682 = vsel %vm512, %v679, %v681
        %v686 = vsel %vm439, %v681, %v679
        %v688 = vsel %vm458, %v682, 0
        %v689 = vsel %vm459, %v686, 0
        %690 = vst [vmem:[#allocation3 + $0x30] sm:$0xf0] %v676
        %691 = vst [vmem:[#allocation3 + $0x38] sm:$0xf0] %v677
        %v692 = vrot.slane %v662, 4
        %v693 = vrot.slane %v663, 4
        %696 = vst [vmem:[#allocation3 + $0x50] sm:$0xf] %v692
        %697 = vst [vmem:[#allocation3 + $0x58] sm:$0xf] %v693
        %698 = vst [vmem:[#allocation3 + $0x50] sm:$0xf0] %v688
        %699 = vst [vmem:[#allocation3 + $0x58] sm:$0xf0] %v689
        %v700 = vld [vmem:[#allocation2 + $0x68] sm:$0xf0]
        %v701 = vld [vmem:[#allocation2 + $0x70] sm:$0xf0]
        %v702 = vld [vmem:[#allocation2 + $0x78] sm:$0xf0]
        %704 = vrot.lane.b32.xlu0 %v702, 113
        %v705 = vpop.permute.xlu0 %704
        %708 = vrot.lane.b32.xlu0 %v700, 113
        %v709 = vpop.permute.xlu0 %708
        %710 = vrot.lane.b32.xlu0 %v701, 113
        %v711 = vpop.permute.xlu0 %710
        %v712 = vsel %vm543, %v709, %v711
        %v713 = vsel %vm543, %v711, %v705
        %v717 = vsel %vm406, %v705, %v712
        %v719 = vsel %vm425, %v717, 0
        %v720 = vsel %vm426, %v713, 0
        %721 = vrot.lane.b32.xlu0 %v700, 111
        %v722 = vpop.permute.xlu0 %721
        %723 = vrot.lane.b32.xlu0 %v701, 111
        %v724 = vpop.permute.xlu0 %723
        %725 = vrot.lane.b32.xlu0 %v702, 111
        %v726 = vpop.permute.xlu0 %725
        %v727 = vsel %vm559, %v722, %v724
        %v728 = vsel %vm559, %v724, %v726
        %v732 = vsel %vm439, %v728, %v722
        %v734 = vsel %vm458, %v727, 0
        %v735 = vsel %vm459, %v732, 0
        %v738 = vrot.slane %v719, 4
        %v739 = vrot.slane %v720, 4
        %742 = vst [vmem:[#allocation3 + $0x70] sm:$0xf] %v738
        %743 = vst [vmem:[#allocation3 + $0x78] sm:$0xf] %v739
        %744 = vrot.lane.b32.xlu0 %v700, 112
        %v745 = vpop.permute.xlu0 %744
        %746 = vrot.lane.b32.xlu0 %v701, 112
        %v747 = vpop.permute.xlu0 %746
        %748 = vrot.lane.b32.xlu0 %v702, 112
        %v749 = vpop.permute.xlu0 %748
        %v750 = vsel %vm583, %v745, %v747
        %v751 = vsel %vm583, %v747, %v749
        %754 = vst [vmem:[#allocation3 + $0x70] sm:$0xf0] %v750
        %755 = vst [vmem:[#allocation3 + $0x78] sm:$0xf0] %v751
        %v758 = vrot.slane %v734, 4
        %v759 = vrot.slane %v735, 4
        %762 = vst [vmem:[#allocation3 + $0x90] sm:$0xf] %v758
        %763 = vst [vmem:[#allocation3 + $0x98] sm:$0xf] %v759
        %v764 = vld [vmem:[#allocation3] sm:$0xff]
        %v765 = vld [vmem:[#allocation3 + $0x8] sm:$0xff]
        %v766 = vld [vmem:[#allocation3 + $0x10] sm:$0xff]
        %v767 = vld [vmem:[#allocation3 + $0x18] sm:$0xff]
        %v768 = vld [vmem:[#allocation3 + $0x20] sm:$0xff]
        %v769 = vld [vmem:[#allocation3 + $0x28] sm:$0xff]
        %v770 = vld [vmem:[#allocation3 + $0x30] sm:$0xff]
        %v771 = vld [vmem:[#allocation3 + $0x38] sm:$0xff]
        %v772 = vld [vmem:[#allocation3 + $0x40] sm:$0xff]
        %v773 = vld [vmem:[#allocation3 + $0x48] sm:$0xff]
        %v774 = vld [vmem:[#allocation3 + $0x50] sm:$0xff]
        %v775 = vld [vmem:[#allocation3 + $0x58] sm:$0xff]
        %v776 = vld [vmem:[#allocation3 + $0x60] sm:$0xff]
        %v777 = vld [vmem:[#allocation3 + $0x68] sm:$0xff]
        %v778 = vld [vmem:[#allocation3 + $0x70] sm:$0xff]
        %v779 = vld [vmem:[#allocation3 + $0x78] sm:$0xff]
        %v780 = vld [vmem:[#allocation3 + $0x80] sm:$0xf]
        %v781 = vld [vmem:[#allocation3 + $0x88] sm:$0xf]
        %v782 = vld [vmem:[#allocation3 + $0x90] sm:$0xf]
        %v783 = vld [vmem:[#allocation3 + $0x98] sm:$0xf]
        %v784 = vld [vmem:[#allocation7] sm:$0xf]
        %vm785 = vcmask 588800
        %v787 = vsel %vm785, %v784, 0
        %vm789 = vcmask 1043456
        %v791 = vsel %vm789, %v780, 0
        %v794 = vsel %vm789, %v781, 0
        %v797 = vsel %vm789, %v782, 0
        %v800 = vsel %vm789, %v783, 0
        %802 = vmatprep.subr.bf16.mxu0 %v765
        %803 = vmatpush1.bf16.msra.mxu0 %v764
        %804 = vmatprep.subr.bf16.mxu0 %v769
        %805 = vmatpush1.bf16.msra.mxu0 %v768
        %806 = vmatprep.subr.bf16.mxu0 %v773
        %807 = vmatpush1.bf16.msra.mxu0 %v772
        %808 = vmatprep.subr.bf16.mxu0 %v777
        %809 = vmatpush1.bf16.msra.mxu0 %v776
        %810 = vmatprep.subr.bf16.mxu0 %v794
        %811 = vmatpush1.bf16.msra.mxu0 %v791
        %812 = vmatprep.subr.bf16.mxu0 0
        %813 = vmatpush1.bf16.msra.mxu0 0
        %814 = vmatprep.subr.bf16.mxu0 0
        %815 = vmatpush1.bf16.msra.mxu0 0
        %816 = vmatprep.subr.bf16.mxu0 0
        %817 = vmatpush1.bf16.msra.mxu0 0
        %818 = vmatprep.subr.bf16.mxu0 0
        %819 = vmatpush1.bf16.msra.mxu0 0
        %820 = vmatprep.subr.bf16.mxu0 0
        %821 = vmatpush1.bf16.msra.mxu0 0
        %822 = vmatprep.subr.bf16.mxu0 0
        %823 = vmatpush1.bf16.msra.mxu0 0
        %824 = vmatprep.subr.bf16.mxu0 0
        %825 = vmatpush1.bf16.msra.mxu0 0
        %826 = vmatprep.subr.bf16.mxu0 0
        %827 = vmatpush1.bf16.msra.mxu0 0
        %828 = vmatprep.subr.bf16.mxu0 0
        %829 = vmatpush1.bf16.msra.mxu0 0
        %830 = vmatprep.subr.bf16.mxu0 0
        %831 = vmatpush1.bf16.msra.mxu0 0
        %832 = vmatprep.subr.bf16.mxu0 0
        %833 = vmatpush1.bf16.msra.mxu0 0
        %834 = vmatprep.mubr.bf16.mxu0 0
        %835 = vmatmul.mubr.bf16.gmra.mrb[0].mxu0 %v787
        %v836 = vpop.f32.mrb[0].mxu0
        %v837 = vadd.f32 0.0, %v836
        %v838 = vpop.f32.mrb[0].mxu0
        %v839 = vadd.f32 0.0, %v838
        %v840 = vpop.f32.mrb[0].mxu0
        %v841 = vpop.f32.mrb[0].mxu0
        %842 = vdwg.mxu0
        %843 = vmatprep.subr.bf16.mxu0 %v767
        %844 = vmatpush1.bf16.msra.mxu0 %v766
        %845 = vmatprep.subr.bf16.mxu0 %v771
        %846 = vmatpush1.bf16.msra.mxu0 %v770
        %847 = vmatprep.subr.bf16.mxu0 %v775
        %848 = vmatpush1.bf16.msra.mxu0 %v774
        %849 = vmatprep.subr.bf16.mxu0 %v779
        %850 = vmatpush1.bf16.msra.mxu0 %v778
        %851 = vmatprep.subr.bf16.mxu0 %v800
        %852 = vmatpush1.bf16.msra.mxu0 %v797
        %853 = vmatprep.subr.bf16.mxu0 0
        %854 = vmatpush1.bf16.msra.mxu0 0
        %855 = vmatprep.subr.bf16.mxu0 0
        %856 = vmatpush1.bf16.msra.mxu0 0
        %857 = vmatprep.subr.bf16.mxu0 0
        %858 = vmatpush1.bf16.msra.mxu0 0
        %859 = vmatprep.subr.bf16.mxu0 0
        %860 = vmatpush1.bf16.msra.mxu0 0
        %861 = vmatprep.subr.bf16.mxu0 0
        %862 = vmatpush1.bf16.msra.mxu0 0
        %863 = vmatprep.subr.bf16.mxu0 0
        %864 = vmatpush1.bf16.msra.mxu0 0
        %865 = vmatprep.subr.bf16.mxu0 0
        %866 = vmatpush1.bf16.msra.mxu0 0
        %867 = vmatprep.subr.bf16.mxu0 0
        %868 = vmatpush1.bf16.msra.mxu0 0
        %869 = vmatprep.subr.bf16.mxu0 0
        %870 = vmatpush1.bf16.msra.mxu0 0
        %871 = vmatprep.subr.bf16.mxu0 0
        %872 = vmatpush1.bf16.msra.mxu0 0
        %873 = vmatprep.subr.bf16.mxu0 0
        %874 = vmatpush1.bf16.msra.mxu0 0
        %875 = vmatprep.mubr.bf16.mxu0 0
        %876 = vmatmul.mubr.bf16.gmra.mrb[0].mxu0 %v787
        %v877 = vpop.f32.mrb[0].mxu0
        %v878 = vadd.f32 0.0, %v877
        %v879 = vpop.f32.mrb[0].mxu0
        %v880 = vadd.f32 0.0, %v879
        %v881 = vpop.f32.mrb[0].mxu0
        %v882 = vpop.f32.mrb[0].mxu0
        %883 = vdwg.mxu0
        %v884 = vld [vmem:[#allocation12] sm:$0xff]
        %v885 = vadd.f32 %v837, %v839
        %886 = vadd.xlane.f32.xlu0 %v885
        %v887 = vpop.xlane.xlu0 %886
        %v888 = vmul.f32 %v887, 0.00390625
        %v889 = vmul.f32 %v837, %v837
        %v890 = vmul.f32 %v839, %v839
        %v891 = vadd.f32 %v889, %v890
        %892 = vadd.xlane.f32.xlu0 %v891
        %v893 = vpop.xlane.xlu0 %892
        %v894 = vmul.f32 %v893, 0.00390625
        %v895 = vmul.f32 %v888, %v888
        %v896 = vsub.f32 %v894, %v895
        %v897 = vmax.f32 %v896, 0.0
        %v898 = vadd.f32 %v897, 1e-05
        %v899 = vrsqrt.pop %v898
        %v900 = vmul.f32 %v884, %v899
        %v901 = vmul.f32 %v888, %v900
        %903 = vrot.lane.b32.xlu0 %v901, 1
        %v904 = vpop.permute.xlu0 %903
        %v906 = vsub.f32 %v884, %v904
        %908 = vset.pattern.permute.xlu0 0
        %909 = vperm.xlu0 %908, %v900
        %v910 = vpop.permute.xlu0 %909
        %v912 = vmul.f32 %v837, %v910
        %v913 = vmul.f32 %v839, %v910
        %915 = vset.pattern.permute.xlu0 1
        %916 = vperm.xlu0 %915, %v906
        %v917 = vpop.permute.xlu0 %916
        %v919 = vadd.f32 %v912, %v917
        %v920 = vadd.f32 %v913, %v917
        %vm921 = vcmp.ge.f32.partialorder %v919, 0.0
        %vm922 = vcmp.ge.f32.partialorder %v920, 0.0
        %924 = vset.pattern.permute.xlu0 2
        %925 = vperm.xlu0 %924, %v884
        %v926 = vpop.permute.xlu0 %925
        %v928 = vmul.f32 %v926, %v919
        %v929 = vmul.f32 %v926, %v920
        %v930 = vsel %vm921, %v919, %v928
        %v931 = vsel %vm922, %v920, %v929
        %v932 = vpack.c.bf16 %v930, %v930
        %v933 = vpack.c.bf16 %v931, %v931
        %934 = vst [vmem:[#allocation2 + $0x48] sm:$0xf] %v932
        %935 = vst [vmem:[#allocation2 + $0x50] sm:$0xf] %v933
        %v936 = vadd.f32 %v878, %v880
        %937 = vadd.xlane.f32.xlu0 %v936
        %v938 = vpop.xlane.xlu0 %937
        %v939 = vmul.f32 %v938, 0.00390625
        %v940 = vmul.f32 %v878, %v878
        %v941 = vmul.f32 %v880, %v880
        %v942 = vadd.f32 %v940, %v941
        %943 = vadd.xlane.f32.xlu0 %v942
        %v944 = vpop.xlane.xlu0 %943
        %v945 = vmul.f32 %v944, 0.00390625
        %v946 = vmul.f32 %v939, %v939
        %v947 = vsub.f32 %v945, %v946
        %v948 = vmax.f32 %v947, 0.0
        %v949 = vadd.f32 %v948, 1e-05
        %v950 = vrsqrt.pop %v949
        %v951 = vmul.f32 %v884, %v950
        %v952 = vmul.f32 %v939, %v951
        %954 = vrot.lane.b32.xlu0 %v952, 1
        %v955 = vpop.permute.xlu0 %954
        %v957 = vsub.f32 %v884, %v955
        %959 = vset.pattern.permute.xlu0 0
        %960 = vperm.xlu0 %959, %v951
        %v961 = vpop.permute.xlu0 %960
        %v963 = vmul.f32 %v878, %v961
        %v964 = vmul.f32 %v880, %v961
        %966 = vset.pattern.permute.xlu0 1
        %967 = vperm.xlu0 %966, %v957
        %v968 = vpop.permute.xlu0 %967
        %v970 = vadd.f32 %v963, %v968
        %v971 = vadd.f32 %v964, %v968
        %vm972 = vcmp.ge.f32.partialorder %v970, 0.0
        %vm973 = vcmp.ge.f32.partialorder %v971, 0.0
        %v974 = vmul.f32 %v926, %v970
        %v975 = vmul.f32 %v926, %v971
        %v976 = vsel %vm972, %v970, %v974
        %v977 = vsel %vm973, %v971, %v975
        %v978 = vpack.c.bf16 %v976, %v976
        %v979 = vpack.c.bf16 %v977, %v977
        %980 = vst [vmem:[#allocation2 + $0x68] sm:$0xf] %v978
        %981 = vst [vmem:[#allocation2 + $0x70] sm:$0xf] %v979
        %v982 = vld [vmem:[#allocation2 + $0x40] sm:$0xff]
        %v983 = vld [vmem:[#allocation2 + $0x48] sm:$0xff]
        %v984 = vld [vmem:[#allocation2 + $0x50] sm:$0xff]
        %986 = vrot.lane.b32.xlu0 %v984, 33
        %v987 = vpop.permute.xlu0 %986
        %990 = vrot.lane.b32.xlu0 %v982, 33
        %v991 = vpop.permute.xlu0 %990
        %992 = vrot.lane.b32.xlu0 %v983, 33
        %v993 = vpop.permute.xlu0 %992
        %vm994 = vcmask 269312
        %v995 = vsel %vm994, %v991, %v993
        %v996 = vsel %vm994, %v993, %v987
        %v1000 = vsel %vm406, %v987, %v995
        %v1002 = vsel %vm425, %v1000, 0
        %v1003 = vsel %vm426, %v996, 0
        %1004 = vrot.lane.b32.xlu0 %v982, 31
        %v1005 = vpop.permute.xlu0 %1004
        %1006 = vrot.lane.b32.xlu0 %v983, 31
        %v1007 = vpop.permute.xlu0 %1006
        %1008 = vrot.lane.b32.xlu0 %v984, 31
        %v1009 = vpop.permute.xlu0 %1008
        %vm1010 = vcmask 252928
        %v1011 = vsel %vm1010, %v1005, %v1007
        %v1012 = vsel %vm1010, %v1007, %v1009
        %v1016 = vsel %vm439, %v1012, %v1005
        %v1018 = vsel %vm458, %v1011, 0
        %v1019 = vsel %vm459, %v1016, 0
        %1020 = vst [vmem:[#allocation3] sm:$0xff] %v1002
        %1021 = vst [vmem:[#allocation3 + $0x8] sm:$0xff] %v1003
        %1022 = vrot.lane.b32.xlu0 %v982, 32
        %v1023 = vpop.permute.xlu0 %1022
        %1024 = vrot.lane.b32.xlu0 %v983, 32
        %v1025 = vpop.permute.xlu0 %1024
        %1026 = vrot.lane.b32.xlu0 %v984, 32
        %v1027 = vpop.permute.xlu0 %1026
        %vm1028 = vcmask 261120
        %v1029 = vsel %vm1028, %v1023, %v1025
        %v1030 = vsel %vm1028, %v1025, %v1027
        %1033 = vst [vmem:[#allocation3 + $0x20] sm:$0xff] %v1029
        %1034 = vst [vmem:[#allocation3 + $0x28] sm:$0xff] %v1030
        %1035 = vst [vmem:[#allocation3 + $0x40] sm:$0xff] %v1018
        %1036 = vst [vmem:[#allocation3 + $0x48] sm:$0xff] %v1019
        %v1037 = vld [vmem:[#allocation2 + $0x48] sm:$0xff]
        %v1038 = vld [vmem:[#allocation2 + $0x50] sm:$0xff]
        %1040 = vrot.lane.b32.xlu0 %v1038, 1
        %v1041 = vpop.permute.xlu0 %1040
        %1043 = vrot.lane.b32.xlu0 %v1037, 1
        %v1044 = vpop.permute.xlu0 %1043
        %v1045 = vsel %vm499, %v1044, %v1041
        %v1049 = vsel %vm406, %v1041, %v1044
        %v1051 = vsel %vm425, %v1049, 0
        %v1052 = vsel %vm426, %v1045, 0
        %1053 = vrot.lane.b32.xlu0 %v1037, 127
        %v1054 = vpop.permute.xlu0 %1053
        %1055 = vrot.lane.b32.xlu0 %v1038, 127
        %v1056 = vpop.permute.xlu0 %1055
        %v1057 = vsel %vm512, %v1054, %v1056
        %v1061 = vsel %vm439, %v1056, %v1054
        %v1063 = vsel %vm458, %v1057, 0
        %v1064 = vsel %vm459, %v1061, 0
        %1065 = vst [vmem:[#allocation3 + $0x60] sm:$0xff] %v1051
        %1066 = vst [vmem:[#allocation3 + $0x68] sm:$0xff] %v1052
        %1067 = vst [vmem:[#allocation3 + $0x80] sm:$0xff] %v1037
        %1068 = vst [vmem:[#allocation3 + $0x88] sm:$0xff] %v1038
        %1069 = vst [vmem:[#allocation3 + $0xa0] sm:$0xff] %v1063
        %1070 = vst [vmem:[#allocation3 + $0xa8] sm:$0xff] %v1064
        %v1071 = vld [vmem:[#allocation2 + $0x48] sm:$0xff]
        %v1072 = vld [vmem:[#allocation2 + $0x50] sm:$0xff]
        %v1073 = vld [vmem:[#allocation2 + $0x58] sm:$0xff]
        %1075 = vrot.lane.b32.xlu0 %v1073, 97
        %v1076 = vpop.permute.xlu0 %1075
        %1079 = vrot.lane.b32.xlu0 %v1071, 97
        %v1080 = vpop.permute.xlu0 %1079
        %1081 = vrot.lane.b32.xlu0 %v1072, 97
        %v1082 = vpop.permute.xlu0 %1081
        %vm1083 = vcmask 793600
        %v1084 = vsel %vm1083, %v1080, %v1082
        %v1085 = vsel %vm1083, %v1082, %v1076
        %v1089 = vsel %vm406, %v1076, %v1084
        %v1091 = vsel %vm425, %v1089, 0
        %v1092 = vsel %vm426, %v1085, 0
        %1093 = vrot.lane.b32.xlu0 %v1071, 95
        %v1094 = vpop.permute.xlu0 %1093
        %1095 = vrot.lane.b32.xlu0 %v1072, 95
        %v1096 = vpop.permute.xlu0 %1095
        %1097 = vrot.lane.b32.xlu0 %v1073, 95
        %v1098 = vpop.permute.xlu0 %1097
        %vm1099 = vcmask 777216
        %v1100 = vsel %vm1099, %v1094, %v1096
        %v1101 = vsel %vm1099, %v1096, %v1098
        %v1105 = vsel %vm439, %v1101, %v1094
        %v1107 = vsel %vm458, %v1100, 0
        %v1108 = vsel %vm459, %v1105, 0
        %1109 = vst [vmem:[#allocation3 + $0xc0] sm:$0xff] %v1091
        %1110 = vst [vmem:[#allocation3 + $0xc8] sm:$0xff] %v1092
        %1111 = vrot.lane.b32.xlu0 %v1071, 96
        %v1112 = vpop.permute.xlu0 %1111
        %1113 = vrot.lane.b32.xlu0 %v1072, 96
        %v1114 = vpop.permute.xlu0 %1113
        %1115 = vrot.lane.b32.xlu0 %v1073, 96
        %v1116 = vpop.permute.xlu0 %1115
        %vm1117 = vcmask 785408
        %v1118 = vsel %vm1117, %v1112, %v1114
        %v1119 = vsel %vm1117, %v1114, %v1116
        %1122 = vst [vmem:[#allocation3 + $0xe0] sm:$0xff] %v1118
        %1123 = vst [vmem:[#allocation3 + $0xe8] sm:$0xff] %v1119
        %1124 = vst [vmem:[#allocation3 + $0x100] sm:$0xff] %v1107
        %1125 = vst [vmem:[#allocation3 + $0x108] sm:$0xff] %v1108
        %v1126 = vld [vmem:[#allocation2 + $0x60] sm:$0xff]
        %v1127 = vld [vmem:[#allocation2 + $0x68] sm:$0xff]
        %v1128 = vld [vmem:[#allocation2 + $0x70] sm:$0xff]
        %1130 = vrot.lane.b32.xlu0 %v1128, 33
        %v1131 = vpop.permute.xlu0 %1130
        %1134 = vrot.lane.b32.xlu0 %v1126, 33
        %v1135 = vpop.permute.xlu0 %1134
        %1136 = vrot.lane.b32.xlu0 %v1127, 33
        %v1137 = vpop.permute.xlu0 %1136
        %v1138 = vsel %vm994, %v1135, %v1137
        %v1139 = vsel %vm994, %v1137, %v1131
        %v1143 = vsel %vm406, %v1131, %v1138
        %v1145 = vsel %vm425, %v1143, 0
        %v1146 = vsel %vm426, %v1139, 0
        %1147 = vrot.lane.b32.xlu0 %v1126, 31
        %v1148 = vpop.permute.xlu0 %1147
        %1149 = vrot.lane.b32.xlu0 %v1127, 31
        %v1150 = vpop.permute.xlu0 %1149
        %1151 = vrot.lane.b32.xlu0 %v1128, 31
        %v1152 = vpop.permute.xlu0 %1151
        %v1153 = vsel %vm1010, %v1148, %v1150
        %v1154 = vsel %vm1010, %v1150, %v1152
        %v1158 = vsel %vm439, %v1154, %v1148
        %v1160 = vsel %vm458, %v1153, 0
        %v1161 = vsel %vm459, %v1158, 0
        %1162 = vst [vmem:[#allocation3 + $0x10] sm:$0xff] %v1145
        %1163 = vst [vmem:[#allocation3 + $0x18] sm:$0xff] %v1146
        %1164 = vrot.lane.b32.xlu0 %v1126, 32
        %v1165 = vpop.permute.xlu0 %1164
        %1166 = vrot.lane.b32.xlu0 %v1127, 32
        %v1167 = vpop.permute.xlu0 %1166
        %1168 = vrot.lane.b32.xlu0 %v1128, 32
        %v1169 = vpop.permute.xlu0 %1168
        %v1170 = vsel %vm1028, %v1165, %v1167
        %v1171 = vsel %vm1028, %v1167, %v1169
        %1174 = vst [vmem:[#allocation3 + $0x30] sm:$0xff] %v1170
        %1175 = vst [vmem:[#allocation3 + $0x38] sm:$0xff] %v1171
        %1176 = vst [vmem:[#allocation3 + $0x50] sm:$0xff] %v1160
        %1177 = vst [vmem:[#allocation3 + $0x58] sm:$0xff] %v1161
        %v1178 = vld [vmem:[#allocation2 + $0x68] sm:$0xff]
        %v1179 = vld [vmem:[#allocation2 + $0x70] sm:$0xff]
        %1181 = vrot.lane.b32.xlu0 %v1179, 1
        %v1182 = vpop.permute.xlu0 %1181
        %1184 = vrot.lane.b32.xlu0 %v1178, 1
        %v1185 = vpop.permute.xlu0 %1184
        %v1186 = vsel %vm499, %v1185, %v1182
        %v1190 = vsel %vm406, %v1182, %v1185
        %v1192 = vsel %vm425, %v1190, 0
        %v1193 = vsel %vm426, %v1186, 0
        %1194 = vrot.lane.b32.xlu0 %v1178, 127
        %v1195 = vpop.permute.xlu0 %1194
        %1196 = vrot.lane.b32.xlu0 %v1179, 127
        %v1197 = vpop.permute.xlu0 %1196
        %v1198 = vsel %vm512, %v1195, %v1197
        %v1202 = vsel %vm439, %v1197, %v1195
        %v1204 = vsel %vm458, %v1198, 0
        %v1205 = vsel %vm459, %v1202, 0
        %1206 = vst [vmem:[#allocation3 + $0x70] sm:$0xff] %v1192
        %1207 = vst [vmem:[#allocation3 + $0x78] sm:$0xff] %v1193
        %1208 = vst [vmem:[#allocation3 + $0x90] sm:$0xff] %v1178
        %1209 = vst [vmem:[#allocation3 + $0x98] sm:$0xff] %v1179
        %1210 = vst [vmem:[#allocation3 + $0xb0] sm:$0xff] %v1204
        %1211 = vst [vmem:[#allocation3 + $0xb8] sm:$0xff] %v1205
        %v1212 = vld [vmem:[#allocation2 + $0x68] sm:$0xff]
        %v1213 = vld [vmem:[#allocation2 + $0x70] sm:$0xff]
        %v1214 = vld [vmem:[#allocation2 + $0x78] sm:$0xff]
        %1216 = vrot.lane.b32.xlu0 %v1214, 97
        %v1217 = vpop.permute.xlu0 %1216
        %1220 = vrot.lane.b32.xlu0 %v1212, 97
        %v1221 = vpop.permute.xlu0 %1220
        %1222 = vrot.lane.b32.xlu0 %v1213, 97
        %v1223 = vpop.permute.xlu0 %1222
        %v1224 = vsel %vm1083, %v1221, %v1223
        %v1225 = vsel %vm1083, %v1223, %v1217
        %v1229 = vsel %vm406, %v1217, %v1224
        %v1231 = vsel %vm425, %v1229, 0
        %v1232 = vsel %vm426, %v1225, 0
        %1233 = vrot.lane.b32.xlu0 %v1212, 95
        %v1234 = vpop.permute.xlu0 %1233
        %1235 = vrot.lane.b32.xlu0 %v1213, 95
        %v1236 = vpop.permute.xlu0 %1235
        %1237 = vrot.lane.b32.xlu0 %v1214, 95
        %v1238 = vpop.permute.xlu0 %1237
        %v1239 = vsel %vm1099, %v1234, %v1236
        %v1240 = vsel %vm1099, %v1236, %v1238
        %v1244 = vsel %vm439, %v1240, %v1234
        %v1246 = vsel %vm458, %v1239, 0
        %v1247 = vsel %vm459, %v1244, 0
        %1248 = vst [vmem:[#allocation3 + $0xd0] sm:$0xff] %v1231
        %1249 = vst [vmem:[#allocation3 + $0xd8] sm:$0xff] %v1232
        %1250 = vrot.lane.b32.xlu0 %v1212, 96
        %v1251 = vpop.permute.xlu0 %1250
        %1252 = vrot.lane.b32.xlu0 %v1213, 96
        %v1253 = vpop.permute.xlu0 %1252
        %1254 = vrot.lane.b32.xlu0 %v1214, 96
        %v1255 = vpop.permute.xlu0 %1254
        %v1256 = vsel %vm1117, %v1251, %v1253
        %v1257 = vsel %vm1117, %v1253, %v1255
        %1260 = vst [vmem:[#allocation3 + $0xf0] sm:$0xff] %v1256
        %1261 = vst [vmem:[#allocation3 + $0xf8] sm:$0xff] %v1257
        %1262 = vst [vmem:[#allocation3 + $0x110] sm:$0xff] %v1246
        %1263 = vst [vmem:[#allocation3 + $0x118] sm:$0xff] %v1247
        %v1264 = vld [vmem:[#allocation3] sm:$0xff]
        %v1265 = vld [vmem:[#allocation3 + $0x8] sm:$0xff]
        %v1266 = vld [vmem:[#allocation3 + $0x10] sm:$0xff]
        %v1267 = vld [vmem:[#allocation3 + $0x18] sm:$0xff]
        %v1268 = vld [vmem:[#allocation3 + $0x20] sm:$0xff]
        %v1269 = vld [vmem:[#allocation3 + $0x28] sm:$0xff]
        %v1270 = vld [vmem:[#allocation3 + $0x30] sm:$0xff]
        %v1271 = vld [vmem:[#allocation3 + $0x38] sm:$0xff]
        %v1272 = vld [vmem:[#allocation3 + $0x40] sm:$0xff]
        %v1273 = vld [vmem:[#allocation3 + $0x48] sm:$0xff]
        %v1274 = vld [vmem:[#allocation3 + $0x50] sm:$0xff]
        %v1275 = vld [vmem:[#allocation3 + $0x58] sm:$0xff]
        %v1276 = vld [vmem:[#allocation3 + $0x60] sm:$0xff]
        %v1277 = vld [vmem:[#allocation3 + $0x68] sm:$0xff]
        %v1278 = vld [vmem:[#allocation3 + $0x70] sm:$0xff]
        %v1279 = vld [vmem:[#allocation3 + $0x78] sm:$0xff]
        %v1280 = vld [vmem:[#allocation3 + $0x80] sm:$0xff]
        %v1281 = vld [vmem:[#allocation3 + $0x88] sm:$0xff]
        %v1282 = vld [vmem:[#allocation3 + $0x90] sm:$0xff]
        %v1283 = vld [vmem:[#allocation3 + $0x98] sm:$0xff]
        %v1284 = vld [vmem:[#allocation3 + $0xa0] sm:$0xff]
        %v1285 = vld [vmem:[#allocation3 + $0xa8] sm:$0xff]
        %v1286 = vld [vmem:[#allocation3 + $0xb0] sm:$0xff]
        %v1287 = vld [vmem:[#allocation3 + $0xb8] sm:$0xff]
        %v1288 = vld [vmem:[#allocation3 + $0xc0] sm:$0xff]
        %v1289 = vld [vmem:[#allocation3 + $0xc8] sm:$0xff]
        %v1290 = vld [vmem:[#allocation3 + $0xd0] sm:$0xff]
        %v1291 = vld [vmem:[#allocation3 + $0xd8] sm:$0xff]
        %v1292 = vld [vmem:[#allocation3 + $0xe0] sm:$0xff]
        %v1293 = vld [vmem:[#allocation3 + $0xe8] sm:$0xff]
        %v1294 = vld [vmem:[#allocation3 + $0xf0] sm:$0xff]
        %v1295 = vld [vmem:[#allocation3 + $0xf8] sm:$0xff]
        %v1296 = vld [vmem:[#allocation3 + $0x100] sm:$0xff]
        %v1297 = vld [vmem:[#allocation3 + $0x108] sm:$0xff]
        %v1298 = vld [vmem:[#allocation3 + $0x110] sm:$0xff]
        %v1299 = vld [vmem:[#allocation3 + $0x118] sm:$0xff]
        %v1300 = vld [vmem:[#allocation9] sm:$0xff]
        %v1302 = vunpack.c.l.b16 %v1300
        %v1303 = vunpack.c.h.b16 %v1300
        %v1304 = vpack.c.b16 %v1302, %v1302
        %v1305 = vpack.c.b16 %v1303, %v1303
        %vm1307 = vcmask 130048
        %v1309 = vsel %vm1307, %v1305, 0
        %1311 = vmatprep.subr.bf16.mxu0 %v1265
        %1312 = vmatpush1.bf16.msra.mxu0 %v1264
        %1313 = vmatprep.subr.bf16.mxu0 %v1269
        %1314 = vmatpush1.bf16.msra.mxu0 %v1268
        %1315 = vmatprep.subr.bf16.mxu0 %v1273
        %1316 = vmatpush1.bf16.msra.mxu0 %v1272
        %1317 = vmatprep.subr.bf16.mxu0 %v1277
        %1318 = vmatpush1.bf16.msra.mxu0 %v1276
        %1319 = vmatprep.subr.bf16.mxu0 %v1281
        %1320 = vmatpush1.bf16.msra.mxu0 %v1280
        %1321 = vmatprep.subr.bf16.mxu0 %v1285
        %1322 = vmatpush1.bf16.msra.mxu0 %v1284
        %1323 = vmatprep.subr.bf16.mxu0 %v1289
        %1324 = vmatpush1.bf16.msra.mxu0 %v1288
        %1325 = vmatprep.subr.bf16.mxu0 %v1293
        %1326 = vmatpush1.bf16.msra.mxu0 %v1292
        %1327 = vmatprep.subr.bf16.mxu0 %v1297
        %1328 = vmatpush1.bf16.msra.mxu0 %v1296
        %1329 = vmatprep.subr.bf16.mxu0 0
        %1330 = vmatpush1.bf16.msra.mxu0 0
        %1331 = vmatprep.subr.bf16.mxu0 0
        %1332 = vmatpush1.bf16.msra.mxu0 0
        %1333 = vmatprep.subr.bf16.mxu0 0
        %1334 = vmatpush1.bf16.msra.mxu0 0
        %1335 = vmatprep.subr.bf16.mxu0 0
        %1336 = vmatpush1.bf16.msra.mxu0 0
        %1337 = vmatprep.subr.bf16.mxu0 0
        %1338 = vmatpush1.bf16.msra.mxu0 0
        %1339 = vmatprep.subr.bf16.mxu0 0
        %1340 = vmatpush1.bf16.msra.mxu0 0
        %1341 = vmatprep.subr.bf16.mxu0 0
        %1342 = vmatpush1.bf16.msra.mxu0 0
        %1343 = vmatprep.mubr.bf16.mxu0 %v1309
        %1344 = vmatmul.mubr.bf16.gmra.mrb[0].mxu0 %v1304
        %v1345 = vpop.f32.mrb[0].mxu0
        %v1346 = vadd.f32 0.0, %v1345
        %v1347 = vpop.f32.mrb[0].mxu0
        %v1348 = vadd.f32 0.0, %v1347
        %v1349 = vpop.f32.mrb[0].mxu0
        %v1350 = vpop.f32.mrb[0].mxu0
        %1351 = vdwg.mxu0
        %1352 = vmatprep.subr.bf16.mxu0 %v1267
        %1353 = vmatpush1.bf16.msra.mxu0 %v1266
        %1354 = vmatprep.subr.bf16.mxu0 %v1271
        %1355 = vmatpush1.bf16.msra.mxu0 %v1270
        %1356 = vmatprep.subr.bf16.mxu0 %v1275
        %1357 = vmatpush1.bf16.msra.mxu0 %v1274
        %1358 = vmatprep.subr.bf16.mxu0 %v1279
        %1359 = vmatpush1.bf16.msra.mxu0 %v1278
        %1360 = vmatprep.subr.bf16.mxu0 %v1283
        %1361 = vmatpush1.bf16.msra.mxu0 %v1282
        %1362 = vmatprep.subr.bf16.mxu0 %v1287
        %1363 = vmatpush1.bf16.msra.mxu0 %v1286
        %1364 = vmatprep.subr.bf16.mxu0 %v1291
        %1365 = vmatpush1.bf16.msra.mxu0 %v1290
        %1366 = vmatprep.subr.bf16.mxu0 %v1295
        %1367 = vmatpush1.bf16.msra.mxu0 %v1294
        %1368 = vmatprep.subr.bf16.mxu0 %v1299
        %1369 = vmatpush1.bf16.msra.mxu0 %v1298
        %1370 = vmatprep.subr.bf16.mxu0 0
        %1371 = vmatpush1.bf16.msra.mxu0 0
        %1372 = vmatprep.subr.bf16.mxu0 0
        %1373 = vmatpush1.bf16.msra.mxu0 0
        %1374 = vmatprep.subr.bf16.mxu0 0
        %1375 = vmatpush1.bf16.msra.mxu0 0
        %1376 = vmatprep.subr.bf16.mxu0 0
        %1377 = vmatpush1.bf16.msra.mxu0 0
        %1378 = vmatprep.subr.bf16.mxu0 0
        %1379 = vmatpush1.bf16.msra.mxu0 0
        %1380 = vmatprep.subr.bf16.mxu0 0
        %1381 = vmatpush1.bf16.msra.mxu0 0
        %1382 = vmatprep.subr.bf16.mxu0 0
        %1383 = vmatpush1.bf16.msra.mxu0 0
        %1384 = vmatprep.mubr.bf16.mxu0 %v1309
        %1385 = vmatmul.mubr.bf16.gmra.mrb[0].mxu0 %v1304
        %v1386 = vpop.f32.mrb[0].mxu0
        %v1387 = vadd.f32 0.0, %v1386
        %v1388 = vpop.f32.mrb[0].mxu0
        %v1389 = vadd.f32 0.0, %v1388
        %v1390 = vpop.f32.mrb[0].mxu0
        %v1391 = vpop.f32.mrb[0].mxu0
        %1392 = vdwg.mxu0
        %v1393 = vld [vmem:[#allocation12] sm:$0xff]
        %v1394 = vadd.f32 %v1346, %v1348
        %1395 = vadd.xlane.f32.xlu0 %v1394
        %v1396 = vpop.xlane.xlu0 %1395
        %v1397 = vmul.f32 %v1396, 0.00390625
        %v1398 = vmul.f32 %v1346, %v1346
        %v1399 = vmul.f32 %v1348, %v1348
        %v1400 = vadd.f32 %v1398, %v1399
        %1401 = vadd.xlane.f32.xlu0 %v1400
        %v1402 = vpop.xlane.xlu0 %1401
        %v1403 = vmul.f32 %v1402, 0.00390625
        %v1404 = vmul.f32 %v1397, %v1397
        %v1405 = vsub.f32 %v1403, %v1404
        %v1406 = vmax.f32 %v1405, 0.0
        %v1407 = vadd.f32 %v1406, 1e-05
        %v1408 = vrsqrt.pop %v1407
        %v1409 = vmul.f32 %v1393, %v1408
        %v1410 = vmul.f32 %v1397, %v1409
        %1412 = vrot.lane.b32.xlu0 %v1410, 1
        %v1413 = vpop.permute.xlu0 %1412
        %v1415 = vsub.f32 %v1393, %v1413
        %1417 = vset.pattern.permute.xlu0 3
        %1418 = vperm.xlu0 %1417, %v1409
        %v1419 = vpop.permute.xlu0 %1418
        %v1421 = vmul.f32 %v1346, %v1419
        %v1422 = vmul.f32 %v1348, %v1419
        %1424 = vset.pattern.permute.xlu0 4
        %1425 = vperm.xlu0 %1424, %v1415
        %v1426 = vpop.permute.xlu0 %1425
        %v1428 = vadd.f32 %v1421, %v1426
        %v1429 = vadd.f32 %v1422, %v1426
        %vm1430 = vcmp.ge.f32.partialorder %v1428, 0.0
        %vm1431 = vcmp.ge.f32.partialorder %v1429, 0.0
        %1433 = vset.pattern.permute.xlu0 5
        %1434 = vperm.xlu0 %1433, %v1393
        %v1435 = vpop.permute.xlu0 %1434
        %v1437 = vmul.f32 %v1435, %v1428
        %v1438 = vmul.f32 %v1435, %v1429
        %v1439 = vsel %vm1430, %v1428, %v1437
        %v1440 = vsel %vm1431, %v1429, %v1438
        %v1441 = vpack.c.bf16 %v1439, %v1439
        %v1442 = vpack.c.bf16 %v1440, %v1440
        %v1445 = vrot.slane %v1441, 4
        %v1446 = vrot.slane %v1442, 4
        %1449 = vst [vmem:[#allocation2 + $0x8] sm:$0xf0] %v1445
        %1450 = vst [vmem:[#allocation2 + $0x10] sm:$0xf0] %v1446
        %v1451 = vadd.f32 %v1387, %v1389
        %1452 = vadd.xlane.f32.xlu0 %v1451
        %v1453 = vpop.xlane.xlu0 %1452
        %v1454 = vmul.f32 %v1453, 0.00390625
        %v1455 = vmul.f32 %v1387, %v1387
        %v1456 = vmul.f32 %v1389, %v1389
        %v1457 = vadd.f32 %v1455, %v1456
        %1458 = vadd.xlane.f32.xlu0 %v1457
        %v1459 = vpop.xlane.xlu0 %1458
        %v1460 = vmul.f32 %v1459, 0.00390625
        %v1461 = vmul.f32 %v1454, %v1454
        %v1462 = vsub.f32 %v1460, %v1461
        %v1463 = vmax.f32 %v1462, 0.0
        %v1464 = vadd.f32 %v1463, 1e-05
        %v1465 = vrsqrt.pop %v1464
        %v1466 = vmul.f32 %v1393, %v1465
        %v1467 = vmul.f32 %v1454, %v1466
        %1469 = vrot.lane.b32.xlu0 %v1467, 1
        %v1470 = vpop.permute.xlu0 %1469
        %v1472 = vsub.f32 %v1393, %v1470
        %1474 = vset.pattern.permute.xlu0 3
        %1475 = vperm.xlu0 %1474, %v1466
        %v1476 = vpop.permute.xlu0 %1475
        %v1478 = vmul.f32 %v1387, %v1476
        %v1479 = vmul.f32 %v1389, %v1476
        %1481 = vset.pattern.permute.xlu0 4
        %1482 = vperm.xlu0 %1481, %v1472
        %v1483 = vpop.permute.xlu0 %1482
        %v1485 = vadd.f32 %v1478, %v1483
        %v1486 = vadd.f32 %v1479, %v1483
        %vm1487 = vcmp.ge.f32.partialorder %v1485, 0.0
        %vm1488 = vcmp.ge.f32.partialorder %v1486, 0.0
        %v1489 = vmul.f32 %v1435, %v1485
        %v1490 = vmul.f32 %v1435, %v1486
        %v1491 = vsel %vm1487, %v1485, %v1489
        %v1492 = vsel %vm1488, %v1486, %v1490
        %v1493 = vpack.c.bf16 %v1491, %v1491
        %v1494 = vpack.c.bf16 %v1492, %v1492
        %v1497 = vrot.slane %v1493, 4
        %v1498 = vrot.slane %v1494, 4
        %1501 = vst [vmem:[#allocation2 + $0x28] sm:$0xf0] %v1497
        %1502 = vst [vmem:[#allocation2 + $0x30] sm:$0xf0] %v1498
        %v1503 = vld [vmem:[#allocation2] sm:$0xf0]
        %v1504 = vld [vmem:[#allocation2 + $0x8] sm:$0xf0]
        %v1505 = vld [vmem:[#allocation2 + $0x10] sm:$0xf0]
        %v1506 = vld [vmem:[#allocation2 + $0x40] sm:$0xff]
        %v1507 = vld [vmem:[#allocation2 + $0x48] sm:$0xff]
        %v1508 = vld [vmem:[#allocation2 + $0x50] sm:$0xff]
        %1511 = vrot.lane.b32.xlu0 %v1505, 65
        %v1512 = vpop.permute.xlu0 %1511
        %1513 = vrot.lane.b32.xlu0 %v1508, 65
        %v1514 = vpop.permute.xlu0 %1513
        %1519 = vrot.lane.b32.xlu0 %v1503, 65
        %v1520 = vpop.permute.xlu0 %1519
        %1521 = vrot.lane.b32.xlu0 %v1504, 65
        %v1522 = vpop.permute.xlu0 %1521
        %1523 = vrot.lane.b32.xlu0 %v1506, 65
        %v1524 = vpop.permute.xlu0 %1523
        %1525 = vrot.lane.b32.xlu0 %v1507, 65
        %v1526 = vpop.permute.xlu0 %1525
        %vm1527 = vcmask 531456
        %v1528 = vsel %vm1527, %v1520, %v1522
        %v1529 = vsel %vm1527, %v1522, %v1512
        %v1530 = vsel %vm1527, %v1524, %v1526
        %v1531 = vsel %vm1527, %v1526, %v1514
        %v1536 = vsel %vm406, %v1512, %v1528
        %v1540 = vsel %vm406, %v1514, %v1530
        %v1542 = vsel %vm425, %v1536, 0
        %v1543 = vsel %vm426, %v1529, 0
        %v1544 = vsel %vm425, %v1540, 0
        %v1545 = vsel %vm426, %v1531, 0
        %1546 = vrot.lane.b32.xlu0 %v1503, 63
        %v1547 = vpop.permute.xlu0 %1546
        %1548 = vrot.lane.b32.xlu0 %v1504, 63
        %v1549 = vpop.permute.xlu0 %1548
        %1550 = vrot.lane.b32.xlu0 %v1505, 63
        %v1551 = vpop.permute.xlu0 %1550
        %1552 = vrot.lane.b32.xlu0 %v1506, 63
        %v1553 = vpop.permute.xlu0 %1552
        %1554 = vrot.lane.b32.xlu0 %v1507, 63
        %v1555 = vpop.permute.xlu0 %1554
        %1556 = vrot.lane.b32.xlu0 %v1508, 63
        %v1557 = vpop.permute.xlu0 %1556
        %vm1558 = vcmask 515072
        %v1559 = vsel %vm1558, %v1547, %v1549
        %v1560 = vsel %vm1558, %v1549, %v1551
        %v1561 = vsel %vm1558, %v1553, %v1555
        %v1562 = vsel %vm1558, %v1555, %v1557
        %v1567 = vsel %vm439, %v1560, %v1547
        %v1571 = vsel %vm439, %v1562, %v1553
        %v1573 = vsel %vm458, %v1559, 0
        %v1574 = vsel %vm459, %v1567, 0
        %v1575 = vsel %vm458, %v1561, 0
        %v1576 = vsel %vm459, %v1571, 0
        %vm1581 = vcmask 1043456
        %v1582 = vrot.slane %v1542, 4
        %v1583 = vrot.slane %v1544, 4
        %v1584 = vsel %vm1581, %v1582, %v1583
        %v1585 = vrot.slane %v1543, 4
        %v1586 = vrot.slane %v1545, 4
        %v1587 = vsel %vm1581, %v1585, %v1586
        %1592 = vst [vmem:[#allocation3] sm:$0xff] %v1584
        %1593 = vst [vmem:[#allocation3 + $0x8] sm:$0xff] %v1587
        %1594 = vst [vmem:[#allocation3 + $0x20] sm:$0xf] %v1583
        %1595 = vst [vmem:[#allocation3 + $0x28] sm:$0xf] %v1586
        %1596 = vrot.lane.b32.xlu0 %v1503, 64
        %v1597 = vpop.permute.xlu0 %1596
        %1598 = vrot.lane.b32.xlu0 %v1504, 64
        %v1599 = vpop.permute.xlu0 %1598
        %1600 = vrot.lane.b32.xlu0 %v1505, 64
        %v1601 = vpop.permute.xlu0 %1600
        %1602 = vrot.lane.b32.xlu0 %v1506, 64
        %v1603 = vpop.permute.xlu0 %1602
        %1604 = vrot.lane.b32.xlu0 %v1507, 64
        %v1605 = vpop.permute.xlu0 %1604
        %1606 = vrot.lane.b32.xlu0 %v1508, 64
        %v1607 = vpop.permute.xlu0 %1606
        %vm1608 = vcmask 523264
        %v1609 = vsel %vm1608, %v1597, %v1599
        %v1610 = vsel %vm1608, %v1599, %v1601
        %v1611 = vsel %vm1608, %v1603, %v1605
        %v1612 = vsel %vm1608, %v1605, %v1607
        %1617 = vst [vmem:[#allocation3 + $0x20] sm:$0xf0] %v1609
        %1618 = vst [vmem:[#allocation3 + $0x28] sm:$0xf0] %v1610
        %1619 = vst [vmem:[#allocation3 + $0x40] sm:$0xff] %v1611
        %1620 = vst [vmem:[#allocation3 + $0x48] sm:$0xff] %v1612
        %v1625 = vrot.slane %v1573, 4
        %v1626 = vrot.slane %v1575, 4
        %v1627 = vsel %vm1581, %v1625, %v1626
        %v1628 = vrot.slane %v1574, 4
        %v1629 = vrot.slane %v1576, 4
        %v1630 = vsel %vm1581, %v1628, %v1629
        %1635 = vst [vmem:[#allocation3 + $0x60] sm:$0xff] %v1627
        %1636 = vst [vmem:[#allocation3 + $0x68] sm:$0xff] %v1630
        %1637 = vst [vmem:[#allocation3 + $0x80] sm:$0xf] %v1626
        %1638 = vst [vmem:[#allocation3 + $0x88] sm:$0xf] %v1629
        %v1639 = vld [vmem:[#allocation2 + $0x8] sm:$0xf0]
        %v1640 = vld [vmem:[#allocation2 + $0x10] sm:$0xf0]
        %v1641 = vld [vmem:[#allocation2 + $0x48] sm:$0xff]
        %v1642 = vld [vmem:[#allocation2 + $0x50] sm:$0xff]
        %1645 = vrot.lane.b32.xlu0 %v1640, 1
        %v1646 = vpop.permute.xlu0 %1645
        %1647 = vrot.lane.b32.xlu0 %v1642, 1
        %v1648 = vpop.permute.xlu0 %1647
        %1651 = vrot.lane.b32.xlu0 %v1639, 1
        %v1652 = vpop.permute.xlu0 %1651
        %1653 = vrot.lane.b32.xlu0 %v1641, 1
        %v1654 = vpop.permute.xlu0 %1653
        %v1655 = vsel %vm499, %v1652, %v1646
        %v1656 = vsel %vm499, %v1654, %v1648
        %v1661 = vsel %vm406, %v1646, %v1652
        %v1665 = vsel %vm406, %v1648, %v1654
        %v1667 = vsel %vm425, %v1661, 0
        %v1668 = vsel %vm426, %v1655, 0
        %v1669 = vsel %vm425, %v1665, 0
        %v1670 = vsel %vm426, %v1656, 0
        %1671 = vrot.lane.b32.xlu0 %v1639, 127
        %v1672 = vpop.permute.xlu0 %1671
        %1673 = vrot.lane.b32.xlu0 %v1640, 127
        %v1674 = vpop.permute.xlu0 %1673
        %1675 = vrot.lane.b32.xlu0 %v1641, 127
        %v1676 = vpop.permute.xlu0 %1675
        %1677 = vrot.lane.b32.xlu0 %v1642, 127
        %v1678 = vpop.permute.xlu0 %1677
        %v1679 = vsel %vm512, %v1672, %v1674
        %v1680 = vsel %vm512, %v1676, %v1678
        %v1685 = vsel %vm439, %v1674, %v1672
        %v1689 = vsel %vm439, %v1678, %v1676
        %v1691 = vsel %vm458, %v1679, 0
        %v1692 = vsel %vm459, %v1685, 0
        %v1693 = vsel %vm458, %v1680, 0
        %v1694 = vsel %vm459, %v1689, 0
        %1695 = vst [vmem:[#allocation3 + $0x80] sm:$0xf0] %v1667
        %1696 = vst [vmem:[#allocation3 + $0x88] sm:$0xf0] %v1668
        %1697 = vst [vmem:[#allocation3 + $0xa0] sm:$0xff] %v1669
        %1698 = vst [vmem:[#allocation3 + $0xa8] sm:$0xff] %v1670
        %v1699 = vrot.slane %v1639, 4
        %v1700 = vrot.slane %v1641, 4
        %v1701 = vsel %vm1581, %v1699, %v1700
        %v1702 = vrot.slane %v1640, 4
        %v1703 = vrot.slane %v1642, 4
        %v1704 = vsel %vm1581, %v1702, %v1703
        %1709 = vst [vmem:[#allocation3 + $0xc0] sm:$0xff] %v1701
        %1710 = vst [vmem:[#allocation3 + $0xc8] sm:$0xff] %v1704
        %1711 = vst [vmem:[#allocation3 + $0xe0] sm:$0xf] %v1700
        %1712 = vst [vmem:[#allocation3 + $0xe8] sm:$0xf] %v1703
        %1713 = vst [vmem:[#allocation3 + $0xe0] sm:$0xf0] %v1691
        %1714 = vst [vmem:[#allocation3 + $0xe8] sm:$0xf0] %v1692
        %1715 = vst [vmem:[#allocation3 + $0x100] sm:$0xff] %v1693
        %1716 = vst [vmem:[#allocation3 + $0x108] sm:$0xff] %v1694
        %v1717 = vld [vmem:[#allocation2 + $0x8] sm:$0xf0]
        %v1718 = vld [vmem:[#allocation2 + $0x10] sm:$0xf0]
        %v1719 = vld [vmem:[#allocation2 + $0x18] sm:$0xf0]
        %v1720 = vld [vmem:[#allocation2 + $0x48] sm:$0xff]
        %v1721 = vld [vmem:[#allocation2 + $0x50] sm:$0xff]
        %v1722 = vld [vmem:[#allocation2 + $0x58] sm:$0xff]
        %1725 = vrot.lane.b32.xlu0 %v1719, 65
        %v1726 = vpop.permute.xlu0 %1725
        %1727 = vrot.lane.b32.xlu0 %v1722, 65
        %v1728 = vpop.permute.xlu0 %1727
        %1733 = vrot.lane.b32.xlu0 %v1717, 65
        %v1734 = vpop.permute.xlu0 %1733
        %1735 = vrot.lane.b32.xlu0 %v1718, 65
        %v1736 = vpop.permute.xlu0 %1735
        %1737 = vrot.lane.b32.xlu0 %v1720, 65
        %v1738 = vpop.permute.xlu0 %1737
        %1739 = vrot.lane.b32.xlu0 %v1721, 65
        %v1740 = vpop.permute.xlu0 %1739
        %v1741 = vsel %vm1527, %v1734, %v1736
        %v1742 = vsel %vm1527, %v1736, %v1726
        %v1743 = vsel %vm1527, %v1738, %v1740
        %v1744 = vsel %vm1527, %v1740, %v1728
        %v1749 = vsel %vm406, %v1726, %v1741
        %v1753 = vsel %vm406, %v1728, %v1743
        %v1755 = vsel %vm425, %v1749, 0
        %v1756 = vsel %vm426, %v1742, 0
        %v1757 = vsel %vm425, %v1753, 0
        %v1758 = vsel %vm426, %v1744, 0
        %1759 = vrot.lane.b32.xlu0 %v1717, 63
        %v1760 = vpop.permute.xlu0 %1759
        %1761 = vrot.lane.b32.xlu0 %v1718, 63
        %v1762 = vpop.permute.xlu0 %1761
        %1763 = vrot.lane.b32.xlu0 %v1719, 63
        %v1764 = vpop.permute.xlu0 %1763
        %1765 = vrot.lane.b32.xlu0 %v1720, 63
        %v1766 = vpop.permute.xlu0 %1765
        %1767 = vrot.lane.b32.xlu0 %v1721, 63
        %v1768 = vpop.permute.xlu0 %1767
        %1769 = vrot.lane.b32.xlu0 %v1722, 63
        %v1770 = vpop.permute.xlu0 %1769
        %v1771 = vsel %vm1558, %v1760, %v1762
        %v1772 = vsel %vm1558, %v1762, %v1764
        %v1773 = vsel %vm1558, %v1766, %v1768
        %v1774 = vsel %vm1558, %v1768, %v1770
        %v1779 = vsel %vm439, %v1772, %v1760
        %v1783 = vsel %vm439, %v1774, %v1766
        %v1785 = vsel %vm458, %v1771, 0
        %v1786 = vsel %vm459, %v1779, 0
        %v1787 = vsel %vm458, %v1773, 0
        %v1788 = vsel %vm459, %v1783, 0
        %v1793 = vrot.slane %v1755, 4
        %v1794 = vrot.slane %v1757, 4
        %v1795 = vsel %vm1581, %v1793, %v1794
        %v1796 = vrot.slane %v1756, 4
        %v1797 = vrot.slane %v1758, 4
        %v1798 = vsel %vm1581, %v1796, %v1797
        %1803 = vst [vmem:[#allocation3 + $0x120] sm:$0xff] %v1795
        %1804 = vst [vmem:[#allocation3 + $0x128] sm:$0xff] %v1798
        %1805 = vst [vmem:[#allocation3 + $0x140] sm:$0xf] %v1794
        %1806 = vst [vmem:[#allocation3 + $0x148] sm:$0xf] %v1797
        %1807 = vrot.lane.b32.xlu0 %v1717, 64
        %v1808 = vpop.permute.xlu0 %1807
        %1809 = vrot.lane.b32.xlu0 %v1718, 64
        %v1810 = vpop.permute.xlu0 %1809
        %1811 = vrot.lane.b32.xlu0 %v1719, 64
        %v1812 = vpop.permute.xlu0 %1811
        %1813 = vrot.lane.b32.xlu0 %v1720, 64
        %v1814 = vpop.permute.xlu0 %1813
        %1815 = vrot.lane.b32.xlu0 %v1721, 64
        %v1816 = vpop.permute.xlu0 %1815
        %1817 = vrot.lane.b32.xlu0 %v1722, 64
        %v1818 = vpop.permute.xlu0 %1817
        %v1819 = vsel %vm1608, %v1808, %v1810
        %v1820 = vsel %vm1608, %v1810, %v1812
        %v1821 = vsel %vm1608, %v1814, %v1816
        %v1822 = vsel %vm1608, %v1816, %v1818
        %1827 = vst [vmem:[#allocation3 + $0x140] sm:$0xf0] %v1819
        %1828 = vst [vmem:[#allocation3 + $0x148] sm:$0xf0] %v1820
        %1829 = vst [vmem:[#allocation3 + $0x160] sm:$0xff] %v1821
        %1830 = vst [vmem:[#allocation3 + $0x168] sm:$0xff] %v1822
        %v1835 = vrot.slane %v1785, 4
        %v1836 = vrot.slane %v1787, 4
        %v1837 = vsel %vm1581, %v1835, %v1836
        %v1838 = vrot.slane %v1786, 4
        %v1839 = vrot.slane %v1788, 4
        %v1840 = vsel %vm1581, %v1838, %v1839
        %1845 = vst [vmem:[#allocation3 + $0x180] sm:$0xff] %v1837
        %1846 = vst [vmem:[#allocation3 + $0x188] sm:$0xff] %v1840
        %1847 = vst [vmem:[#allocation3 + $0x1a0] sm:$0xf] %v1836
        %1848 = vst [vmem:[#allocation3 + $0x1a8] sm:$0xf] %v1839
        %v1849 = vld [vmem:[#allocation2 + $0x20] sm:$0xf0]
        %v1850 = vld [vmem:[#allocation2 + $0x28] sm:$0xf0]
        %v1851 = vld [vmem:[#allocation2 + $0x30] sm:$0xf0]
        %v1852 = vld [vmem:[#allocation2 + $0x60] sm:$0xff]
        %v1853 = vld [vmem:[#allocation2 + $0x68] sm:$0xff]
        %v1854 = vld [vmem:[#allocation2 + $0x70] sm:$0xff]
        %1857 = vrot.lane.b32.xlu0 %v1851, 65
        %v1858 = vpop.permute.xlu0 %1857
        %1859 = vrot.lane.b32.xlu0 %v1854, 65
        %v1860 = vpop.permute.xlu0 %1859
        %1865 = vrot.lane.b32.xlu0 %v1849, 65
        %v1866 = vpop.permute.xlu0 %1865
        %1867 = vrot.lane.b32.xlu0 %v1850, 65
        %v1868 = vpop.permute.xlu0 %1867
        %1869 = vrot.lane.b32.xlu0 %v1852, 65
        %v1870 = vpop.permute.xlu0 %1869
        %1871 = vrot.lane.b32.xlu0 %v1853, 65
        %v1872 = vpop.permute.xlu0 %1871
        %v1873 = vsel %vm1527, %v1866, %v1868
        %v1874 = vsel %vm1527, %v1868, %v1858
        %v1875 = vsel %vm1527, %v1870, %v1872
        %v1876 = vsel %vm1527, %v1872, %v1860
        %v1881 = vsel %vm406, %v1858, %v1873
        %v1885 = vsel %vm406, %v1860, %v1875
        %v1887 = vsel %vm425, %v1881, 0
        %v1888 = vsel %vm426, %v1874, 0
        %v1889 = vsel %vm425, %v1885, 0
        %v1890 = vsel %vm426, %v1876, 0
        %1891 = vrot.lane.b32.xlu0 %v1849, 63
        %v1892 = vpop.permute.xlu0 %1891
        %1893 = vrot.lane.b32.xlu0 %v1850, 63
        %v1894 = vpop.permute.xlu0 %1893
        %1895 = vrot.lane.b32.xlu0 %v1851, 63
        %v1896 = vpop.permute.xlu0 %1895
        %1897 = vrot.lane.b32.xlu0 %v1852, 63
        %v1898 = vpop.permute.xlu0 %1897
        %1899 = vrot.lane.b32.xlu0 %v1853, 63
        %v1900 = vpop.permute.xlu0 %1899
        %1901 = vrot.lane.b32.xlu0 %v1854, 63
        %v1902 = vpop.permute.xlu0 %1901
        %v1903 = vsel %vm1558, %v1892, %v1894
        %v1904 = vsel %vm1558, %v1894, %v1896
        %v1905 = vsel %vm1558, %v1898, %v1900
        %v1906 = vsel %vm1558, %v1900, %v1902
        %v1911 = vsel %vm439, %v1904, %v1892
        %v1915 = vsel %vm439, %v1906, %v1898
        %v1917 = vsel %vm458, %v1903, 0
        %v1918 = vsel %vm459, %v1911, 0
        %v1919 = vsel %vm458, %v1905, 0
        %v1920 = vsel %vm459, %v1915, 0
        %v1925 = vrot.slane %v1887, 4
        %v1926 = vrot.slane %v1889, 4
        %v1927 = vsel %vm1581, %v1925, %v1926
        %v1928 = vrot.slane %v1888, 4
        %v1929 = vrot.slane %v1890, 4
        %v1930 = vsel %vm1581, %v1928, %v1929
        %1935 = vst [vmem:[#allocation3 + $0x10] sm:$0xff] %v1927
        %1936 = vst [vmem:[#allocation3 + $0x18] sm:$0xff] %v1930
        %1937 = vst [vmem:[#allocation3 + $0x30] sm:$0xf] %v1926
        %1938 = vst [vmem:[#allocation3 + $0x38] sm:$0xf] %v1929
        %1939 = vrot.lane.b32.xlu0 %v1849, 64
        %v1940 = vpop.permute.xlu0 %1939
        %1941 = vrot.lane.b32.xlu0 %v1850, 64
        %v1942 = vpop.permute.xlu0 %1941
        %1943 = vrot.lane.b32.xlu0 %v1851, 64
        %v1944 = vpop.permute.xlu0 %1943
        %1945 = vrot.lane.b32.xlu0 %v1852, 64
        %v1946 = vpop.permute.xlu0 %1945
        %1947 = vrot.lane.b32.xlu0 %v1853, 64
        %v1948 = vpop.permute.xlu0 %1947
        %1949 = vrot.lane.b32.xlu0 %v1854, 64
        %v1950 = vpop.permute.xlu0 %1949
        %v1951 = vsel %vm1608, %v1940, %v1942
        %v1952 = vsel %vm1608, %v1942, %v1944
        %v1953 = vsel %vm1608, %v1946, %v1948
        %v1954 = vsel %vm1608, %v1948, %v1950
        %1959 = vst [vmem:[#allocation3 + $0x30] sm:$0xf0] %v1951
        %1960 = vst [vmem:[#allocation3 + $0x38] sm:$0xf0] %v1952
        %1961 = vst [vmem:[#allocation3 + $0x50] sm:$0xff] %v1953
        %1962 = vst [vmem:[#allocation3 + $0x58] sm:$0xff] %v1954
        %v1967 = vrot.slane %v1917, 4
        %v1968 = vrot.slane %v1919, 4
        %v1969 = vsel %vm1581, %v1967, %v1968
        %v1970 = vrot.slane %v1918, 4
        %v1971 = vrot.slane %v1920, 4
        %v1972 = vsel %vm1581, %v1970, %v1971
        %1977 = vst [vmem:[#allocation3 + $0x70] sm:$0xff] %v1969
        %1978 = vst [vmem:[#allocation3 + $0x78] sm:$0xff] %v1972
        %1979 = vst [vmem:[#allocation3 + $0x90] sm:$0xf] %v1968
        %1980 = vst [vmem:[#allocation3 + $0x98] sm:$0xf] %v1971
        %v1981 = vld [vmem:[#allocation2 + $0x28] sm:$0xf0]
        %v1982 = vld [vmem:[#allocation2 + $0x30] sm:$0xf0]
        %v1983 = vld [vmem:[#allocation2 + $0x68] sm:$0xff]
        %v1984 = vld [vmem:[#allocation2 + $0x70] sm:$0xff]
        %1987 = vrot.lane.b32.xlu0 %v1982, 1
        %v1988 = vpop.permute.xlu0 %1987
        %1989 = vrot.lane.b32.xlu0 %v1984, 1
        %v1990 = vpop.permute.xlu0 %1989
        %1993 = vrot.lane.b32.xlu0 %v1981, 1
        %v1994 = vpop.permute.xlu0 %1993
        %1995 = vrot.lane.b32.xlu0 %v1983, 1
        %v1996 = vpop.permute.xlu0 %1995
        %v1997 = vsel %vm499, %v1994, %v1988
        %v1998 = vsel %vm499, %v1996, %v1990
        %v2003 = vsel %vm406, %v1988, %v1994
        %v2007 = vsel %vm406, %v1990, %v1996
        %v2009 = vsel %vm425, %v2003, 0
        %v2010 = vsel %vm426, %v1997, 0
        %v2011 = vsel %vm425, %v2007, 0
        %v2012 = vsel %vm426, %v1998, 0
        %2013 = vrot.lane.b32.xlu0 %v1981, 127
        %v2014 = vpop.permute.xlu0 %2013
        %2015 = vrot.lane.b32.xlu0 %v1982, 127
        %v2016 = vpop.permute.xlu0 %2015
        %2017 = vrot.lane.b32.xlu0 %v1983, 127
        %v2018 = vpop.permute.xlu0 %2017
        %2019 = vrot.lane.b32.xlu0 %v1984, 127
        %v2020 = vpop.permute.xlu0 %2019
        %v2021 = vsel %vm512, %v2014, %v2016
        %v2022 = vsel %vm512, %v2018, %v2020
        %v2027 = vsel %vm439, %v2016, %v2014
        %v2031 = vsel %vm439, %v2020, %v2018
        %v2033 = vsel %vm458, %v2021, 0
        %v2034 = vsel %vm459, %v2027, 0
        %v2035 = vsel %vm458, %v2022, 0
        %v2036 = vsel %vm459, %v2031, 0
        %2037 = vst [vmem:[#allocation3 + $0x90] sm:$0xf0] %v2009
        %2038 = vst [vmem:[#allocation3 + $0x98] sm:$0xf0] %v2010
        %2039 = vst [vmem:[#allocation3 + $0xb0] sm:$0xff] %v2011
        %2040 = vst [vmem:[#allocation3 + $0xb8] sm:$0xff] %v2012
        %v2041 = vrot.slane %v1981, 4
        %v2042 = vrot.slane %v1983, 4
        %v2043 = vsel %vm1581, %v2041, %v2042
        %v2044 = vrot.slane %v1982, 4
        %v2045 = vrot.slane %v1984, 4
        %v2046 = vsel %vm1581, %v2044, %v2045
        %2051 = vst [vmem:[#allocation3 + $0xd0] sm:$0xff] %v2043
        %2052 = vst [vmem:[#allocation3 + $0xd8] sm:$0xff] %v2046
        %2053 = vst [vmem:[#allocation3 + $0xf0] sm:$0xf] %v2042
        %2054 = vst [vmem:[#allocation3 + $0xf8] sm:$0xf] %v2045
        %2055 = vst [vmem:[#allocation3 + $0xf0] sm:$0xf0] %v2033
        %2056 = vst [vmem:[#allocation3 + $0xf8] sm:$0xf0] %v2034
        %2057 = vst [vmem:[#allocation3 + $0x110] sm:$0xff] %v2035
        %2058 = vst [vmem:[#allocation3 + $0x118] sm:$0xff] %v2036
        %v2059 = vld [vmem:[#allocation2 + $0x28] sm:$0xf0]
        %v2060 = vld [vmem:[#allocation2 + $0x30] sm:$0xf0]
        %v2061 = vld [vmem:[#allocation2 + $0x38] sm:$0xf0]
        %v2062 = vld [vmem:[#allocation2 + $0x68] sm:$0xff]
        %v2063 = vld [vmem:[#allocation2 + $0x70] sm:$0xff]
        %v2064 = vld [vmem:[#allocation2 + $0x78] sm:$0xff]
        %2067 = vrot.lane.b32.xlu0 %v2061, 65
        %v2068 = vpop.permute.xlu0 %2067
        %2069 = vrot.lane.b32.xlu0 %v2064, 65
        %v2070 = vpop.permute.xlu0 %2069
        %2075 = vrot.lane.b32.xlu0 %v2059, 65
        %v2076 = vpop.permute.xlu0 %2075
        %2077 = vrot.lane.b32.xlu0 %v2060, 65
        %v2078 = vpop.permute.xlu0 %2077
        %2079 = vrot.lane.b32.xlu0 %v2062, 65
        %v2080 = vpop.permute.xlu0 %2079
        %2081 = vrot.lane.b32.xlu0 %v2063, 65
        %v2082 = vpop.permute.xlu0 %2081
        %v2083 = vsel %vm1527, %v2076, %v2078
        %v2084 = vsel %vm1527, %v2078, %v2068
        %v2085 = vsel %vm1527, %v2080, %v2082
        %v2086 = vsel %vm1527, %v2082, %v2070
        %v2091 = vsel %vm406, %v2068, %v2083
        %v2095 = vsel %vm406, %v2070, %v2085
        %v2097 = vsel %vm425, %v2091, 0
        %v2098 = vsel %vm426, %v2084, 0
        %v2099 = vsel %vm425, %v2095, 0
        %v2100 = vsel %vm426, %v2086, 0
        %2101 = vrot.lane.b32.xlu0 %v2059, 63
        %v2102 = vpop.permute.xlu0 %2101
        %2103 = vrot.lane.b32.xlu0 %v2060, 63
        %v2104 = vpop.permute.xlu0 %2103
        %2105 = vrot.lane.b32.xlu0 %v2061, 63
        %v2106 = vpop.permute.xlu0 %2105
        %2107 = vrot.lane.b32.xlu0 %v2062, 63
        %v2108 = vpop.permute.xlu0 %2107
        %2109 = vrot.lane.b32.xlu0 %v2063, 63
        %v2110 = vpop.permute.xlu0 %2109
        %2111 = vrot.lane.b32.xlu0 %v2064, 63
        %v2112 = vpop.permute.xlu0 %2111
        %v2113 = vsel %vm1558, %v2102, %v2104
        %v2114 = vsel %vm1558, %v2104, %v2106
        %v2115 = vsel %vm1558, %v2108, %v2110
        %v2116 = vsel %vm1558, %v2110, %v2112
        %v2121 = vsel %vm439, %v2114, %v2102
        %v2125 = vsel %vm439, %v2116, %v2108
        %v2127 = vsel %vm458, %v2113, 0
        %v2128 = vsel %vm459, %v2121, 0
        %v2129 = vsel %vm458, %v2115, 0
        %v2130 = vsel %vm459, %v2125, 0
        %v2135 = vrot.slane %v2097, 4
        %v2136 = vrot.slane %v2099, 4
        %v2137 = vsel %vm1581, %v2135, %v2136
        %v2138 = vrot.slane %v2098, 4
        %v2139 = vrot.slane %v2100, 4
        %v2140 = vsel %vm1581, %v2138, %v2139
        %2145 = vst [vmem:[#allocation3 + $0x130] sm:$0xff] %v2137
        %2146 = vst [vmem:[#allocation3 + $0x138] sm:$0xff] %v2140
        %2147 = vst [vmem:[#allocation3 + $0x150] sm:$0xf] %v2136
        %2148 = vst [vmem:[#allocation3 + $0x158] sm:$0xf] %v2139
        %2149 = vrot.lane.b32.xlu0 %v2059, 64
        %v2150 = vpop.permute.xlu0 %2149
        %2151 = vrot.lane.b32.xlu0 %v2060, 64
        %v2152 = vpop.permute.xlu0 %2151
        %2153 = vrot.lane.b32.xlu0 %v2061, 64
        %v2154 = vpop.permute.xlu0 %2153
        %2155 = vrot.lane.b32.xlu0 %v2062, 64
        %v2156 = vpop.permute.xlu0 %2155
        %2157 = vrot.lane.b32.xlu0 %v2063, 64
        %v2158 = vpop.permute.xlu0 %2157
        %2159 = vrot.lane.b32.xlu0 %v2064, 64
        %v2160 = vpop.permute.xlu0 %2159
        %v2161 = vsel %vm1608, %v2150, %v2152
        %v2162 = vsel %vm1608, %v2152, %v2154
        %v2163 = vsel %vm1608, %v2156, %v2158
        %v2164 = vsel %vm1608, %v2158, %v2160
        %2169 = vst [vmem:[#allocation3 + $0x150] sm:$0xf0] %v2161
        %2170 = vst [vmem:[#allocation3 + $0x158] sm:$0xf0] %v2162
        %2171 = vst [vmem:[#allocation3 + $0x170] sm:$0xff] %v2163
        %2172 = vst [vmem:[#allocation3 + $0x178] sm:$0xff] %v2164
        %v2177 = vrot.slane %v2127, 4
        %v2178 = vrot.slane %v2129, 4
        %v2179 = vsel %vm1581, %v2177, %v2178
        %v2180 = vrot.slane %v2128, 4
        %v2181 = vrot.slane %v2130, 4
        %v2182 = vsel %vm1581, %v2180, %v2181
        %2187 = vst [vmem:[#allocation3 + $0x190] sm:$0xff] %v2179
        %2188 = vst [vmem:[#allocation3 + $0x198] sm:$0xff] %v2182
        %2189 = vst [vmem:[#allocation3 + $0x1b0] sm:$0xf] %v2178
        %2190 = vst [vmem:[#allocation3 + $0x1b8] sm:$0xf] %v2181
        %v2191 = vld [vmem:[#allocation3] sm:$0xff]
        %v2192 = vld [vmem:[#allocation3 + $0x8] sm:$0xff]
        %v2193 = vld [vmem:[#allocation3 + $0x10] sm:$0xff]
        %v2194 = vld [vmem:[#allocation3 + $0x18] sm:$0xff]
        %v2195 = vld [vmem:[#allocation3 + $0x20] sm:$0xff]
        %v2196 = vld [vmem:[#allocation3 + $0x28] sm:$0xff]
        %v2197 = vld [vmem:[#allocation3 + $0x30] sm:$0xff]
        %v2198 = vld [vmem:[#allocation3 + $0x38] sm:$0xff]
        %v2199 = vld [vmem:[#allocation3 + $0x40] sm:$0xff]
        %v2200 = vld [vmem:[#allocation3 + $0x48] sm:$0xff]
        %v2201 = vld [vmem:[#allocation3 + $0x50] sm:$0xff]
        %v2202 = vld [vmem:[#allocation3 + $0x58] sm:$0xff]
        %v2203 = vld [vmem:[#allocation3 + $0x60] sm:$0xff]
        %v2204 = vld [vmem:[#allocation3 + $0x68] sm:$0xff]
        %v2205 = vld [vmem:[#allocation3 + $0x70] sm:$0xff]
        %v2206 = vld [vmem:[#allocation3 + $0x78] sm:$0xff]
        %v2207 = vld [vmem:[#allocation3 + $0x80] sm:$0xff]
        %v2208 = vld [vmem:[#allocation3 + $0x88] sm:$0xff]
        %v2209 = vld [vmem:[#allocation3 + $0x90] sm:$0xff]
        %v2210 = vld [vmem:[#allocation3 + $0x98] sm:$0xff]
        %v2211 = vld [vmem:[#allocation3 + $0xa0] sm:$0xff]
        %v2212 = vld [vmem:[#allocation3 + $0xa8] sm:$0xff]
        %v2213 = vld [vmem:[#allocation3 + $0xb0] sm:$0xff]
        %v2214 = vld [vmem:[#allocation3 + $0xb8] sm:$0xff]
        %v2215 = vld [vmem:[#allocation3 + $0xc0] sm:$0xff]
        %v2216 = vld [vmem:[#allocation3 + $0xc8] sm:$0xff]
        %v2217 = vld [vmem:[#allocation3 + $0xd0] sm:$0xff]
        %v2218 = vld [vmem:[#allocation3 + $0xd8] sm:$0xff]
        %v2219 = vld [vmem:[#allocation3 + $0xe0] sm:$0xff]
        %v2220 = vld [vmem:[#allocation3 + $0xe8] sm:$0xff]
        %v2221 = vld [vmem:[#allocation3 + $0xf0] sm:$0xff]
        %v2222 = vld [vmem:[#allocation3 + $0xf8] sm:$0xff]
        %v2223 = vld [vmem:[#allocation3 + $0x100] sm:$0xff]
        %v2224 = vld [vmem:[#allocation3 + $0x108] sm:$0xff]
        %v2225 = vld [vmem:[#allocation3 + $0x110] sm:$0xff]
        %v2226 = vld [vmem:[#allocation3 + $0x118] sm:$0xff]
        %v2227 = vld [vmem:[#allocation3 + $0x120] sm:$0xff]
        %v2228 = vld [vmem:[#allocation3 + $0x128] sm:$0xff]
        %v2229 = vld [vmem:[#allocation3 + $0x130] sm:$0xff]
        %v2230 = vld [vmem:[#allocation3 + $0x138] sm:$0xff]
        %v2231 = vld [vmem:[#allocation3 + $0x140] sm:$0xff]
        %v2232 = vld [vmem:[#allocation3 + $0x148] sm:$0xff]
        %v2233 = vld [vmem:[#allocation3 + $0x150] sm:$0xff]
        %v2234 = vld [vmem:[#allocation3 + $0x158] sm:$0xff]
        %v2235 = vld [vmem:[#allocation3 + $0x160] sm:$0xff]
        %v2236 = vld [vmem:[#allocation3 + $0x168] sm:$0xff]
        %v2237 = vld [vmem:[#allocation3 + $0x170] sm:$0xff]
        %v2238 = vld [vmem:[#allocation3 + $0x178] sm:$0xff]
        %v2239 = vld [vmem:[#allocation3 + $0x180] sm:$0xff]
        %v2240 = vld [vmem:[#allocation3 + $0x188] sm:$0xff]
        %v2241 = vld [vmem:[#allocation3 + $0x190] sm:$0xff]
        %v2242 = vld [vmem:[#allocation3 + $0x198] sm:$0xff]
        %v2243 = vld [vmem:[#allocation3 + $0x1a0] sm:$0xf]
        %v2244 = vld [vmem:[#allocation3 + $0x1a8] sm:$0xf]
        %v2245 = vld [vmem:[#allocation3 + $0x1b0] sm:$0xf]
        %v2246 = vld [vmem:[#allocation3 + $0x1b8] sm:$0xf]
        %v2247 = vld [vmem:[#allocation10] sm:$0xff]
        %v2249 = vunpack.c.l.b16 %v2247
        %v2250 = vunpack.c.h.b16 %v2247
        %v2251 = vpack.c.b16 %v2249, %v2249
        %v2252 = vpack.c.b16 %v2250, %v2250
        %vm2254 = vcmask 719872
        %v2256 = vsel %vm2254, %v2252, 0
        %v2259 = vsel %vm789, %v2243, 0
        %v2262 = vsel %vm789, %v2244, 0
        %v2265 = vsel %vm789, %v2245, 0
        %v2268 = vsel %vm789, %v2246, 0
        %2270 = vmatprep.subr.bf16.mxu0 %v2192
        %2271 = vmatpush1.bf16.msra.mxu0 %v2191
        %2272 = vmatprep.subr.bf16.mxu0 %v2196
        %2273 = vmatpush1.bf16.msra.mxu0 %v2195
        %2274 = vmatprep.subr.bf16.mxu0 %v2200
        %2275 = vmatpush1.bf16.msra.mxu0 %v2199
        %2276 = vmatprep.subr.bf16.mxu0 %v2204
        %2277 = vmatpush1.bf16.msra.mxu0 %v2203
        %2278 = vmatprep.subr.bf16.mxu0 %v2208
        %2279 = vmatpush1.bf16.msra.mxu0 %v2207
        %2280 = vmatprep.subr.bf16.mxu0 %v2212
        %2281 = vmatpush1.bf16.msra.mxu0 %v2211
        %2282 = vmatprep.subr.bf16.mxu0 %v2216
        %2283 = vmatpush1.bf16.msra.mxu0 %v2215
        %2284 = vmatprep.subr.bf16.mxu0 %v2220
        %2285 = vmatpush1.bf16.msra.mxu0 %v2219
        %2286 = vmatprep.subr.bf16.mxu0 %v2224
        %2287 = vmatpush1.bf16.msra.mxu0 %v2223
        %2288 = vmatprep.subr.bf16.mxu0 %v2228
        %2289 = vmatpush1.bf16.msra.mxu0 %v2227
        %2290 = vmatprep.subr.bf16.mxu0 %v2232
        %2291 = vmatpush1.bf16.msra.mxu0 %v2231
        %2292 = vmatprep.subr.bf16.mxu0 %v2236
        %2293 = vmatpush1.bf16.msra.mxu0 %v2235
        %2294 = vmatprep.subr.bf16.mxu0 %v2240
        %2295 = vmatpush1.bf16.msra.mxu0 %v2239
        %2296 = vmatprep.subr.bf16.mxu0 %v2262
        %2297 = vmatpush1.bf16.msra.mxu0 %v2259
        %2298 = vmatprep.subr.bf16.mxu0 0
        %2299 = vmatpush1.bf16.msra.mxu0 0
        %2300 = vmatprep.subr.bf16.mxu0 0
        %2301 = vmatpush1.bf16.msra.mxu0 0
        %2302 = vmatprep.mubr.bf16.mxu0 %v2256
        %2303 = vmatmul.mubr.bf16.gmra.mrb[0].mxu0 %v2251
        %v2304 = vpop.f32.mrb[0].mxu0
        %v2305 = vadd.f32 0.0, %v2304
        %v2306 = vpop.f32.mrb[0].mxu0
        %v2307 = vadd.f32 0.0, %v2306
        %v2308 = vpop.f32.mrb[0].mxu0
        %v2309 = vpop.f32.mrb[0].mxu0
        %2310 = vdwg.mxu0
        %2311 = vmatprep.subr.bf16.mxu0 %v2194
        %2312 = vmatpush1.bf16.msra.mxu0 %v2193
        %2313 = vmatprep.subr.bf16.mxu0 %v2198
        %2314 = vmatpush1.bf16.msra.mxu0 %v2197
        %2315 = vmatprep.subr.bf16.mxu0 %v2202
        %2316 = vmatpush1.bf16.msra.mxu0 %v2201
        %2317 = vmatprep.subr.bf16.mxu0 %v2206
        %2318 = vmatpush1.bf16.msra.mxu0 %v2205
        %2319 = vmatprep.subr.bf16.mxu0 %v2210
        %2320 = vmatpush1.bf16.msra.mxu0 %v2209
        %2321 = vmatprep.subr.bf16.mxu0 %v2214
        %2322 = vmatpush1.bf16.msra.mxu0 %v2213
        %2323 = vmatprep.subr.bf16.mxu0 %v2218
        %2324 = vmatpush1.bf16.msra.mxu0 %v2217
        %2325 = vmatprep.subr.bf16.mxu0 %v2222
        %2326 = vmatpush1.bf16.msra.mxu0 %v2221
        %2327 = vmatprep.subr.bf16.mxu0 %v2226
        %2328 = vmatpush1.bf16.msra.mxu0 %v2225
        %2329 = vmatprep.subr.bf16.mxu0 %v2230
        %2330 = vmatpush1.bf16.msra.mxu0 %v2229
        %2331 = vmatprep.subr.bf16.mxu0 %v2234
        %2332 = vmatpush1.bf16.msra.mxu0 %v2233
        %2333 = vmatprep.subr.bf16.mxu0 %v2238
        %2334 = vmatpush1.bf16.msra.mxu0 %v2237
        %2335 = vmatprep.subr.bf16.mxu0 %v2242
        %2336 = vmatpush1.bf16.msra.mxu0 %v2241
        %2337 = vmatprep.subr.bf16.mxu0 %v2268
        %2338 = vmatpush1.bf16.msra.mxu0 %v2265
        %2339 = vmatprep.subr.bf16.mxu0 0
        %2340 = vmatpush1.bf16.msra.mxu0 0
        %2341 = vmatprep.subr.bf16.mxu0 0
        %2342 = vmatpush1.bf16.msra.mxu0 0
        %2343 = vmatprep.mubr.bf16.mxu0 %v2256
        %2344 = vmatmul.mubr.bf16.gmra.mrb[0].mxu0 %v2251
        %v2345 = vpop.f32.mrb[0].mxu0
        %v2346 = vadd.f32 0.0, %v2345
        %v2347 = vpop.f32.mrb[0].mxu0
        %v2348 = vadd.f32 0.0, %v2347
        %v2349 = vpop.f32.mrb[0].mxu0
        %v2350 = vpop.f32.mrb[0].mxu0
        %2351 = vdwg.mxu0
        %v2352 = vld [vmem:[#allocation12] sm:$0xff]
        %v2353 = vadd.f32 %v2305, %v2307
        %2354 = vadd.xlane.f32.xlu0 %v2353
        %v2355 = vpop.xlane.xlu0 %2354
        %v2356 = vmul.f32 %v2355, 0.00390625
        %v2357 = vmul.f32 %v2305, %v2305
        %v2358 = vmul.f32 %v2307, %v2307
        %v2359 = vadd.f32 %v2357, %v2358
        %2360 = vadd.xlane.f32.xlu0 %v2359
        %v2361 = vpop.xlane.xlu0 %2360
        %v2362 = vmul.f32 %v2361, 0.00390625
        %v2363 = vmul.f32 %v2356, %v2356
        %v2364 = vsub.f32 %v2362, %v2363
        %v2365 = vmax.f32 %v2364, 0.0
        %v2366 = vadd.f32 %v2365, 1e-05
        %v2367 = vrsqrt.pop %v2366
        %v2368 = vmul.f32 %v2352, %v2367
        %v2369 = vmul.f32 %v2356, %v2368
        %2371 = vrot.lane.b32.xlu0 %v2369, 1
        %v2372 = vpop.permute.xlu0 %2371
        %v2374 = vsub.f32 %v2352, %v2372
        %2376 = vset.pattern.permute.xlu0 6
        %2377 = vperm.xlu0 %2376, %v2368
        %v2378 = vpop.permute.xlu0 %2377
        %v2380 = vmul.f32 %v2305, %v2378
        %v2381 = vmul.f32 %v2307, %v2378
        %2383 = vset.pattern.permute.xlu0 7
        %2384 = vperm.xlu0 %2383, %v2374
        %v2385 = vpop.permute.xlu0 %2384
        %v2387 = vadd.f32 %v2380, %v2385
        %v2388 = vadd.f32 %v2381, %v2385
        %vm2389 = vcmp.ge.f32.partialorder %v2387, 0.0
        %vm2390 = vcmp.ge.f32.partialorder %v2388, 0.0
        %2392 = vset.pattern.permute.xlu0 8
        %2393 = vperm.xlu0 %2392, %v2352
        %v2394 = vpop.permute.xlu0 %2393
        %v2396 = vmul.f32 %v2394, %v2387
        %v2397 = vmul.f32 %v2394, %v2388
        %v2398 = vsel %vm2389, %v2387, %v2396
        %v2399 = vsel %vm2390, %v2388, %v2397
        %v2400 = vpack.c.bf16 %v2398, %v2398
        %v2401 = vpack.c.bf16 %v2399, %v2399
        %2402 = vst [vmem:[#allocation2 + $0x8] sm:$0xf] %v2400
        %2403 = vst [vmem:[#allocation2 + $0x10] sm:$0xf] %v2401
        %v2404 = vadd.f32 %v2346, %v2348
        %2405 = vadd.xlane.f32.xlu0 %v2404
        %v2406 = vpop.xlane.xlu0 %2405
        %v2407 = vmul.f32 %v2406, 0.00390625
        %v2408 = vmul.f32 %v2346, %v2346
        %v2409 = vmul.f32 %v2348, %v2348
        %v2410 = vadd.f32 %v2408, %v2409
        %2411 = vadd.xlane.f32.xlu0 %v2410
        %v2412 = vpop.xlane.xlu0 %2411
        %v2413 = vmul.f32 %v2412, 0.00390625
        %v2414 = vmul.f32 %v2407, %v2407
        %v2415 = vsub.f32 %v2413, %v2414
        %v2416 = vmax.f32 %v2415, 0.0
        %v2417 = vadd.f32 %v2416, 1e-05
        %v2418 = vrsqrt.pop %v2417
        %v2419 = vmul.f32 %v2352, %v2418
        %v2420 = vmul.f32 %v2407, %v2419
        %2422 = vrot.lane.b32.xlu0 %v2420, 1
        %v2423 = vpop.permute.xlu0 %2422
        %v2425 = vsub.f32 %v2352, %v2423
        %2427 = vset.pattern.permute.xlu0 6
        %2428 = vperm.xlu0 %2427, %v2419
        %v2429 = vpop.permute.xlu0 %2428
        %v2431 = vmul.f32 %v2346, %v2429
        %v2432 = vmul.f32 %v2348, %v2429
        %2434 = vset.pattern.permute.xlu0 7
        %2435 = vperm.xlu0 %2434, %v2425
        %v2436 = vpop.permute.xlu0 %2435
        %v2438 = vadd.f32 %v2431, %v2436
        %v2439 = vadd.f32 %v2432, %v2436
        %vm2440 = vcmp.ge.f32.partialorder %v2438, 0.0
        %vm2441 = vcmp.ge.f32.partialorder %v2439, 0.0
        %v2442 = vmul.f32 %v2394, %v2438
        %v2443 = vmul.f32 %v2394, %v2439
        %v2444 = vsel %vm2440, %v2438, %v2442
        %v2445 = vsel %vm2441, %v2439, %v2443
        %v2446 = vpack.c.bf16 %v2444, %v2444
        %v2447 = vpack.c.bf16 %v2445, %v2445
        %2448 = vst [vmem:[#allocation2 + $0x28] sm:$0xf] %v2446
        %2449 = vst [vmem:[#allocation2 + $0x30] sm:$0xf] %v2447
        %v2450 = vld [vmem:[#allocation2] sm:$0xff]
        %v2451 = vld [vmem:[#allocation2 + $0x8] sm:$0xff]
        %v2452 = vld [vmem:[#allocation2 + $0x40] sm:$0xff]
        %v2453 = vld [vmem:[#allocation2 + $0x48] sm:$0xff]
        %2456 = vrot.lane.b32.xlu0 %v2451, 1
        %v2457 = vpop.permute.xlu0 %2456
        %2458 = vrot.lane.b32.xlu0 %v2453, 1
        %v2459 = vpop.permute.xlu0 %2458
        %2462 = vrot.lane.b32.xlu0 %v2450, 1
        %v2463 = vpop.permute.xlu0 %2462
        %2464 = vrot.lane.b32.xlu0 %v2452, 1
        %v2465 = vpop.permute.xlu0 %2464
        %v2466 = vsel %vm499, %v2463, %v2457
        %v2467 = vsel %vm499, %v2465, %v2459
        %v2472 = vsel %vm406, %v2457, %v2463
        %v2476 = vsel %vm406, %v2459, %v2465
        %v2478 = vsel %vm425, %v2472, 0
        %v2479 = vsel %vm426, %v2466, 0
        %v2480 = vsel %vm425, %v2476, 0
        %v2481 = vsel %vm426, %v2467, 0
        %2482 = vrot.lane.b32.xlu0 %v2450, 127
        %v2483 = vpop.permute.xlu0 %2482
        %2484 = vrot.lane.b32.xlu0 %v2451, 127
        %v2485 = vpop.permute.xlu0 %2484
        %2486 = vrot.lane.b32.xlu0 %v2452, 127
        %v2487 = vpop.permute.xlu0 %2486
        %2488 = vrot.lane.b32.xlu0 %v2453, 127
        %v2489 = vpop.permute.xlu0 %2488
        %v2490 = vsel %vm512, %v2483, %v2485
        %v2491 = vsel %vm512, %v2487, %v2489
        %v2496 = vsel %vm439, %v2485, %v2483
        %v2500 = vsel %vm439, %v2489, %v2487
        %v2502 = vsel %vm458, %v2490, 0
        %v2503 = vsel %vm459, %v2496, 0
        %v2504 = vsel %vm458, %v2491, 0
        %v2505 = vsel %vm459, %v2500, 0
        %2506 = vst [vmem:[#allocation3] sm:$0xff] %v2478
        %2507 = vst [vmem:[#allocation3 + $0x8] sm:$0xff] %v2479
        %2508 = vst [vmem:[#allocation3 + $0x20] sm:$0xff] %v2480
        %2509 = vst [vmem:[#allocation3 + $0x28] sm:$0xff] %v2481
        %2510 = vst [vmem:[#allocation3 + $0x40] sm:$0xff] %v2450
        %2511 = vst [vmem:[#allocation3 + $0x48] sm:$0xff] %v2451
        %2512 = vst [vmem:[#allocation3 + $0x60] sm:$0xff] %v2452
        %2513 = vst [vmem:[#allocation3 + $0x68] sm:$0xff] %v2453
        %2514 = vst [vmem:[#allocation3 + $0x80] sm:$0xff] %v2502
        %2515 = vst [vmem:[#allocation3 + $0x88] sm:$0xff] %v2503
        %2516 = vst [vmem:[#allocation3 + $0xa0] sm:$0xff] %v2504
        %2517 = vst [vmem:[#allocation3 + $0xa8] sm:$0xff] %v2505
        %v2518 = vld [vmem:[#allocation2 + $0x8] sm:$0xff]
        %v2519 = vld [vmem:[#allocation2 + $0x10] sm:$0xff]
        %v2520 = vld [vmem:[#allocation2 + $0x48] sm:$0xff]
        %v2521 = vld [vmem:[#allocation2 + $0x50] sm:$0xff]
        %2524 = vrot.lane.b32.xlu0 %v2519, 1
        %v2525 = vpop.permute.xlu0 %2524
        %2526 = vrot.lane.b32.xlu0 %v2521, 1
        %v2527 = vpop.permute.xlu0 %2526
        %2530 = vrot.lane.b32.xlu0 %v2518, 1
        %v2531 = vpop.permute.xlu0 %2530
        %2532 = vrot.lane.b32.xlu0 %v2520, 1
        %v2533 = vpop.permute.xlu0 %2532
        %v2534 = vsel %vm499, %v2531, %v2525
        %v2535 = vsel %vm499, %v2533, %v2527
        %v2540 = vsel %vm406, %v2525, %v2531
        %v2544 = vsel %vm406, %v2527, %v2533
        %v2546 = vsel %vm425, %v2540, 0
        %v2547 = vsel %vm426, %v2534, 0
        %v2548 = vsel %vm425, %v2544, 0
        %v2549 = vsel %vm426, %v2535, 0
        %2550 = vrot.lane.b32.xlu0 %v2518, 127
        %v2551 = vpop.permute.xlu0 %2550
        %2552 = vrot.lane.b32.xlu0 %v2519, 127
        %v2553 = vpop.permute.xlu0 %2552
        %2554 = vrot.lane.b32.xlu0 %v2520, 127
        %v2555 = vpop.permute.xlu0 %2554
        %2556 = vrot.lane.b32.xlu0 %v2521, 127
        %v2557 = vpop.permute.xlu0 %2556
        %v2558 = vsel %vm512, %v2551, %v2553
        %v2559 = vsel %vm512, %v2555, %v2557
        %v2564 = vsel %vm439, %v2553, %v2551
        %v2568 = vsel %vm439, %v2557, %v2555
        %v2570 = vsel %vm458, %v2558, 0
        %v2571 = vsel %vm459, %v2564, 0
        %v2572 = vsel %vm458, %v2559, 0
        %v2573 = vsel %vm459, %v2568, 0
        %2574 = vst [vmem:[#allocation3 + $0xc0] sm:$0xff] %v2546
        %2575 = vst [vmem:[#allocation3 + $0xc8] sm:$0xff] %v2547
        %2576 = vst [vmem:[#allocation3 + $0xe0] sm:$0xff] %v2548
        %2577 = vst [vmem:[#allocation3 + $0xe8] sm:$0xff] %v2549
        %2578 = vst [vmem:[#allocation3 + $0x100] sm:$0xff] %v2518
        %2579 = vst [vmem:[#allocation3 + $0x108] sm:$0xff] %v2519
        %2580 = vst [vmem:[#allocation3 + $0x120] sm:$0xff] %v2520
        %2581 = vst [vmem:[#allocation3 + $0x128] sm:$0xff] %v2521
        %2582 = vst [vmem:[#allocation3 + $0x140] sm:$0xff] %v2570
        %2583 = vst [vmem:[#allocation3 + $0x148] sm:$0xff] %v2571
        %2584 = vst [vmem:[#allocation3 + $0x160] sm:$0xff] %v2572
        %2585 = vst [vmem:[#allocation3 + $0x168] sm:$0xff] %v2573
        %v2586 = vld [vmem:[#allocation2 + $0x10] sm:$0xff]
        %v2587 = vld [vmem:[#allocation2 + $0x18] sm:$0xff]
        %v2588 = vld [vmem:[#allocation2 + $0x50] sm:$0xff]
        %v2589 = vld [vmem:[#allocation2 + $0x58] sm:$0xff]
        %2592 = vrot.lane.b32.xlu0 %v2587, 1
        %v2593 = vpop.permute.xlu0 %2592
        %2594 = vrot.lane.b32.xlu0 %v2589, 1
        %v2595 = vpop.permute.xlu0 %2594
        %2598 = vrot.lane.b32.xlu0 %v2586, 1
        %v2599 = vpop.permute.xlu0 %2598
        %2600 = vrot.lane.b32.xlu0 %v2588, 1
        %v2601 = vpop.permute.xlu0 %2600
        %v2602 = vsel %vm499, %v2599, %v2593
        %v2603 = vsel %vm499, %v2601, %v2595
        %v2608 = vsel %vm406, %v2593, %v2599
        %v2612 = vsel %vm406, %v2595, %v2601
        %v2614 = vsel %vm425, %v2608, 0
        %v2615 = vsel %vm426, %v2602, 0
        %v2616 = vsel %vm425, %v2612, 0
        %v2617 = vsel %vm426, %v2603, 0
        %2618 = vrot.lane.b32.xlu0 %v2586, 127
        %v2619 = vpop.permute.xlu0 %2618
        %2620 = vrot.lane.b32.xlu0 %v2587, 127
        %v2621 = vpop.permute.xlu0 %2620
        %2622 = vrot.lane.b32.xlu0 %v2588, 127
        %v2623 = vpop.permute.xlu0 %2622
        %2624 = vrot.lane.b32.xlu0 %v2589, 127
        %v2625 = vpop.permute.xlu0 %2624
        %v2626 = vsel %vm512, %v2619, %v2621
        %v2627 = vsel %vm512, %v2623, %v2625
        %v2632 = vsel %vm439, %v2621, %v2619
        %v2636 = vsel %vm439, %v2625, %v2623
        %v2638 = vsel %vm458, %v2626, 0
        %v2639 = vsel %vm459, %v2632, 0
        %v2640 = vsel %vm458, %v2627, 0
        %v2641 = vsel %vm459, %v2636, 0
        %2642 = vst [vmem:[#allocation3 + $0x180] sm:$0xff] %v2614
        %2643 = vst [vmem:[#allocation3 + $0x188] sm:$0xff] %v2615
        %2644 = vst [vmem:[#allocation3 + $0x1a0] sm:$0xff] %v2616
        %2645 = vst [vmem:[#allocation3 + $0x1a8] sm:$0xff] %v2617
        %2646 = vst [vmem:[#allocation3 + $0x1c0] sm:$0xff] %v2586
        %2647 = vst [vmem:[#allocation3 + $0x1c8] sm:$0xff] %v2587
        %2648 = vst [vmem:[#allocation3 + $0x1e0] sm:$0xff] %v2588
        %2649 = vst [vmem:[#allocation3 + $0x1e8] sm:$0xff] %v2589
        %2650 = vst [vmem:[#allocation3 + $0x200] sm:$0xff] %v2638
        %2651 = vst [vmem:[#allocation3 + $0x208] sm:$0xff] %v2639
        %2652 = vst [vmem:[#allocation3 + $0x220] sm:$0xff] %v2640
        %2653 = vst [vmem:[#allocation3 + $0x228] sm:$0xff] %v2641
        %v2654 = vld [vmem:[#allocation2 + $0x20] sm:$0xff]
        %v2655 = vld [vmem:[#allocation2 + $0x28] sm:$0xff]
        %v2656 = vld [vmem:[#allocation2 + $0x60] sm:$0xff]
        %v2657 = vld [vmem:[#allocation2 + $0x68] sm:$0xff]
        %2660 = vrot.lane.b32.xlu0 %v2655, 1
        %v2661 = vpop.permute.xlu0 %2660
        %2662 = vrot.lane.b32.xlu0 %v2657, 1
        %v2663 = vpop.permute.xlu0 %2662
        %2666 = vrot.lane.b32.xlu0 %v2654, 1
        %v2667 = vpop.permute.xlu0 %2666
        %2668 = vrot.lane.b32.xlu0 %v2656, 1
        %v2669 = vpop.permute.xlu0 %2668
        %v2670 = vsel %vm499, %v2667, %v2661
        %v2671 = vsel %vm499, %v2669, %v2663
        %v2676 = vsel %vm406, %v2661, %v2667
        %v2680 = vsel %vm406, %v2663, %v2669
        %v2682 = vsel %vm425, %v2676, 0
        %v2683 = vsel %vm426, %v2670, 0
        %v2684 = vsel %vm425, %v2680, 0
        %v2685 = vsel %vm426, %v2671, 0
        %2686 = vrot.lane.b32.xlu0 %v2654, 127
        %v2687 = vpop.permute.xlu0 %2686
        %2688 = vrot.lane.b32.xlu0 %v2655, 127
        %v2689 = vpop.permute.xlu0 %2688
        %2690 = vrot.lane.b32.xlu0 %v2656, 127
        %v2691 = vpop.permute.xlu0 %2690
        %2692 = vrot.lane.b32.xlu0 %v2657, 127
        %v2693 = vpop.permute.xlu0 %2692
        %v2694 = vsel %vm512, %v2687, %v2689
        %v2695 = vsel %vm512, %v2691, %v2693
        %v2700 = vsel %vm439, %v2689, %v2687
        %v2704 = vsel %vm439, %v2693, %v2691
        %v2706 = vsel %vm458, %v2694, 0
        %v2707 = vsel %vm459, %v2700, 0
        %v2708 = vsel %vm458, %v2695, 0
        %v2709 = vsel %vm459, %v2704, 0
        %2710 = vst [vmem:[#allocation3 + $0x10] sm:$0xff] %v2682
        %2711 = vst [vmem:[#allocation3 + $0x18] sm:$0xff] %v2683
        %2712 = vst [vmem:[#allocation3 + $0x30] sm:$0xff] %v2684
        %2713 = vst [vmem:[#allocation3 + $0x38] sm:$0xff] %v2685
        %2714 = vst [vmem:[#allocation3 + $0x50] sm:$0xff] %v2654
        %2715 = vst [vmem:[#allocation3 + $0x58] sm:$0xff] %v2655
        %2716 = vst [vmem:[#allocation3 + $0x70] sm:$0xff] %v2656
        %2717 = vst [vmem:[#allocation3 + $0x78] sm:$0xff] %v2657
        %2718 = vst [vmem:[#allocation3 + $0x90] sm:$0xff] %v2706
        %2719 = vst [vmem:[#allocation3 + $0x98] sm:$0xff] %v2707
        %2720 = vst [vmem:[#allocation3 + $0xb0] sm:$0xff] %v2708
        %2721 = vst [vmem:[#allocation3 + $0xb8] sm:$0xff] %v2709
        %v2722 = vld [vmem:[#allocation2 + $0x28] sm:$0xff]
        %v2723 = vld [vmem:[#allocation2 + $0x30] sm:$0xff]
        %v2724 = vld [vmem:[#allocation2 + $0x68] sm:$0xff]
        %v2725 = vld [vmem:[#allocation2 + $0x70] sm:$0xff]
        %2728 = vrot.lane.b32.xlu0 %v2723, 1
        %v2729 = vpop.permute.xlu0 %2728
        %2730 = vrot.lane.b32.xlu0 %v2725, 1
        %v2731 = vpop.permute.xlu0 %2730
        %2734 = vrot.lane.b32.xlu0 %v2722, 1
        %v2735 = vpop.permute.xlu0 %2734
        %2736 = vrot.lane.b32.xlu0 %v2724, 1
        %v2737 = vpop.permute.xlu0 %2736
        %v2738 = vsel %vm499, %v2735, %v2729
        %v2739 = vsel %vm499, %v2737, %v2731
        %v2744 = vsel %vm406, %v2729, %v2735
        %v2748 = vsel %vm406, %v2731, %v2737
        %v2750 = vsel %vm425, %v2744, 0
        %v2751 = vsel %vm426, %v2738, 0
        %v2752 = vsel %vm425, %v2748, 0
        %v2753 = vsel %vm426, %v2739, 0
        %2754 = vrot.lane.b32.xlu0 %v2722, 127
        %v2755 = vpop.permute.xlu0 %2754
        %2756 = vrot.lane.b32.xlu0 %v2723, 127
        %v2757 = vpop.permute.xlu0 %2756
        %2758 = vrot.lane.b32.xlu0 %v2724, 127
        %v2759 = vpop.permute.xlu0 %2758
        %2760 = vrot.lane.b32.xlu0 %v2725, 127
        %v2761 = vpop.permute.xlu0 %2760
        %v2762 = vsel %vm512, %v2755, %v2757
        %v2763 = vsel %vm512, %v2759, %v2761
        %v2768 = vsel %vm439, %v2757, %v2755
        %v2772 = vsel %vm439, %v2761, %v2759
        %v2774 = vsel %vm458, %v2762, 0
        %v2775 = vsel %vm459, %v2768, 0
        %v2776 = vsel %vm458, %v2763, 0
        %v2777 = vsel %vm459, %v2772, 0
        %2778 = vst [vmem:[#allocation3 + $0xd0] sm:$0xff] %v2750
        %2779 = vst [vmem:[#allocation3 + $0xd8] sm:$0xff] %v2751
        %2780 = vst [vmem:[#allocation3 + $0xf0] sm:$0xff] %v2752
        %2781 = vst [vmem:[#allocation3 + $0xf8] sm:$0xff] %v2753
        %2782 = vst [vmem:[#allocation3 + $0x110] sm:$0xff] %v2722
        %2783 = vst [vmem:[#allocation3 + $0x118] sm:$0xff] %v2723
        %2784 = vst [vmem:[#allocation3 + $0x130] sm:$0xff] %v2724
        %2785 = vst [vmem:[#allocation3 + $0x138] sm:$0xff] %v2725
        %2786 = vst [vmem:[#allocation3 + $0x150] sm:$0xff] %v2774
        %2787 = vst [vmem:[#allocation3 + $0x158] sm:$0xff] %v2775
        %2788 = vst [vmem:[#allocation3 + $0x170] sm:$0xff] %v2776
        %2789 = vst [vmem:[#allocation3 + $0x178] sm:$0xff] %v2777
        %v2790 = vld [vmem:[#allocation2 + $0x30] sm:$0xff]
        %v2791 = vld [vmem:[#allocation2 + $0x38] sm:$0xff]
        %v2792 = vld [vmem:[#allocation2 + $0x70] sm:$0xff]
        %v2793 = vld [vmem:[#allocation2 + $0x78] sm:$0xff]
        %2796 = vrot.lane.b32.xlu0 %v2791, 1
        %v2797 = vpop.permute.xlu0 %2796
        %2798 = vrot.lane.b32.xlu0 %v2793, 1
        %v2799 = vpop.permute.xlu0 %2798
        %2802 = vrot.lane.b32.xlu0 %v2790, 1
        %v2803 = vpop.permute.xlu0 %2802
        %2804 = vrot.lane.b32.xlu0 %v2792, 1
        %v2805 = vpop.permute.xlu0 %2804
        %v2806 = vsel %vm499, %v2803, %v2797
        %v2807 = vsel %vm499, %v2805, %v2799
        %v2812 = vsel %vm406, %v2797, %v2803
        %v2816 = vsel %vm406, %v2799, %v2805
        %v2818 = vsel %vm425, %v2812, 0
        %v2819 = vsel %vm426, %v2806, 0
        %v2820 = vsel %vm425, %v2816, 0
        %v2821 = vsel %vm426, %v2807, 0
        %2822 = vrot.lane.b32.xlu0 %v2790, 127
        %v2823 = vpop.permute.xlu0 %2822
        %2824 = vrot.lane.b32.xlu0 %v2791, 127
        %v2825 = vpop.permute.xlu0 %2824
        %2826 = vrot.lane.b32.xlu0 %v2792, 127
        %v2827 = vpop.permute.xlu0 %2826
        %2828 = vrot.lane.b32.xlu0 %v2793, 127
        %v2829 = vpop.permute.xlu0 %2828
        %v2830 = vsel %vm512, %v2823, %v2825
        %v2831 = vsel %vm512, %v2827, %v2829
        %v2836 = vsel %vm439, %v2825, %v2823
        %v2840 = vsel %vm439, %v2829, %v2827
        %v2842 = vsel %vm458, %v2830, 0
        %v2843 = vsel %vm459, %v2836, 0
        %v2844 = vsel %vm458, %v2831, 0
        %v2845 = vsel %vm459, %v2840, 0
        %2846 = vst [vmem:[#allocation3 + $0x190] sm:$0xff] %v2818
        %2847 = vst [vmem:[#allocation3 + $0x198] sm:$0xff] %v2819
        %2848 = vst [vmem:[#allocation3 + $0x1b0] sm:$0xff] %v2820
        %2849 = vst [vmem:[#allocation3 + $0x1b8] sm:$0xff] %v2821
        %2850 = vst [vmem:[#allocation3 + $0x1d0] sm:$0xff] %v2790
        %2851 = vst [vmem:[#allocation3 + $0x1d8] sm:$0xff] %v2791
        %2852 = vst [vmem:[#allocation3 + $0x1f0] sm:$0xff] %v2792
        %2853 = vst [vmem:[#allocation3 + $0x1f8] sm:$0xff] %v2793
        %2854 = vst [vmem:[#allocation3 + $0x210] sm:$0xff] %v2842
        %2855 = vst [vmem:[#allocation3 + $0x218] sm:$0xff] %v2843
        %2856 = vst [vmem:[#allocation3 + $0x230] sm:$0xff] %v2844
        %2857 = vst [vmem:[#allocation3 + $0x238] sm:$0xff] %v2845
        %v2858 = vld [vmem:[#allocation3] sm:$0xff]
        %v2859 = vld [vmem:[#allocation3 + $0x8] sm:$0xff]
        %v2860 = vld [vmem:[#allocation3 + $0x10] sm:$0xff]
        %v2861 = vld [vmem:[#allocation3 + $0x18] sm:$0xff]
        %v2862 = vld [vmem:[#allocation3 + $0x20] sm:$0xff]
        %v2863 = vld [vmem:[#allocation3 + $0x28] sm:$0xff]
        %v2864 = vld [vmem:[#allocation3 + $0x30] sm:$0xff]
        %v2865 = vld [vmem:[#allocation3 + $0x38] sm:$0xff]
        %v2866 = vld [vmem:[#allocation3 + $0x40] sm:$0xff]
        %v2867 = vld [vmem:[#allocation3 + $0x48] sm:$0xff]
        %v2868 = vld [vmem:[#allocation3 + $0x50] sm:$0xff]
        %v2869 = vld [vmem:[#allocation3 + $0x58] sm:$0xff]
        %v2870 = vld [vmem:[#allocation3 + $0x60] sm:$0xff]
        %v2871 = vld [vmem:[#allocation3 + $0x68] sm:$0xff]
        %v2872 = vld [vmem:[#allocation3 + $0x70] sm:$0xff]
        %v2873 = vld [vmem:[#allocation3 + $0x78] sm:$0xff]
        %v2874 = vld [vmem:[#allocation3 + $0x80] sm:$0xff]
        %v2875 = vld [vmem:[#allocation3 + $0x88] sm:$0xff]
        %v2876 = vld [vmem:[#allocation3 + $0x90] sm:$0xff]
        %v2877 = vld [vmem:[#allocation3 + $0x98] sm:$0xff]
        %v2878 = vld [vmem:[#allocation3 + $0xa0] sm:$0xff]
        %v2879 = vld [vmem:[#allocation3 + $0xa8] sm:$0xff]
        %v2880 = vld [vmem:[#allocation3 + $0xb0] sm:$0xff]
        %v2881 = vld [vmem:[#allocation3 + $0xb8] sm:$0xff]
        %v2882 = vld [vmem:[#allocation3 + $0xc0] sm:$0xff]
        %v2883 = vld [vmem:[#allocation3 + $0xc8] sm:$0xff]
        %v2884 = vld [vmem:[#allocation3 + $0xd0] sm:$0xff]
        %v2885 = vld [vmem:[#allocation3 + $0xd8] sm:$0xff]
        %v2886 = vld [vmem:[#allocation3 + $0xe0] sm:$0xff]
        %v2887 = vld [vmem:[#allocation3 + $0xe8] sm:$0xff]
        %v2888 = vld [vmem:[#allocation3 + $0xf0] sm:$0xff]
        %v2889 = vld [vmem:[#allocation3 + $0xf8] sm:$0xff]
        %v2890 = vld [vmem:[#allocation3 + $0x100] sm:$0xff]
        %v2891 = vld [vmem:[#allocation3 + $0x108] sm:$0xff]
        %v2892 = vld [vmem:[#allocation3 + $0x110] sm:$0xff]
        %v2893 = vld [vmem:[#allocation3 + $0x118] sm:$0xff]
        %v2894 = vld [vmem:[#allocation3 + $0x120] sm:$0xff]
        %v2895 = vld [vmem:[#allocation3 + $0x128] sm:$0xff]
        %v2896 = vld [vmem:[#allocation3 + $0x130] sm:$0xff]
        %v2897 = vld [vmem:[#allocation3 + $0x138] sm:$0xff]
        %v2898 = vld [vmem:[#allocation3 + $0x140] sm:$0xff]
        %v2899 = vld [vmem:[#allocation3 + $0x148] sm:$0xff]
        %v2900 = vld [vmem:[#allocation3 + $0x150] sm:$0xff]
        %v2901 = vld [vmem:[#allocation3 + $0x158] sm:$0xff]
        %v2902 = vld [vmem:[#allocation3 + $0x160] sm:$0xff]
        %v2903 = vld [vmem:[#allocation3 + $0x168] sm:$0xff]
        %v2904 = vld [vmem:[#allocation3 + $0x170] sm:$0xff]
        %v2905 = vld [vmem:[#allocation3 + $0x178] sm:$0xff]
        %v2906 = vld [vmem:[#allocation3 + $0x180] sm:$0xff]
        %v2907 = vld [vmem:[#allocation3 + $0x188] sm:$0xff]
        %v2908 = vld [vmem:[#allocation3 + $0x190] sm:$0xff]
        %v2909 = vld [vmem:[#allocation3 + $0x198] sm:$0xff]
        %v2910 = vld [vmem:[#allocation3 + $0x1a0] sm:$0xff]
        %v2911 = vld [vmem:[#allocation3 + $0x1a8] sm:$0xff]
        %v2912 = vld [vmem:[#allocation3 + $0x1b0] sm:$0xff]
        %v2913 = vld [vmem:[#allocation3 + $0x1b8] sm:$0xff]
        %v2914 = vld [vmem:[#allocation3 + $0x1c0] sm:$0xff]
        %v2915 = vld [vmem:[#allocation3 + $0x1c8] sm:$0xff]
        %v2916 = vld [vmem:[#allocation3 + $0x1d0] sm:$0xff]
        %v2917 = vld [vmem:[#allocation3 + $0x1d8] sm:$0xff]
        %v2918 = vld [vmem:[#allocation3 + $0x1e0] sm:$0xff]
        %v2919 = vld [vmem:[#allocation3 + $0x1e8] sm:$0xff]
        %v2920 = vld [vmem:[#allocation3 + $0x1f0] sm:$0xff]
        %v2921 = vld [vmem:[#allocation3 + $0x1f8] sm:$0xff]
        %v2922 = vld [vmem:[#allocation3 + $0x200] sm:$0xff]
        %v2923 = vld [vmem:[#allocation3 + $0x208] sm:$0xff]
        %v2924 = vld [vmem:[#allocation3 + $0x210] sm:$0xff]
        %v2925 = vld [vmem:[#allocation3 + $0x218] sm:$0xff]
        %v2926 = vld [vmem:[#allocation3 + $0x220] sm:$0xff]
        %v2927 = vld [vmem:[#allocation3 + $0x228] sm:$0xff]
        %v2928 = vld [vmem:[#allocation3 + $0x230] sm:$0xff]
        %v2929 = vld [vmem:[#allocation3 + $0x238] sm:$0xff]
        %v2930 = vld [vmem:[%s4] sm:$0xff]
        %v2931 = vld [vmem:[%s4 + $0x8] sm:$0xf]
        %v2934 = vunpack.c.l.b16 %v2930
        %v2935 = vunpack.c.h.b16 %v2930
        %v2936 = vunpack.c.l.b16 %v2931
        %v2937 = vpack.c.b16 %v2934, %v2934
        %v2938 = vpack.c.b16 %v2935, %v2935
        %v2939 = vpack.c.b16 %v2936, %v2936
        %vm2942 = vcmask 261120
        %v2944 = vsel %vm2942, %v2939, 0
        %2946 = vmatprep.subr.bf16.mxu0 %v2859
        %2947 = vmatpush1.bf16.msra.mxu0 %v2858
        %2948 = vmatprep.subr.bf16.mxu0 %v2863
        %2949 = vmatpush1.bf16.msra.mxu0 %v2862
        %2950 = vmatprep.subr.bf16.mxu0 %v2867
        %2951 = vmatpush1.bf16.msra.mxu0 %v2866
        %2952 = vmatprep.subr.bf16.mxu0 %v2871
        %2953 = vmatpush1.bf16.msra.mxu0 %v2870
        %2954 = vmatprep.subr.bf16.mxu0 %v2875
        %2955 = vmatpush1.bf16.msra.mxu0 %v2874
        %2956 = vmatprep.subr.bf16.mxu0 %v2879
        %2957 = vmatpush1.bf16.msra.mxu0 %v2878
        %2958 = vmatprep.subr.bf16.mxu0 %v2883
        %2959 = vmatpush1.bf16.msra.mxu0 %v2882
        %2960 = vmatprep.subr.bf16.mxu0 %v2887
        %2961 = vmatpush1.bf16.msra.mxu0 %v2886
        %2962 = vmatprep.subr.bf16.mxu0 %v2891
        %2963 = vmatpush1.bf16.msra.mxu0 %v2890
        %2964 = vmatprep.subr.bf16.mxu0 %v2895
        %2965 = vmatpush1.bf16.msra.mxu0 %v2894
        %2966 = vmatprep.subr.bf16.mxu0 %v2899
        %2967 = vmatpush1.bf16.msra.mxu0 %v2898
        %2968 = vmatprep.subr.bf16.mxu0 %v2903
        %2969 = vmatpush1.bf16.msra.mxu0 %v2902
        %2970 = vmatprep.subr.bf16.mxu0 %v2907
        %2971 = vmatpush1.bf16.msra.mxu0 %v2906
        %2972 = vmatprep.subr.bf16.mxu0 %v2911
        %2973 = vmatpush1.bf16.msra.mxu0 %v2910
        %2974 = vmatprep.subr.bf16.mxu0 %v2915
        %2975 = vmatpush1.bf16.msra.mxu0 %v2914
        %2976 = vmatprep.subr.bf16.mxu0 %v2919
        %2977 = vmatpush1.bf16.msra.mxu0 %v2918
        %2978 = vmatprep.mubr.bf16.mxu0 %v2938
        %2979 = vmatmul.mubr.bf16.gmra.mrb[0].mxu0 %v2937
        %v2980 = vpop.f32.mrb[0].mxu0
        %v2981 = vadd.f32 0.0, %v2980
        %v2982 = vpop.f32.mrb[0].mxu0
        %v2983 = vadd.f32 0.0, %v2982
        %v2984 = vpop.f32.mrb[0].mxu0
        %v2985 = vpop.f32.mrb[0].mxu0
        %2986 = vdwg.mxu0
        %2987 = vmatprep.subr.bf16.mxu0 %v2923
        %2988 = vmatpush1.bf16.msra.mxu0 %v2922
        %2989 = vmatprep.subr.bf16.mxu0 %v2927
        %2990 = vmatpush1.bf16.msra.mxu0 %v2926
        %2991 = vmatprep.subr.bf16.mxu0 0
        %2992 = vmatpush1.bf16.msra.mxu0 0
        %2993 = vmatprep.subr.bf16.mxu0 0
        %2994 = vmatpush1.bf16.msra.mxu0 0
        %2995 = vmatprep.subr.bf16.mxu0 0
        %2996 = vmatpush1.bf16.msra.mxu0 0
        %2997 = vmatprep.subr.bf16.mxu0 0
        %2998 = vmatpush1.bf16.msra.mxu0 0
        %2999 = vmatprep.subr.bf16.mxu0 0
        %3000 = vmatpush1.bf16.msra.mxu0 0
        %3001 = vmatprep.subr.bf16.mxu0 0
        %3002 = vmatpush1.bf16.msra.mxu0 0
        %3003 = vmatprep.subr.bf16.mxu0 0
        %3004 = vmatpush1.bf16.msra.mxu0 0
        %3005 = vmatprep.subr.bf16.mxu0 0
        %3006 = vmatpush1.bf16.msra.mxu0 0
        %3007 = vmatprep.subr.bf16.mxu0 0
        %3008 = vmatpush1.bf16.msra.mxu0 0
        %3009 = vmatprep.subr.bf16.mxu0 0
        %3010 = vmatpush1.bf16.msra.mxu0 0
        %3011 = vmatprep.subr.bf16.mxu0 0
        %3012 = vmatpush1.bf16.msra.mxu0 0
        %3013 = vmatprep.subr.bf16.mxu0 0
        %3014 = vmatpush1.bf16.msra.mxu0 0
        %3015 = vmatprep.subr.bf16.mxu0 0
        %3016 = vmatpush1.bf16.msra.mxu0 0
        %3017 = vmatprep.subr.bf16.mxu0 0
        %3018 = vmatpush1.bf16.msra.mxu0 0
        %3019 = vmatprep.mubr.bf16.mxu0 0
        %3020 = vmatmul.mubr.bf16.gmra.mrb[0].mxu0 %v2944
        %v3021 = vpop.f32.mrb[0].mxu0
        %v3022 = vadd.f32 %v2981, %v3021
        %v3023 = vpop.f32.mrb[0].mxu0
        %v3024 = vadd.f32 %v2983, %v3023
        %v3025 = vpop.f32.mrb[0].mxu0
        %v3026 = vpop.f32.mrb[0].mxu0
        %3027 = vdwg.mxu0
        %3028 = vmatprep.subr.bf16.mxu0 %v2861
        %3029 = vmatpush1.bf16.msra.mxu0 %v2860
        %3030 = vmatprep.subr.bf16.mxu0 %v2865
        %3031 = vmatpush1.bf16.msra.mxu0 %v2864
        %3032 = vmatprep.subr.bf16.mxu0 %v2869
        %3033 = vmatpush1.bf16.msra.mxu0 %v2868
        %3034 = vmatprep.subr.bf16.mxu0 %v2873
        %3035 = vmatpush1.bf16.msra.mxu0 %v2872
        %3036 = vmatprep.subr.bf16.mxu0 %v2877
        %3037 = vmatpush1.bf16.msra.mxu0 %v2876
        %3038 = vmatprep.subr.bf16.mxu0 %v2881
        %3039 = vmatpush1.bf16.msra.mxu0 %v2880
        %3040 = vmatprep.subr.bf16.mxu0 %v2885
        %3041 = vmatpush1.bf16.msra.mxu0 %v2884
        %3042 = vmatprep.subr.bf16.mxu0 %v2889
        %3043 = vmatpush1.bf16.msra.mxu0 %v2888
        %3044 = vmatprep.subr.bf16.mxu0 %v2893
        %3045 = vmatpush1.bf16.msra.mxu0 %v2892
        %3046 = vmatprep.subr.bf16.mxu0 %v2897
        %3047 = vmatpush1.bf16.msra.mxu0 %v2896
        %3048 = vmatprep.subr.bf16.mxu0 %v2901
        %3049 = vmatpush1.bf16.msra.mxu0 %v2900
        %3050 = vmatprep.subr.bf16.mxu0 %v2905
        %3051 = vmatpush1.bf16.msra.mxu0 %v2904
        %3052 = vmatprep.subr.bf16.mxu0 %v2909
        %3053 = vmatpush1.bf16.msra.mxu0 %v2908
        %3054 = vmatprep.subr.bf16.mxu0 %v2913
        %3055 = vmatpush1.bf16.msra.mxu0 %v2912
        %3056 = vmatprep.subr.bf16.mxu0 %v2917
        %3057 = vmatpush1.bf16.msra.mxu0 %v2916
        %3058 = vmatprep.subr.bf16.mxu0 %v2921
        %3059 = vmatpush1.bf16.msra.mxu0 %v2920
        %3060 = vmatprep.mubr.bf16.mxu0 %v2938
        %3061 = vmatmul.mubr.bf16.gmra.mrb[0].mxu0 %v2937
        %v3062 = vpop.f32.mrb[0].mxu0
        %v3063 = vadd.f32 0.0, %v3062
        %v3064 = vpop.f32.mrb[0].mxu0
        %v3065 = vadd.f32 0.0, %v3064
        %v3066 = vpop.f32.mrb[0].mxu0
        %v3067 = vpop.f32.mrb[0].mxu0
        %3068 = vdwg.mxu0
        %3069 = vmatprep.subr.bf16.mxu0 %v2925
        %3070 = vmatpush1.bf16.msra.mxu0 %v2924
        %3071 = vmatprep.subr.bf16.mxu0 %v2929
        %3072 = vmatpush1.bf16.msra.mxu0 %v2928
        %3073 = vmatprep.subr.bf16.mxu0 0
        %3074 = vmatpush1.bf16.msra.mxu0 0
        %3075 = vmatprep.subr.bf16.mxu0 0
        %3076 = vmatpush1.bf16.msra.mxu0 0
        %3077 = vmatprep.subr.bf16.mxu0 0
        %3078 = vmatpush1.bf16.msra.mxu0 0
        %3079 = vmatprep.subr.bf16.mxu0 0
        %3080 = vmatpush1.bf16.msra.mxu0 0
        %3081 = vmatprep.subr.bf16.mxu0 0
        %3082 = vmatpush1.bf16.msra.mxu0 0
        %3083 = vmatprep.subr.bf16.mxu0 0
        %3084 = vmatpush1.bf16.msra.mxu0 0
        %3085 = vmatprep.subr.bf16.mxu0 0
        %3086 = vmatpush1.bf16.msra.mxu0 0
        %3087 = vmatprep.subr.bf16.mxu0 0
        %3088 = vmatpush1.bf16.msra.mxu0 0
        %3089 = vmatprep.subr.bf16.mxu0 0
        %3090 = vmatpush1.bf16.msra.mxu0 0
        %3091 = vmatprep.subr.bf16.mxu0 0
        %3092 = vmatpush1.bf16.msra.mxu0 0
        %3093 = vmatprep.subr.bf16.mxu0 0
        %3094 = vmatpush1.bf16.msra.mxu0 0
        %3095 = vmatprep.subr.bf16.mxu0 0
        %3096 = vmatpush1.bf16.msra.mxu0 0
        %3097 = vmatprep.subr.bf16.mxu0 0
        %3098 = vmatpush1.bf16.msra.mxu0 0
        %3099 = vmatprep.subr.bf16.mxu0 0
        %3100 = vmatpush1.bf16.msra.mxu0 0
        %3101 = vmatprep.mubr.bf16.mxu0 0
        %3102 = vmatmul.mubr.bf16.gmra.mrb[0].mxu0 %v2944
        %v3103 = vpop.f32.mrb[0].mxu0
        %v3104 = vadd.f32 %v3063, %v3103
        %v3105 = vpop.f32.mrb[0].mxu0
        %v3106 = vadd.f32 %v3065, %v3105
        %v3107 = vpop.f32.mrb[0].mxu0
        %v3108 = vpop.f32.mrb[0].mxu0
        %3109 = vdwg.mxu0
        %v3110 = vld [vmem:[#allocation12] sm:$0xff]
        %v3111 = vadd.f32 %v3022, %v3024
        %3112 = vadd.xlane.f32.xlu0 %v3111
        %v3113 = vpop.xlane.xlu0 %3112
        %v3114 = vmul.f32 %v3113, 0.00390625
        %v3115 = vmul.f32 %v3022, %v3022
        %v3116 = vmul.f32 %v3024, %v3024
        %v3117 = vadd.f32 %v3115, %v3116
        %3118 = vadd.xlane.f32.xlu0 %v3117
        %v3119 = vpop.xlane.xlu0 %3118
        %v3120 = vmul.f32 %v3119, 0.00390625
        %v3121 = vmul.f32 %v3114, %v3114
        %v3122 = vsub.f32 %v3120, %v3121
        %v3123 = vmax.f32 %v3122, 0.0
        %v3124 = vadd.f32 %v3123, 1e-05
        %v3125 = vrsqrt.pop %v3124
        %v3126 = vmul.f32 %v3110, %v3125
        %v3127 = vmul.f32 %v3114, %v3126
        %3129 = vrot.lane.b32.xlu0 %v3127, 1
        %v3130 = vpop.permute.xlu0 %3129
        %v3132 = vsub.f32 %v3110, %v3130
        %3134 = vset.pattern.permute.xlu0 9
        %3135 = vperm.xlu0 %3134, %v3126
        %v3136 = vpop.permute.xlu0 %3135
        %v3138 = vmul.f32 %v3022, %v3136
        %v3139 = vmul.f32 %v3024, %v3136
        %3141 = vset.pattern.permute.xlu0 10
        %3142 = vperm.xlu0 %3141, %v3132
        %v3143 = vpop.permute.xlu0 %3142
        %v3145 = vadd.f32 %v3138, %v3143
        %v3146 = vadd.f32 %v3139, %v3143
        %vm3147 = vcmp.ge.f32.partialorder %v3145, 0.0
        %vm3148 = vcmp.ge.f32.partialorder %v3146, 0.0
        %3150 = vset.pattern.permute.xlu0 11
        %3151 = vperm.xlu0 %3150, %v3110
        %v3152 = vpop.permute.xlu0 %3151
        %v3154 = vmul.f32 %v3152, %v3145
        %v3155 = vmul.f32 %v3152, %v3146
        %v3156 = vsel %vm3147, %v3145, %v3154
        %v3157 = vsel %vm3148, %v3146, %v3155
        %3158 = vst [vmem:[%s320] sm:$0xff] %v3156
        %3159 = vst [vmem:[%s320 + $0x8] sm:$0xff] %v3157
        %v3160 = vadd.f32 %v3104, %v3106
        %3161 = vadd.xlane.f32.xlu0 %v3160
        %v3162 = vpop.xlane.xlu0 %3161
        %v3163 = vmul.f32 %v3162, 0.00390625
        %v3164 = vmul.f32 %v3104, %v3104
        %v3165 = vmul.f32 %v3106, %v3106
        %v3166 = vadd.f32 %v3164, %v3165
        %3167 = vadd.xlane.f32.xlu0 %v3166
        %v3168 = vpop.xlane.xlu0 %3167
        %v3169 = vmul.f32 %v3168, 0.00390625
        %v3170 = vmul.f32 %v3163, %v3163
        %v3171 = vsub.f32 %v3169, %v3170
        %v3172 = vmax.f32 %v3171, 0.0
        %v3173 = vadd.f32 %v3172, 1e-05
        %v3174 = vrsqrt.pop %v3173
        %v3175 = vmul.f32 %v3110, %v3174
        %v3176 = vmul.f32 %v3163, %v3175
        %3178 = vrot.lane.b32.xlu0 %v3176, 1
        %v3179 = vpop.permute.xlu0 %3178
        %v3181 = vsub.f32 %v3110, %v3179
        %3183 = vset.pattern.permute.xlu0 9
        %3184 = vperm.xlu0 %3183, %v3175
        %v3185 = vpop.permute.xlu0 %3184
        %v3187 = vmul.f32 %v3104, %v3185
        %v3188 = vmul.f32 %v3106, %v3185
        %3190 = vset.pattern.permute.xlu0 10
        %3191 = vperm.xlu0 %3190, %v3181
        %v3192 = vpop.permute.xlu0 %3191
        %v3194 = vadd.f32 %v3187, %v3192
        %v3195 = vadd.f32 %v3188, %v3192
        %vm3196 = vcmp.ge.f32.partialorder %v3194, 0.0
        %vm3197 = vcmp.ge.f32.partialorder %v3195, 0.0
        %v3198 = vmul.f32 %v3152, %v3194
        %v3199 = vmul.f32 %v3152, %v3195
        %v3200 = vsel %vm3196, %v3194, %v3198
        %v3201 = vsel %vm3197, %v3195, %v3199
        %s3202 = scalar_lea.vmem %s320, 16 [#allocation13]
        %3203 = vst [vmem:[%s3202] sm:$0xff] %v3200
        %3204 = vst [vmem:[%s3202 + $0x8] sm:$0xff] %v3201
        %s3205 = sand.u32 %s164, 1
        %s3206 = scalar_lea.sflag [#allocation6], %s3205
        %s3207 = sand.u32 %s164, 1
        %s3208 = smul.addr %s3207, 32
        %s3209 = scalar_lea.vmem [#allocation13], %s3208
        // Predicated region
        $region65: #{tpu_custom_call.1} parent=43 // pred_check
          %p3210 = pneg %p174
        $region66: #{tpu_custom_call.1} parent=43 // pred_check_branch
          %3212 = sbr.rel (%p3210) target = $region68
        $region67: #{tpu_custom_call.1} parent=43 // pred_region
          %s3213 = smul.u32 2, %s25
          %s3215 = ssub.s32 512, 512
          %3216 = vsyncadd %s3206, %s3215
          %s3217 = smul.addr %s3213, 2
          %s3218 = smul.addr %s3217, 128
          %s3219 = scalar_lea.hbm %s6, %s3218
          %s3220 = sshll.u32 %s3209, 4
          %s3221 = int_to_ptr.vmem [resolvable:$true] %s3220
          %3226 = dma.vmem_to_hbm [thread:$0]  %s3221, 512, %s3219, %s3206, 256, 256, 16
        $region68: #{tpu_custom_call.1} parent=43 // pred_fallthru
          _
      $region44: #{tpu_custom_call.1} parent=5 // pred_fallthru
        _
      %p3227 = scmp.le.s32.totalorder 2, %s20
      // Predicated region
      $region69: #{tpu_custom_call.1} parent=5 // pred_check
        %p3228 = pneg %p3227
      $region70: #{tpu_custom_call.1} parent=5 // pred_check_branch
        %3230 = sbr.rel (%p3228) target = $region72
      $region71: #{tpu_custom_call.1} parent=5 // pred_region
        %s3231 = ssub.s32 %s20, 2
        // Predicated region
        $region73: #{tpu_custom_call.1} parent=71 // pred_check
          %p3232 = pneg %p180
        $region74: #{tpu_custom_call.1} parent=71 // pred_check_branch
          %3234 = sbr.rel (%p3232) target = $region76
        $region75: #{tpu_custom_call.1} parent=71 // pred_region
          %s3235 = sand.u32 %s165, 1
          %s3236 = scalar_lea.sflag [#allocation6], %s3235
          %s3237 = sand.u32 %s165, 1
          %s3238 = smul.addr %s3237, 32
          %s3239 = scalar_lea.vmem [#allocation13], %s3238
          %3240 = dma.done %s3236, 512
        $region76: #{tpu_custom_call.1} parent=71 // pred_fallthru
          _
      $region72: #{tpu_custom_call.1} parent=5 // pred_fallthru
        _
    $region6: #{tpu_custom_call.1} parent=1 // loop_footer
      %s24 = sadd.s32 1, %s20
    $region7: #{tpu_custom_call.1} parent=1 // loop_footer_branch
      %19 = sbr.rel target = $region3
    $region8: #{tpu_custom_call.1} parent=1 // loop_exit
      _
    %3241 = vsyncpa [#allocation5], 1
    %s3242 = scalar_lea.sflag [#allocation5], 1
    %3243 = vsyncpa %s3242, 1
    %3244 = vsyncpa [#allocation8], 1
    %3245 = vsyncpa [#allocation11], 1
    %3246 = vsyncpa [#allocation6], 1
    %s3247 = scalar_lea.sflag [#allocation6], 1
    %3248 = vsyncpa %s3247, 1

</llo_original>
